<compile_context>
chip_gen: v7x
topology: tpu7x:2x2x1
jax: 0.10.0
libtpu: 0.0.40
codegen_flags: <defaults>
</compile_context>

<pallas_src>
import math

import jax
import jax.numpy as jnp
from jax.experimental import pallas as pl
from jax.experimental.pallas import tpu as pltpu

_BN_EPS = 1e-5


# ----------------------------------------------------------------------------
# Weight / parameter expansion helpers (plain JAX glue, run once per call)
# ----------------------------------------------------------------------------
def _band_weight(w, W, dw=1, pw=0):
    """w: (KW, Cin, Cout) conv taps along W.  Returns the (W*Cin, W*Cout) banded
    block matrix  B[w_in*Cin + c, w_out*Cout + g] = w[kw, c, g]  where
    w_in == w_out + kw*dw - pw  (zero padding handled by band truncation)."""
    KW, Cin, Cout = w.shape
    wi = jnp.arange(W)[:, None]
    wo = jnp.arange(W)[None, :]
    acc = jnp.zeros((W, Cin, W, Cout), jnp.float32)
    for kw in range(KW):
        mask = (wi == wo + (kw * dw - pw)).astype(jnp.float32)        # (W_in, W_out)
        acc = acc + jnp.einsum('io,cg->icog', mask, w[kw].astype(jnp.float32))
    return acc.reshape(W * Cin, W * Cout)


def _tile_c(v, W):
    """Per-channel vector (C,) -> lane-dense (1, W*C) with lane index w*C + c."""
    return jnp.tile(v.astype(jnp.float32), W).reshape(1, -1)


def _rep_spec(a):
    """Full-array block replicated across the batch grid."""
    zeros = (0,) * a.ndim
    return pl.BlockSpec(a.shape, lambda n, _z=zeros: _z)


# ----------------------------------------------------------------------------
# Fully fused _DenseBlock kernel: all _DenseLayers + conv_skip + conv1x1 + add
# ----------------------------------------------------------------------------
def _make_block_kernel(H, W, C0, G, num_layers):
    WC0, WG = W * C0, W * G
    cins = [C0] + [G] * (num_layers - 1)

    def kernel(*refs):
        it = iter(refs)
        x_ref = next(it)
        layer_refs = [tuple(next(it) for _ in range(5)) for _ in range(num_layers)]
        c0_sb_ref = next(it)        # (2, WC0)     : c1 BN scale/shift for chunk 0
        g_sb_ref = next(it)         # (2*L, WG)    : c1 BN scale/shift for chunks 1..L
        c0_band_ref = next(it)      # (WC0, WG)    : c1 1x1 weight band, chunk 0
        g_bands_ref = next(it)      # (L, WG, WG)  : c1 1x1 weight bands, chunks 1..L
        skip_band_ref = next(it)    # (WC0, WG)    : conv_skip (1x1 + BN folded)
        bias_ref = next(it)         # (1, WG)      : c1 bias + folded skip bias
        o_ref = next(it)
        zp_refs = [next(it) for _ in range(num_layers)]   # (H+4, W*Cin_l) each
        up_ref = next(it)                                  # (H+2, WG)

        # Zero padded-halo rows ONCE per grid step; data rows are fully
        # rewritten by every layer, halos never receive data.
        for l, zp in enumerate(zp_refs):
            wcin = W * cins[l]
            zp[0:2, :] = jnp.zeros((2, wcin), jnp.float32)
            zp[2 + H:4 + H, :] = jnp.zeros((2, wcin), jnp.float32)
        up_ref[0:1, :] = jnp.zeros((1, WG), jnp.float32)
        up_ref[1 + H:2 + H, :] = jnp.zeros((1, WG), jnp.float32)

        x = x_ref[...]                                     # (H, W*C0)
        feat = x
        chunks = []                                        # per-layer outputs, kept on-chip
        for l in range(num_layers):
            sb_in, sb_out, w2_ref, w3_ref, w33_ref = layer_refs[l]
            zp = zp_refs[l]

            # --- ACBlock branch conv2: BN+ReLU -> Conv(3,1), dil (2,1), pad (2,0)
            z2 = jnp.maximum(feat * sb_in[0:1, :] + sb_in[1:2, :], 0.0)
            zp[2:2 + H, :] = z2

            # --- ACBlock branch conv3: BN+ReLU -> Conv(1,3), dil (1,2), pad (0,2)
            #     (entire W-direction conv folded into one banded matmul)
            z3 = jnp.maximum(feat * sb_in[2:3, :] + sb_in[3:4, :], 0.0)
            acc = jnp.dot(z3, w3_ref[...], preferred_element_type=jnp.float32)
            for kh in range(3):                            # H taps: rows h-2, h, h+2
                acc = acc + jnp.dot(zp[2 * kh:2 * kh + H, :], w2_ref[kh],
                                    preferred_element_type=jnp.float32)
            acc = acc + sb_out[2:3, :]                     # bias2 + bias3

            # --- second block: BN + ReLU + Conv3x3 (pad 1, dil 1, no bias)
            u = jnp.maximum(acc * sb_out[0:1, :] + sb_out[1:2, :], 0.0)
            up_ref[1:1 + H, :] = u
            out = jnp.dot(up_ref[0:H, :], w33_ref[0], preferred_element_type=jnp.float32)
            for kh in range(1, 3):                         # H taps: rows h-1, h, h+1
                out = out + jnp.dot(up_ref[kh:kh + H, :], w33_ref[kh],
                                    preferred_element_type=jnp.float32)
            feat = out
            chunks.append(out)

        # --- final: conv_skip(init) + conv1x1(BN+ReLU(virtual concat)) + residual
        acc = jnp.dot(x, skip_band_ref[...], preferred_element_type=jnp.float32)
        acc = acc + bias_ref[...]
        z0 = jnp.maximum(x * c0_sb_ref[0:1, :] + c0_sb_ref[1:2, :], 0.0)
        acc = acc + jnp.dot(z0, c0_band_ref[...], preferred_element_type=jnp.float32)
        for l in range(num_layers):
            z = jnp.maximum(chunks[l] * g_sb_ref[2 * l:2 * l + 1, :]
                            + g_sb_ref[2 * l + 1:2 * l + 2, :], 0.0)
            acc = acc + jnp.dot(z, g_bands_ref[l], preferred_element_type=jnp.float32)
        o_ref[...] = acc.astype(o_ref.dtype)

    return kernel


# ----------------------------------------------------------------------------
# Parameters (deterministic, synthetic; BatchNorm folded to inference scale/shift)
# ----------------------------------------------------------------------------
def init_params(key, num_layers, num_input_features, growth_rate):
    keys = iter(jax.random.split(key, 20 * num_layers + 32))

    def bn(c):
        gamma = 1.0 + 0.1 * jax.random.normal(next(keys), (c,))
        beta = 0.1 * jax.random.normal(next(keys), (c,))
        mean = 0.1 * jax.random.normal(next(keys), (c,))
        var = jax.random.uniform(next(keys), (c,), minval=0.5, maxval=1.5)
        scale = gamma * jax.lax.rsqrt(var + _BN_EPS)
        shift = beta - mean * scale
        return scale.astype(jnp.float32), shift.astype(jnp.float32)

    def conv(kh, kw, cin, cout, bias=True):
        bound = 1.0 / math.sqrt(cin * kh * kw)
        w = jax.random.uniform(next(keys), (kh, kw, cin, cout),
                               minval=-bound, maxval=bound).astype(jnp.float32)
        if not bias:
            return w, None
        b = jax.random.uniform(next(keys), (cout,),
                               minval=-bound, maxval=bound).astype(jnp.float32)
        return w, b

    C0, G = num_input_features, growth_rate
    layers = []
    cin = C0
    for _ in range(num_layers):
        bn2_s, bn2_b = bn(cin)                      # ACBlock.conv2: BN
        w2, b2 = conv(3, 1, cin, G)                 # (3,1) conv, dil (2,1), pad (2,0)
        bn3_s, bn3_b = bn(cin)                      # ACBlock.conv3: BN
        w3, b3 = conv(1, 3, cin, G)                 # (1,3) conv, dil (1,2), pad (0,2)
        bn33_s, bn33_b = bn(G)                      # second block BN
        w33, _ = conv(3, 3, G, G, bias=False)       # 3x3 conv, pad 1, no bias
        layers.append(dict(bn2_s=bn2_s, bn2_b=bn2_b, w2=w2, b2=b2,
                           bn3_s=bn3_s, bn3_b=bn3_b, w3=w3, b3=b3,
                           bn33_s=bn33_s, bn33_b=bn33_b, w33=w33))
        cin = G

    out_ch = C0 + num_layers * G
    c1_bn_s, c1_bn_b = bn(out_ch)                   # conv1x1: BN + ReLU + 1x1 conv
    c1_w, c1_b = conv(1, 1, out_ch, G)
    skip_w, skip_b = conv(1, 1, C0, G)              # conv_skip: 1x1 conv then BN
    skip_bn_s, skip_bn_b = bn(G)
    return dict(layers=layers,
                c1_bn_s=c1_bn_s, c1_bn_b=c1_bn_b, c1_w=c1_w, c1_b=c1_b,
                skip_w=skip_w, skip_b=skip_b,
                skip_bn_s=skip_bn_s, skip_bn_b=skip_bn_b)


# ----------------------------------------------------------------------------
# _DenseBlock forward (Pallas): ONE pallas_call total
# ----------------------------------------------------------------------------
def dense_block_forward(params, x_nchw):
    N, C0, H, W = x_nchw.shape
    G = params['c1_w'].shape[-1]
    num_layers = len(params['layers'])
    WC0, WG = W * C0, W * G
    f32 = jnp.float32

    # NCHW -> NHWC -> lane-dense slab (N*H, W*C); lane index = w*C + c
    x_slab = jnp.transpose(x_nchw, (0, 2, 3, 1)).astype(f32).reshape(N * H, WC0)

    inputs = [x_slab]
    flops = 0
    cin = C0
    for lp in params['layers']:
        WCin = W * cin
        # packed per-channel BN params (input side) and (output-side BN + bias)
        sb_in = jnp.concatenate(
            [_tile_c(lp['bn2_s'], W), _tile_c(lp['bn2_b'], W),
             _tile_c(lp['bn3_s'], W), _tile_c(lp['bn3_b'], W)], axis=0)
        sb_out = jnp.concatenate(
            [_tile_c(lp['bn33_s'], W), _tile_c(lp['bn33_b'], W),
             _tile_c(lp['b2'] + lp['b3'], W)], axis=0)
        # banded / block-diagonal weight expansion (W-dim folded into K/N)
        w2blk = jnp.stack([_band_weight(lp['w2'][kh], W, dw=1, pw=0) for kh in range(3)])
        w3band = _band_weight(lp['w3'][0], W, dw=2, pw=2)
        w33blk = jnp.stack([_band_weight(lp['w33'][kh], W, dw=1, pw=1) for kh in range(3)])
        inputs += [sb_in, sb_out, w2blk, w3band, w33blk]
        flops += N * (2 * H * WCin * WG * 4 + 2 * H * WG * WG * 3)
        cin = G

    # final conv1x1 + conv_skip parameters (per-chunk slices of the virtual concat)
    c1_w = params['c1_w'][0, 0]                                   # (C_total, G)
    c0_sb = jnp.concatenate([_tile_c(params['c1_bn_s'][:C0], W),
                             _tile_c(params['c1_bn_b'][:C0], W)], axis=0)
    g_sb = jnp.concatenate(
        [jnp.concatenate(
            [_tile_c(params['c1_bn_s'][C0 + l * G:C0 + (l + 1) * G], W),
             _tile_c(params['c1_bn_b'][C0 + l * G:C0 + (l + 1) * G], W)], axis=0)
         for l in range(num_layers)], axis=0)                      # (2*L, WG)
    c0_band = _band_weight(c1_w[:C0, :][None], W, dw=1, pw=0)
    g_bands = jnp.stack(
        [_band_weight(c1_w[C0 + l * G:C0 + (l + 1) * G, :][None], W, dw=1, pw=0)
         for l in range(num_layers)])
    # conv_skip = 1x1 conv (+bias) then BatchNorm -> fold BN into weight & bias
    skip_w = params['skip_w'][0, 0] * params['skip_bn_s'][None, :]
    skip_b = params['skip_b'] * params['skip_bn_s'] + params['skip_bn_b']
    skip_band = _band_weight(skip_w[None], W, dw=1, pw=0)
    bias_final = _tile_c(params['c1_b'] + skip_b, W)
    inputs += [c0_sb, g_sb, c0_band, g_bands, skip_band, bias_final]
    flops += N * (2 * H * WC0 * WG * 2 + num_layers * 2 * H * WG * WG)

    in_specs = ([pl.BlockSpec((H, WC0), lambda n: (n, 0))]
                + [_rep_spec(a) for a in inputs[1:]])
    bytes_accessed = sum(int(a.size) * 4 for a in inputs) + N * H * WG * 4

    scratch_shapes = ([pltpu.VMEM((H + 4, W * c), f32)            # H-padded ACBlock input
                       for c in [C0] + [G] * (num_layers - 1)]
                      + [pltpu.VMEM((H + 2, WG), f32)])           # H-padded 3x3 input

    out_slab = pl.pallas_call(
        _make_block_kernel(H, W, C0, G, num_layers),
        out_shape=jax.ShapeDtypeStruct((N * H, WG), f32),
        grid=(N,),
        in_specs=in_specs,
        out_specs=pl.BlockSpec((H, WG), lambda n: (n, 0)),
        scratch_shapes=scratch_shapes,
        compiler_params=pltpu.CompilerParams(
            dimension_semantics=("parallel",)),
        cost_estimate=pl.CostEstimate(flops=int(flops), transcendentals=0,
                                      bytes_accessed=int(bytes_accessed)),
    )(*inputs)

    # _DenseLayer._pad is the identity here (all convs preserve H, W).
    # TODO(synk): dropout (drop_rate > 0, training mode) not implemented.
    return out_slab.reshape(N, H, W, G).transpose(0, 3, 1, 2)      # back to NCHW


# ----------------------------------------------------------------------------
# Pure-JAX reference (for correctness verification)
# ----------------------------------------------------------------------------
def ref_forward(params, x_nchw):
    x = jnp.transpose(x_nchw, (0, 2, 3, 1)).astype(jnp.float32)

    def conv(x, w, b=None, dil=(1, 1), pad=(0, 0)):
        out = jax.lax.conv_general_dilated(
            x, w, window_strides=(1, 1),
            padding=((pad[0], pad[0]), (pad[1], pad[1])),
            rhs_dilation=dil,
            dimension_numbers=('NHWC', 'HWIO', 'NHWC'))
        if b is not None:
            out = out + b.reshape(1, 1, 1, -1)
        return out

    def bnrelu(x, s, b):
        return jnp.maximum(x * s.reshape(1, 1, 1, -1) + b.reshape(1, 1, 1, -1), 0.0)

    residual = conv(x, params['skip_w'], params['skip_b'])
    residual = (residual * params['skip_bn_s'].reshape(1, 1, 1, -1)
                + params['skip_bn_b'].reshape(1, 1, 1, -1))
    feats = [x]
    f = x
    for lp in params['layers']:
        o2 = conv(bnrelu(f, lp['bn2_s'], lp['bn2_b']), lp['w2'], lp['b2'],
                  dil=(2, 1), pad=(2, 0))
        o3 = conv(bnrelu(f, lp['bn3_s'], lp['bn3_b']), lp['w3'], lp['b3'],
                  dil=(1, 2), pad=(0, 2))
        ac = o2 + o3
        f = conv(bnrelu(ac, lp['bn33_s'], lp['bn33_b']), lp['w33'], None,
                 dil=(1, 1), pad=(1, 1))
        feats.append(f)
    cat = jnp.concatenate(feats, axis=-1)
    out = conv(bnrelu(cat, params['c1_bn_s'], params['c1_bn_b']),
               params['c1_w'], params['c1_b']) + residual
    return jnp.transpose(out, (0, 3, 1, 2))


# ----------------------------------------------------------------------------
if __name__ == "__main__":
    key = jax.random.PRNGKey(0)
    kx, kp = jax.random.split(key)

    N, C0, H, W = 2, 4, 16, 16          # batch=2, channels=4, spatial=16x16
    num_layers, growth = 3, 8           # concat channels = 4 + 3*8 = 28, output = 8 ch

    x = jax.random.normal(kx, (N, C0, H, W), dtype=jnp.float32)
    params = init_params(kp, num_layers, C0, growth)

    out = jax.jit(dense_block_forward)(params, x)
    out = jax.block_until_ready(out)

    ref = ref_forward(params, x)
    assert out.shape == (N, growth, H, W), out.shape
    max_err = float(jnp.max(jnp.abs(out - ref)))
    assert jnp.allclose(out, ref, atol=1e-3, rtol=1e-3), f"max abs err {max_err}"

    print("KERNEL_OK")
</pallas_src>

<mosaic_0001>
module attributes {stable_mosaic.version = 11 : i64} {
  func.func @kernel(%arg0: i32, %arg1: memref<16x64xf32, #tpu.memory_space<vmem>>, %arg2: memref<4x64xf32, #tpu.memory_space<vmem>>, %arg3: memref<3x128xf32, #tpu.memory_space<vmem>>, %arg4: memref<3x64x128xf32, #tpu.memory_space<vmem>>, %arg5: memref<64x128xf32, #tpu.memory_space<vmem>>, %arg6: memref<3x128x128xf32, #tpu.memory_space<vmem>>, %arg7: memref<4x128xf32, #tpu.memory_space<vmem>>, %arg8: memref<3x128xf32, #tpu.memory_space<vmem>>, %arg9: memref<3x128x128xf32, #tpu.memory_space<vmem>>, %arg10: memref<128x128xf32, #tpu.memory_space<vmem>>, %arg11: memref<3x128x128xf32, #tpu.memory_space<vmem>>, %arg12: memref<4x128xf32, #tpu.memory_space<vmem>>, %arg13: memref<3x128xf32, #tpu.memory_space<vmem>>, %arg14: memref<3x128x128xf32, #tpu.memory_space<vmem>>, %arg15: memref<128x128xf32, #tpu.memory_space<vmem>>, %arg16: memref<3x128x128xf32, #tpu.memory_space<vmem>>, %arg17: memref<2x64xf32, #tpu.memory_space<vmem>>, %arg18: memref<6x128xf32, #tpu.memory_space<vmem>>, %arg19: memref<64x128xf32, #tpu.memory_space<vmem>>, %arg20: memref<3x128x128xf32, #tpu.memory_space<vmem>>, %arg21: memref<64x128xf32, #tpu.memory_space<vmem>>, %arg22: memref<1x128xf32, #tpu.memory_space<vmem>>, %arg23: memref<16x128xf32, #tpu.memory_space<vmem>>, %arg24: memref<20x64xf32, #tpu.memory_space<vmem>>, %arg25: memref<20x128xf32, #tpu.memory_space<vmem>>, %arg26: memref<20x128xf32, #tpu.memory_space<vmem>>, %arg27: memref<18x128xf32, #tpu.memory_space<vmem>>) attributes {dimension_semantics = [#tpu.dimension_semantics<parallel>], iteration_bounds = array<i64: 2>, scalar_prefetch = 0 : i64, scratch_operands = 4 : i64, tpu.core_type = #tpu.core_type<tc>, window_params = [{transform_indices = @transform_0, window_bounds = array<i64: 16, 64>}, {pipeline_mode = #tpu.pipeline_mode<synchronous>, transform_indices = @transform_1, window_bounds = array<i64: 4, 64>}, {pipeline_mode = #tpu.pipeline_mode<synchronous>, transform_indices = @transform_2, window_bounds = array<i64: 3, 128>}, {pipeline_mode = #tpu.pipeline_mode<synchronous>, transform_indices = @transform_3, window_bounds = array<i64: 3, 64, 128>}, {pipeline_mode = #tpu.pipeline_mode<synchronous>, transform_indices = @transform_4, window_bounds = array<i64: 64, 128>}, {pipeline_mode = #tpu.pipeline_mode<synchronous>, transform_indices = @transform_5, window_bounds = array<i64: 3, 128, 128>}, {pipeline_mode = #tpu.pipeline_mode<synchronous>, transform_indices = @transform_6, window_bounds = array<i64: 4, 128>}, {pipeline_mode = #tpu.pipeline_mode<synchronous>, transform_indices = @transform_7, window_bounds = array<i64: 3, 128>}, {pipeline_mode = #tpu.pipeline_mode<synchronous>, transform_indices = @transform_8, window_bounds = array<i64: 3, 128, 128>}, {pipeline_mode = #tpu.pipeline_mode<synchronous>, transform_indices = @transform_9, window_bounds = array<i64: 128, 128>}, {pipeline_mode = #tpu.pipeline_mode<synchronous>, transform_indices = @transform_10, window_bounds = array<i64: 3, 128, 128>}, {pipeline_mode = #tpu.pipeline_mode<synchronous>, transform_indices = @transform_11, window_bounds = array<i64: 4, 128>}, {pipeline_mode = #tpu.pipeline_mode<synchronous>, transform_indices = @transform_12, window_bounds = array<i64: 3, 128>}, {pipeline_mode = #tpu.pipeline_mode<synchronous>, transform_indices = @transform_13, window_bounds = array<i64: 3, 128, 128>}, {pipeline_mode = #tpu.pipeline_mode<synchronous>, transform_indices = @transform_14, window_bounds = array<i64: 128, 128>}, {pipeline_mode = #tpu.pipeline_mode<synchronous>, transform_indices = @transform_15, window_bounds = array<i64: 3, 128, 128>}, {pipeline_mode = #tpu.pipeline_mode<synchronous>, transform_indices = @transform_16, window_bounds = array<i64: 2, 64>}, {pipeline_mode = #tpu.pipeline_mode<synchronous>, transform_indices = @transform_17, window_bounds = array<i64: 6, 128>}, {pipeline_mode = #tpu.pipeline_mode<synchronous>, transform_indices = @transform_18, window_bounds = array<i64: 64, 128>}, {pipeline_mode = #tpu.pipeline_mode<synchronous>, transform_indices = @transform_19, window_bounds = array<i64: 3, 128, 128>}, {pipeline_mode = #tpu.pipeline_mode<synchronous>, transform_indices = @transform_20, window_bounds = array<i64: 64, 128>}, {pipeline_mode = #tpu.pipeline_mode<synchronous>, transform_indices = @transform_21, window_bounds = array<i64: 1, 128>}, {transform_indices = @transform_22, window_bounds = array<i64: 16, 128>}]} {
    %cst = arith.constant 0.000000e+00 : f32
    %0 = vector.broadcast %cst : f32 to vector<2x64xf32>
    %c0 = arith.constant 0 : index
    %c0_0 = arith.constant 0 : index
    %1 = vector.load %arg24[%c0, %c0_0] : memref<20x64xf32, #tpu.memory_space<vmem>>, vector<2x64xf32>
    tpu.vector_store %arg24[%c0, %c0_0], %0 {strides = array<i32>} : memref<20x64xf32, #tpu.memory_space<vmem>>, vector<2x64xf32>,
    %cst_1 = arith.constant 0.000000e+00 : f32
    %2 = vector.broadcast %cst_1 : f32 to vector<2x64xf32>
    %c18 = arith.constant 18 : index
    %c0_2 = arith.constant 0 : index
    %3 = vector.load %arg24[%c18, %c0_2] : memref<20x64xf32, #tpu.memory_space<vmem>>, vector<2x64xf32>
    tpu.vector_store %arg24[%c18, %c0_2], %2 {strides = array<i32>} : memref<20x64xf32, #tpu.memory_space<vmem>>, vector<2x64xf32>,
    %cst_3 = arith.constant 0.000000e+00 : f32
    %4 = vector.broadcast %cst_3 : f32 to vector<2x128xf32>
    %c0_4 = arith.constant 0 : index
    %c0_5 = arith.constant 0 : index
    %5 = vector.load %arg25[%c0_4, %c0_5] : memref<20x128xf32, #tpu.memory_space<vmem>>, vector<2x128xf32>
    tpu.vector_store %arg25[%c0_4, %c0_5], %4 {strides = array<i32>} : memref<20x128xf32, #tpu.memory_space<vmem>>, vector<2x128xf32>,
    %cst_6 = arith.constant 0.000000e+00 : f32
    %6 = vector.broadcast %cst_6 : f32 to vector<2x128xf32>
    %c18_7 = arith.constant 18 : index
    %c0_8 = arith.constant 0 : index
    %7 = vector.load %arg25[%c18_7, %c0_8] : memref<20x128xf32, #tpu.memory_space<vmem>>, vector<2x128xf32>
    tpu.vector_store %arg25[%c18_7, %c0_8], %6 {strides = array<i32>} : memref<20x128xf32, #tpu.memory_space<vmem>>, vector<2x128xf32>,
    %cst_9 = arith.constant 0.000000e+00 : f32
    %8 = vector.broadcast %cst_9 : f32 to vector<2x128xf32>
    %c0_10 = arith.constant 0 : index
    %c0_11 = arith.constant 0 : index
    %9 = vector.load %arg26[%c0_10, %c0_11] : memref<20x128xf32, #tpu.memory_space<vmem>>, vector<2x128xf32>
    tpu.vector_store %arg26[%c0_10, %c0_11], %8 {strides = array<i32>} : memref<20x128xf32, #tpu.memory_space<vmem>>, vector<2x128xf32>,
    %cst_12 = arith.constant 0.000000e+00 : f32
    %10 = vector.broadcast %cst_12 : f32 to vector<2x128xf32>
    %c18_13 = arith.constant 18 : index
    %c0_14 = arith.constant 0 : index
    %11 = vector.load %arg26[%c18_13, %c0_14] : memref<20x128xf32, #tpu.memory_space<vmem>>, vector<2x128xf32>
    tpu.vector_store %arg26[%c18_13, %c0_14], %10 {strides = array<i32>} : memref<20x128xf32, #tpu.memory_space<vmem>>, vector<2x128xf32>,
    %cst_15 = arith.constant 0.000000e+00 : f32
    %12 = vector.broadcast %cst_15 : f32 to vector<1x128xf32>
    %c0_16 = arith.constant 0 : index
    %c0_17 = arith.constant 0 : index
    %13 = vector.load %arg27[%c0_16, %c0_17] : memref<18x128xf32, #tpu.memory_space<vmem>>, vector<1x128xf32>
    tpu.vector_store %arg27[%c0_16, %c0_17], %12 {strides = array<i32>} : memref<18x128xf32, #tpu.memory_space<vmem>>, vector<1x128xf32>,
    %cst_18 = arith.constant 0.000000e+00 : f32
    %14 = vector.broadcast %cst_18 : f32 to vector<1x128xf32>
    %c17 = arith.constant 17 : index
    %c0_19 = arith.constant 0 : index
    %15 = vector.load %arg27[%c17, %c0_19] : memref<18x128xf32, #tpu.memory_space<vmem>>, vector<1x128xf32>
    tpu.vector_store %arg27[%c17, %c0_19], %14 {strides = array<i32>} : memref<18x128xf32, #tpu.memory_space<vmem>>, vector<1x128xf32>,
    %c0_20 = arith.constant 0 : index
    %c0_21 = arith.constant 0 : index
    %16 = vector.load %arg1[%c0_20, %c0_21] : memref<16x64xf32, #tpu.memory_space<vmem>>, vector<16x64xf32>
    %c0_22 = arith.constant 0 : index
    %c0_23 = arith.constant 0 : index
    %17 = vector.load %arg2[%c0_22, %c0_23] : memref<4x64xf32, #tpu.memory_space<vmem>>, vector<1x64xf32>
    %18 = vector.broadcast %17 : vector<1x64xf32> to vector<16x64xf32>
    %19 = arith.mulf %16, %18 : vector<16x64xf32>
    %c1 = arith.constant 1 : index
    %c0_24 = arith.constant 0 : index
    %20 = vector.load %arg2[%c1, %c0_24] : memref<4x64xf32, #tpu.memory_space<vmem>>, vector<1x64xf32>
    %21 = vector.broadcast %20 : vector<1x64xf32> to vector<16x64xf32>
    %22 = arith.addf %19, %21 : vector<16x64xf32>
    %cst_25 = arith.constant 0.000000e+00 : f32
    %23 = vector.broadcast %cst_25 : f32 to vector<16x64xf32>
    %24 = arith.maximumf %22, %23 : vector<16x64xf32>
    %c2 = arith.constant 2 : index
    %c0_26 = arith.constant 0 : index
    %25 = vector.load %arg24[%c2, %c0_26] : memref<20x64xf32, #tpu.memory_space<vmem>>, vector<16x64xf32>
    tpu.vector_store %arg24[%c2, %c0_26], %24 {strides = array<i32>} : memref<20x64xf32, #tpu.memory_space<vmem>>, vector<16x64xf32>,
    %c2_27 = arith.constant 2 : index
    %c0_28 = arith.constant 0 : index
    %26 = vector.load %arg2[%c2_27, %c0_28] : memref<4x64xf32, #tpu.memory_space<vmem>>, vector<1x64xf32>
    %27 = vector.broadcast %26 : vector<1x64xf32> to vector<16x64xf32>
    %28 = arith.mulf %16, %27 : vector<16x64xf32>
    %c3 = arith.constant 3 : index
    %c0_29 = arith.constant 0 : index
    %29 = vector.load %arg2[%c3, %c0_29] : memref<4x64xf32, #tpu.memory_space<vmem>>, vector<1x64xf32>
    %30 = vector.broadcast %29 : vector<1x64xf32> to vector<16x64xf32>
    %31 = arith.addf %28, %30 : vector<16x64xf32>
    %cst_30 = arith.constant 0.000000e+00 : f32
    %32 = vector.broadcast %cst_30 : f32 to vector<16x64xf32>
    %33 = arith.maximumf %31, %32 : vector<16x64xf32>
    %c0_31 = arith.constant 0 : index
    %c0_32 = arith.constant 0 : index
    %34 = vector.load %arg5[%c0_31, %c0_32] : memref<64x128xf32, #tpu.memory_space<vmem>>, vector<64x128xf32>
    %cst_33 = arith.constant dense<0.000000e+00> : vector<16x128xf32>
    %35 = tpu.matmul %33, %34, %cst_33 {dimension_numbers = #tpu.dot_dimension_numbers<[1], [0], [0], [1], [0, 0, 1, 1], [], []>} : vector<16x64xf32>, vector<64x128xf32>, vector<16x128xf32> -> vector<16x128xf32>
    %c0_34 = arith.constant 0 : index
    %c0_35 = arith.constant 0 : index
    %36 = vector.load %arg24[%c0_34, %c0_35] : memref<20x64xf32, #tpu.memory_space<vmem>>, vector<16x64xf32>
    %c0_36 = arith.constant 0 : index
    %c0_37 = arith.constant 0 : index
    %c0_38 = arith.constant 0 : index
    %37 = vector.load %arg4[%c0_36, %c0_37, %c0_38] : memref<3x64x128xf32, #tpu.memory_space<vmem>>, vector<1x64x128xf32>
    %38 = vector.shape_cast %37 : vector<1x64x128xf32> to vector<64x128xf32>
    %cst_39 = arith.constant dense<0.000000e+00> : vector<16x128xf32>
    %39 = tpu.matmul %36, %38, %cst_39 {dimension_numbers = #tpu.dot_dimension_numbers<[1], [0], [0], [1], [0, 0, 1, 1], [], []>} : vector<16x64xf32>, vector<64x128xf32>, vector<16x128xf32> -> vector<16x128xf32>
    %40 = arith.addf %35, %39 : vector<16x128xf32>
    %c2_40 = arith.constant 2 : index
    %c0_41 = arith.constant 0 : index
    %41 = vector.load %arg24[%c2_40, %c0_41] : memref<20x64xf32, #tpu.memory_space<vmem>>, vector<16x64xf32>
    %c1_42 = arith.constant 1 : index
    %c0_43 = arith.constant 0 : index
    %c0_44 = arith.constant 0 : index
    %42 = vector.load %arg4[%c1_42, %c0_43, %c0_44] : memref<3x64x128xf32, #tpu.memory_space<vmem>>, vector<1x64x128xf32>
    %43 = vector.shape_cast %42 : vector<1x64x128xf32> to vector<64x128xf32>
    %cst_45 = arith.constant dense<0.000000e+00> : vector<16x128xf32>
    %44 = tpu.matmul %41, %43, %cst_45 {dimension_numbers = #tpu.dot_dimension_numbers<[1], [0], [0], [1], [0, 0, 1, 1], [], []>} : vector<16x64xf32>, vector<64x128xf32>, vector<16x128xf32> -> vector<16x128xf32>
    %45 = arith.addf %40, %44 : vector<16x128xf32>
    %c4 = arith.constant 4 : index
    %c0_46 = arith.constant 0 : index
    %46 = vector.load %arg24[%c4, %c0_46] : memref<20x64xf32, #tpu.memory_space<vmem>>, vector<16x64xf32>
    %c2_47 = arith.constant 2 : index
    %c0_48 = arith.constant 0 : index
    %c0_49 = arith.constant 0 : index
    %47 = vector.load %arg4[%c2_47, %c0_48, %c0_49] : memref<3x64x128xf32, #tpu.memory_space<vmem>>, vector<1x64x128xf32>
    %48 = vector.shape_cast %47 : vector<1x64x128xf32> to vector<64x128xf32>
    %cst_50 = arith.constant dense<0.000000e+00> : vector<16x128xf32>
    %49 = tpu.matmul %46, %48, %cst_50 {dimension_numbers = #tpu.dot_dimension_numbers<[1], [0], [0], [1], [0, 0, 1, 1], [], []>} : vector<16x64xf32>, vector<64x128xf32>, vector<16x128xf32> -> vector<16x128xf32>
    %50 = arith.addf %45, %49 : vector<16x128xf32>
    %c2_51 = arith.constant 2 : index
    %c0_52 = arith.constant 0 : index
    %51 = vector.load %arg3[%c2_51, %c0_52] : memref<3x128xf32, #tpu.memory_space<vmem>>, vector<1x128xf32>
    %52 = vector.broadcast %51 : vector<1x128xf32> to vector<16x128xf32>
    %53 = arith.addf %50, %52 : vector<16x128xf32>
    %c0_53 = arith.constant 0 : index
    %c0_54 = arith.constant 0 : index
    %54 = vector.load %arg3[%c0_53, %c0_54] : memref<3x128xf32, #tpu.memory_space<vmem>>, vector<1x128xf32>
    %55 = vector.broadcast %54 : vector<1x128xf32> to vector<16x128xf32>
    %56 = arith.mulf %53, %55 : vector<16x128xf32>
    %c1_55 = arith.constant 1 : index
    %c0_56 = arith.constant 0 : index
    %57 = vector.load %arg3[%c1_55, %c0_56] : memref<3x128xf32, #tpu.memory_space<vmem>>, vector<1x128xf32>
    %58 = vector.broadcast %57 : vector<1x128xf32> to vector<16x128xf32>
    %59 = arith.addf %56, %58 : vector<16x128xf32>
    %cst_57 = arith.constant 0.000000e+00 : f32
    %60 = vector.broadcast %cst_57 : f32 to vector<16x128xf32>
    %61 = arith.maximumf %59, %60 : vector<16x128xf32>
    %c1_58 = arith.constant 1 : index
    %c0_59 = arith.constant 0 : index
    %62 = vector.load %arg27[%c1_58, %c0_59] : memref<18x128xf32, #tpu.memory_space<vmem>>, vector<16x128xf32>
    tpu.vector_store %arg27[%c1_58, %c0_59], %61 {strides = array<i32>} : memref<18x128xf32, #tpu.memory_space<vmem>>, vector<16x128xf32>,
    %c0_60 = arith.constant 0 : index
    %c0_61 = arith.constant 0 : index
    %63 = vector.load %arg27[%c0_60, %c0_61] : memref<18x128xf32, #tpu.memory_space<vmem>>, vector<16x128xf32>
    %c0_62 = arith.constant 0 : index
    %c0_63 = arith.constant 0 : index
    %c0_64 = arith.constant 0 : index
    %64 = vector.load %arg6[%c0_62, %c0_63, %c0_64] : memref<3x128x128xf32, #tpu.memory_space<vmem>>, vector<1x128x128xf32>
    %65 = vector.shape_cast %64 : vector<1x128x128xf32> to vector<128x128xf32>
    %cst_65 = arith.constant dense<0.000000e+00> : vector<16x128xf32>
    %66 = tpu.matmul %63, %65, %cst_65 {dimension_numbers = #tpu.dot_dimension_numbers<[1], [0], [0], [1], [0, 0, 1, 1], [], []>} : vector<16x128xf32>, vector<128x128xf32>, vector<16x128xf32> -> vector<16x128xf32>
    %c1_66 = arith.constant 1 : index
    %c0_67 = arith.constant 0 : index
    %67 = vector.load %arg27[%c1_66, %c0_67] : memref<18x128xf32, #tpu.memory_space<vmem>>, vector<16x128xf32>
    %c1_68 = arith.constant 1 : index
    %c0_69 = arith.constant 0 : index
    %c0_70 = arith.constant 0 : index
    %68 = vector.load %arg6[%c1_68, %c0_69, %c0_70] : memref<3x128x128xf32, #tpu.memory_space<vmem>>, vector<1x128x128xf32>
    %69 = vector.shape_cast %68 : vector<1x128x128xf32> to vector<128x128xf32>
    %cst_71 = arith.constant dense<0.000000e+00> : vector<16x128xf32>
    %70 = tpu.matmul %67, %69, %cst_71 {dimension_numbers = #tpu.dot_dimension_numbers<[1], [0], [0], [1], [0, 0, 1, 1], [], []>} : vector<16x128xf32>, vector<128x128xf32>, vector<16x128xf32> -> vector<16x128xf32>
    %71 = arith.addf %66, %70 : vector<16x128xf32>
    %c2_72 = arith.constant 2 : index
    %c0_73 = arith.constant 0 : index
    %72 = vector.load %arg27[%c2_72, %c0_73] : memref<18x128xf32, #tpu.memory_space<vmem>>, vector<16x128xf32>
    %c2_74 = arith.constant 2 : index
    %c0_75 = arith.constant 0 : index
    %c0_76 = arith.constant 0 : index
    %73 = vector.load %arg6[%c2_74, %c0_75, %c0_76] : memref<3x128x128xf32, #tpu.memory_space<vmem>>, vector<1x128x128xf32>
    %74 = vector.shape_cast %73 : vector<1x128x128xf32> to vector<128x128xf32>
    %cst_77 = arith.constant dense<0.000000e+00> : vector<16x128xf32>
    %75 = tpu.matmul %72, %74, %cst_77 {dimension_numbers = #tpu.dot_dimension_numbers<[1], [0], [0], [1], [0, 0, 1, 1], [], []>} : vector<16x128xf32>, vector<128x128xf32>, vector<16x128xf32> -> vector<16x128xf32>
    %76 = arith.addf %71, %75 : vector<16x128xf32>
    %c0_78 = arith.constant 0 : index
    %c0_79 = arith.constant 0 : index
    %77 = vector.load %arg7[%c0_78, %c0_79] : memref<4x128xf32, #tpu.memory_space<vmem>>, vector<1x128xf32>
    %78 = vector.broadcast %77 : vector<1x128xf32> to vector<16x128xf32>
    %79 = arith.mulf %76, %78 : vector<16x128xf32>
    %c1_80 = arith.constant 1 : index
    %c0_81 = arith.constant 0 : index
    %80 = vector.load %arg7[%c1_80, %c0_81] : memref<4x128xf32, #tpu.memory_space<vmem>>, vector<1x128xf32>
    %81 = vector.broadcast %80 : vector<1x128xf32> to vector<16x128xf32>
    %82 = arith.addf %79, %81 : vector<16x128xf32>
    %cst_82 = arith.constant 0.000000e+00 : f32
    %83 = vector.broadcast %cst_82 : f32 to vector<16x128xf32>
    %84 = arith.maximumf %82, %83 : vector<16x128xf32>
    %c2_83 = arith.constant 2 : index
    %c0_84 = arith.constant 0 : index
    %85 = vector.load %arg25[%c2_83, %c0_84] : memref<20x128xf32, #tpu.memory_space<vmem>>, vector<16x128xf32>
    tpu.vector_store %arg25[%c2_83, %c0_84], %84 {strides = array<i32>} : memref<20x128xf32, #tpu.memory_space<vmem>>, vector<16x128xf32>,
    %c2_85 = arith.constant 2 : index
    %c0_86 = arith.constant 0 : index
    %86 = vector.load %arg7[%c2_85, %c0_86] : memref<4x128xf32, #tpu.memory_space<vmem>>, vector<1x128xf32>
    %87 = vector.broadcast %86 : vector<1x128xf32> to vector<16x128xf32>
    %88 = arith.mulf %76, %87 : vector<16x128xf32>
    %c3_87 = arith.constant 3 : index
    %c0_88 = arith.constant 0 : index
    %89 = vector.load %arg7[%c3_87, %c0_88] : memref<4x128xf32, #tpu.memory_space<vmem>>, vector<1x128xf32>
    %90 = vector.broadcast %89 : vector<1x128xf32> to vector<16x128xf32>
    %91 = arith.addf %88, %90 : vector<16x128xf32>
    %cst_89 = arith.constant 0.000000e+00 : f32
    %92 = vector.broadcast %cst_89 : f32 to vector<16x128xf32>
    %93 = arith.maximumf %91, %92 : vector<16x128xf32>
    %c0_90 = arith.constant 0 : index
    %c0_91 = arith.constant 0 : index
    %94 = vector.load %arg10[%c0_90, %c0_91] : memref<128x128xf32, #tpu.memory_space<vmem>>, vector<128x128xf32>
    %cst_92 = arith.constant dense<0.000000e+00> : vector<16x128xf32>
    %95 = tpu.matmul %93, %94, %cst_92 {dimension_numbers = #tpu.dot_dimension_numbers<[1], [0], [0], [1], [0, 0, 1, 1], [], []>} : vector<16x128xf32>, vector<128x128xf32>, vector<16x128xf32> -> vector<16x128xf32>
    %c0_93 = arith.constant 0 : index
    %c0_94 = arith.constant 0 : index
    %96 = vector.load %arg25[%c0_93, %c0_94] : memref<20x128xf32, #tpu.memory_space<vmem>>, vector<16x128xf32>
    %c0_95 = arith.constant 0 : index
    %c0_96 = arith.constant 0 : index
    %c0_97 = arith.constant 0 : index
    %97 = vector.load %arg9[%c0_95, %c0_96, %c0_97] : memref<3x128x128xf32, #tpu.memory_space<vmem>>, vector<1x128x128xf32>
    %98 = vector.shape_cast %97 : vector<1x128x128xf32> to vector<128x128xf32>
    %cst_98 = arith.constant dense<0.000000e+00> : vector<16x128xf32>
    %99 = tpu.matmul %96, %98, %cst_98 {dimension_numbers = #tpu.dot_dimension_numbers<[1], [0], [0], [1], [0, 0, 1, 1], [], []>} : vector<16x128xf32>, vector<128x128xf32>, vector<16x128xf32> -> vector<16x128xf32>
    %100 = arith.addf %95, %99 : vector<16x128xf32>
    %c2_99 = arith.constant 2 : index
    %c0_100 = arith.constant 0 : index
    %101 = vector.load %arg25[%c2_99, %c0_100] : memref<20x128xf32, #tpu.memory_space<vmem>>, vector<16x128xf32>
    %c1_101 = arith.constant 1 : index
    %c0_102 = arith.constant 0 : index
    %c0_103 = arith.constant 0 : index
    %102 = vector.load %arg9[%c1_101, %c0_102, %c0_103] : memref<3x128x128xf32, #tpu.memory_space<vmem>>, vector<1x128x128xf32>
    %103 = vector.shape_cast %102 : vector<1x128x128xf32> to vector<128x128xf32>
    %cst_104 = arith.constant dense<0.000000e+00> : vector<16x128xf32>
    %104 = tpu.matmul %101, %103, %cst_104 {dimension_numbers = #tpu.dot_dimension_numbers<[1], [0], [0], [1], [0, 0, 1, 1], [], []>} : vector<16x128xf32>, vector<128x128xf32>, vector<16x128xf32> -> vector<16x128xf32>
    %105 = arith.addf %100, %104 : vector<16x128xf32>
    %c4_105 = arith.constant 4 : index
    %c0_106 = arith.constant 0 : index
    %106 = vector.load %arg25[%c4_105, %c0_106] : memref<20x128xf32, #tpu.memory_space<vmem>>, vector<16x128xf32>
    %c2_107 = arith.constant 2 : index
    %c0_108 = arith.constant 0 : index
    %c0_109 = arith.constant 0 : index
    %107 = vector.load %arg9[%c2_107, %c0_108, %c0_109] : memref<3x128x128xf32, #tpu.memory_space<vmem>>, vector<1x128x128xf32>
    %108 = vector.shape_cast %107 : vector<1x128x128xf32> to vector<128x128xf32>
    %cst_110 = arith.constant dense<0.000000e+00> : vector<16x128xf32>
    %109 = tpu.matmul %106, %108, %cst_110 {dimension_numbers = #tpu.dot_dimension_numbers<[1], [0], [0], [1], [0, 0, 1, 1], [], []>} : vector<16x128xf32>, vector<128x128xf32>, vector<16x128xf32> -> vector<16x128xf32>
    %110 = arith.addf %105, %109 : vector<16x128xf32>
    %c2_111 = arith.constant 2 : index
    %c0_112 = arith.constant 0 : index
    %111 = vector.load %arg8[%c2_111, %c0_112] : memref<3x128xf32, #tpu.memory_space<vmem>>, vector<1x128xf32>
    %112 = vector.broadcast %111 : vector<1x128xf32> to vector<16x128xf32>
    %113 = arith.addf %110, %112 : vector<16x128xf32>
    %c0_113 = arith.constant 0 : index
    %c0_114 = arith.constant 0 : index
    %114 = vector.load %arg8[%c0_113, %c0_114] : memref<3x128xf32, #tpu.memory_space<vmem>>, vector<1x128xf32>
    %115 = vector.broadcast %114 : vector<1x128xf32> to vector<16x128xf32>
    %116 = arith.mulf %113, %115 : vector<16x128xf32>
    %c1_115 = arith.constant 1 : index
    %c0_116 = arith.constant 0 : index
    %117 = vector.load %arg8[%c1_115, %c0_116] : memref<3x128xf32, #tpu.memory_space<vmem>>, vector<1x128xf32>
    %118 = vector.broadcast %117 : vector<1x128xf32> to vector<16x128xf32>
    %119 = arith.addf %116, %118 : vector<16x128xf32>
    %cst_117 = arith.constant 0.000000e+00 : f32
    %120 = vector.broadcast %cst_117 : f32 to vector<16x128xf32>
    %121 = arith.maximumf %119, %120 : vector<16x128xf32>
    %c1_118 = arith.constant 1 : index
    %c0_119 = arith.constant 0 : index
    %122 = vector.load %arg27[%c1_118, %c0_119] : memref<18x128xf32, #tpu.memory_space<vmem>>, vector<16x128xf32>
    tpu.vector_store %arg27[%c1_118, %c0_119], %121 {strides = array<i32>} : memref<18x128xf32, #tpu.memory_space<vmem>>, vector<16x128xf32>,
    %c0_120 = arith.constant 0 : index
    %c0_121 = arith.constant 0 : index
    %123 = vector.load %arg27[%c0_120, %c0_121] : memref<18x128xf32, #tpu.memory_space<vmem>>, vector<16x128xf32>
    %c0_122 = arith.constant 0 : index
    %c0_123 = arith.constant 0 : index
    %c0_124 = arith.constant 0 : index
    %124 = vector.load %arg11[%c0_122, %c0_123, %c0_124] : memref<3x128x128xf32, #tpu.memory_space<vmem>>, vector<1x128x128xf32>
    %125 = vector.shape_cast %124 : vector<1x128x128xf32> to vector<128x128xf32>
    %cst_125 = arith.constant dense<0.000000e+00> : vector<16x128xf32>
    %126 = tpu.matmul %123, %125, %cst_125 {dimension_numbers = #tpu.dot_dimension_numbers<[1], [0], [0], [1], [0, 0, 1, 1], [], []>} : vector<16x128xf32>, vector<128x128xf32>, vector<16x128xf32> -> vector<16x128xf32>
    %c1_126 = arith.constant 1 : index
    %c0_127 = arith.constant 0 : index
    %127 = vector.load %arg27[%c1_126, %c0_127] : memref<18x128xf32, #tpu.memory_space<vmem>>, vector<16x128xf32>
    %c1_128 = arith.constant 1 : index
    %c0_129 = arith.constant 0 : index
    %c0_130 = arith.constant 0 : index
    %128 = vector.load %arg11[%c1_128, %c0_129, %c0_130] : memref<3x128x128xf32, #tpu.memory_space<vmem>>, vector<1x128x128xf32>
    %129 = vector.shape_cast %128 : vector<1x128x128xf32> to vector<128x128xf32>
    %cst_131 = arith.constant dense<0.000000e+00> : vector<16x128xf32>
    %130 = tpu.matmul %127, %129, %cst_131 {dimension_numbers = #tpu.dot_dimension_numbers<[1], [0], [0], [1], [0, 0, 1, 1], [], []>} : vector<16x128xf32>, vector<128x128xf32>, vector<16x128xf32> -> vector<16x128xf32>
    %131 = arith.addf %126, %130 : vector<16x128xf32>
    %c2_132 = arith.constant 2 : index
    %c0_133 = arith.constant 0 : index
    %132 = vector.load %arg27[%c2_132, %c0_133] : memref<18x128xf32, #tpu.memory_space<vmem>>, vector<16x128xf32>
    %c2_134 = arith.constant 2 : index
    %c0_135 = arith.constant 0 : index
    %c0_136 = arith.constant 0 : index
    %133 = vector.load %arg11[%c2_134, %c0_135, %c0_136] : memref<3x128x128xf32, #tpu.memory_space<vmem>>, vector<1x128x128xf32>
    %134 = vector.shape_cast %133 : vector<1x128x128xf32> to vector<128x128xf32>
    %cst_137 = arith.constant dense<0.000000e+00> : vector<16x128xf32>
    %135 = tpu.matmul %132, %134, %cst_137 {dimension_numbers = #tpu.dot_dimension_numbers<[1], [0], [0], [1], [0, 0, 1, 1], [], []>} : vector<16x128xf32>, vector<128x128xf32>, vector<16x128xf32> -> vector<16x128xf32>
    %136 = arith.addf %131, %135 : vector<16x128xf32>
    %c0_138 = arith.constant 0 : index
    %c0_139 = arith.constant 0 : index
    %137 = vector.load %arg12[%c0_138, %c0_139] : memref<4x128xf32, #tpu.memory_space<vmem>>, vector<1x128xf32>
    %138 = vector.broadcast %137 : vector<1x128xf32> to vector<16x128xf32>
    %139 = arith.mulf %136, %138 : vector<16x128xf32>
    %c1_140 = arith.constant 1 : index
    %c0_141 = arith.constant 0 : index
    %140 = vector.load %arg12[%c1_140, %c0_141] : memref<4x128xf32, #tpu.memory_space<vmem>>, vector<1x128xf32>
    %141 = vector.broadcast %140 : vector<1x128xf32> to vector<16x128xf32>
    %142 = arith.addf %139, %141 : vector<16x128xf32>
    %cst_142 = arith.constant 0.000000e+00 : f32
    %143 = vector.broadcast %cst_142 : f32 to vector<16x128xf32>
    %144 = arith.maximumf %142, %143 : vector<16x128xf32>
    %c2_143 = arith.constant 2 : index
    %c0_144 = arith.constant 0 : index
    %145 = vector.load %arg26[%c2_143, %c0_144] : memref<20x128xf32, #tpu.memory_space<vmem>>, vector<16x128xf32>
    tpu.vector_store %arg26[%c2_143, %c0_144], %144 {strides = array<i32>} : memref<20x128xf32, #tpu.memory_space<vmem>>, vector<16x128xf32>,
    %c2_145 = arith.constant 2 : index
    %c0_146 = arith.constant 0 : index
    %146 = vector.load %arg12[%c2_145, %c0_146] : memref<4x128xf32, #tpu.memory_space<vmem>>, vector<1x128xf32>
    %147 = vector.broadcast %146 : vector<1x128xf32> to vector<16x128xf32>
    %148 = arith.mulf %136, %147 : vector<16x128xf32>
    %c3_147 = arith.constant 3 : index
    %c0_148 = arith.constant 0 : index
    %149 = vector.load %arg12[%c3_147, %c0_148] : memref<4x128xf32, #tpu.memory_space<vmem>>, vector<1x128xf32>
    %150 = vector.broadcast %149 : vector<1x128xf32> to vector<16x128xf32>
    %151 = arith.addf %148, %150 : vector<16x128xf32>
    %cst_149 = arith.constant 0.000000e+00 : f32
    %152 = vector.broadcast %cst_149 : f32 to vector<16x128xf32>
    %153 = arith.maximumf %151, %152 : vector<16x128xf32>
    %c0_150 = arith.constant 0 : index
    %c0_151 = arith.constant 0 : index
    %154 = vector.load %arg15[%c0_150, %c0_151] : memref<128x128xf32, #tpu.memory_space<vmem>>, vector<128x128xf32>
    %cst_152 = arith.constant dense<0.000000e+00> : vector<16x128xf32>
    %155 = tpu.matmul %153, %154, %cst_152 {dimension_numbers = #tpu.dot_dimension_numbers<[1], [0], [0], [1], [0, 0, 1, 1], [], []>} : vector<16x128xf32>, vector<128x128xf32>, vector<16x128xf32> -> vector<16x128xf32>
    %c0_153 = arith.constant 0 : index
    %c0_154 = arith.constant 0 : index
    %156 = vector.load %arg26[%c0_153, %c0_154] : memref<20x128xf32, #tpu.memory_space<vmem>>, vector<16x128xf32>
    %c0_155 = arith.constant 0 : index
    %c0_156 = arith.constant 0 : index
    %c0_157 = arith.constant 0 : index
    %157 = vector.load %arg14[%c0_155, %c0_156, %c0_157] : memref<3x128x128xf32, #tpu.memory_space<vmem>>, vector<1x128x128xf32>
    %158 = vector.shape_cast %157 : vector<1x128x128xf32> to vector<128x128xf32>
    %cst_158 = arith.constant dense<0.000000e+00> : vector<16x128xf32>
    %159 = tpu.matmul %156, %158, %cst_158 {dimension_numbers = #tpu.dot_dimension_numbers<[1], [0], [0], [1], [0, 0, 1, 1], [], []>} : vector<16x128xf32>, vector<128x128xf32>, vector<16x128xf32> -> vector<16x128xf32>
    %160 = arith.addf %155, %159 : vector<16x128xf32>
    %c2_159 = arith.constant 2 : index
    %c0_160 = arith.constant 0 : index
    %161 = vector.load %arg26[%c2_159, %c0_160] : memref<20x128xf32, #tpu.memory_space<vmem>>, vector<16x128xf32>
    %c1_161 = arith.constant 1 : index
    %c0_162 = arith.constant 0 : index
    %c0_163 = arith.constant 0 : index
    %162 = vector.load %arg14[%c1_161, %c0_162, %c0_163] : memref<3x128x128xf32, #tpu.memory_space<vmem>>, vector<1x128x128xf32>
    %163 = vector.shape_cast %162 : vector<1x128x128xf32> to vector<128x128xf32>
    %cst_164 = arith.constant dense<0.000000e+00> : vector<16x128xf32>
    %164 = tpu.matmul %161, %163, %cst_164 {dimension_numbers = #tpu.dot_dimension_numbers<[1], [0], [0], [1], [0, 0, 1, 1], [], []>} : vector<16x128xf32>, vector<128x128xf32>, vector<16x128xf32> -> vector<16x128xf32>
    %165 = arith.addf %160, %164 : vector<16x128xf32>
    %c4_165 = arith.constant 4 : index
    %c0_166 = arith.constant 0 : index
    %166 = vector.load %arg26[%c4_165, %c0_166] : memref<20x128xf32, #tpu.memory_space<vmem>>, vector<16x128xf32>
    %c2_167 = arith.constant 2 : index
    %c0_168 = arith.constant 0 : index
    %c0_169 = arith.constant 0 : index
    %167 = vector.load %arg14[%c2_167, %c0_168, %c0_169] : memref<3x128x128xf32, #tpu.memory_space<vmem>>, vector<1x128x128xf32>
    %168 = vector.shape_cast %167 : vector<1x128x128xf32> to vector<128x128xf32>
    %cst_170 = arith.constant dense<0.000000e+00> : vector<16x128xf32>
    %169 = tpu.matmul %166, %168, %cst_170 {dimension_numbers = #tpu.dot_dimension_numbers<[1], [0], [0], [1], [0, 0, 1, 1], [], []>} : vector<16x128xf32>, vector<128x128xf32>, vector<16x128xf32> -> vector<16x128xf32>
    %170 = arith.addf %165, %169 : vector<16x128xf32>
    %c2_171 = arith.constant 2 : index
    %c0_172 = arith.constant 0 : index
    %171 = vector.load %arg13[%c2_171, %c0_172] : memref<3x128xf32, #tpu.memory_space<vmem>>, vector<1x128xf32>
    %172 = vector.broadcast %171 : vector<1x128xf32> to vector<16x128xf32>
    %173 = arith.addf %170, %172 : vector<16x128xf32>
    %c0_173 = arith.constant 0 : index
    %c0_174 = arith.constant 0 : index
    %174 = vector.load %arg13[%c0_173, %c0_174] : memref<3x128xf32, #tpu.memory_space<vmem>>, vector<1x128xf32>
    %175 = vector.broadcast %174 : vector<1x128xf32> to vector<16x128xf32>
    %176 = arith.mulf %173, %175 : vector<16x128xf32>
    %c1_175 = arith.constant 1 : index
    %c0_176 = arith.constant 0 : index
    %177 = vector.load %arg13[%c1_175, %c0_176] : memref<3x128xf32, #tpu.memory_space<vmem>>, vector<1x128xf32>
    %178 = vector.broadcast %177 : vector<1x128xf32> to vector<16x128xf32>
    %179 = arith.addf %176, %178 : vector<16x128xf32>
    %cst_177 = arith.constant 0.000000e+00 : f32
    %180 = vector.broadcast %cst_177 : f32 to vector<16x128xf32>
    %181 = arith.maximumf %179, %180 : vector<16x128xf32>
    %c1_178 = arith.constant 1 : index
    %c0_179 = arith.constant 0 : index
    %182 = vector.load %arg27[%c1_178, %c0_179] : memref<18x128xf32, #tpu.memory_space<vmem>>, vector<16x128xf32>
    tpu.vector_store %arg27[%c1_178, %c0_179], %181 {strides = array<i32>} : memref<18x128xf32, #tpu.memory_space<vmem>>, vector<16x128xf32>,
    %c0_180 = arith.constant 0 : index
    %c0_181 = arith.constant 0 : index
    %183 = vector.load %arg27[%c0_180, %c0_181] : memref<18x128xf32, #tpu.memory_space<vmem>>, vector<16x128xf32>
    %c0_182 = arith.constant 0 : index
    %c0_183 = arith.constant 0 : index
    %c0_184 = arith.constant 0 : index
    %184 = vector.load %arg16[%c0_182, %c0_183, %c0_184] : memref<3x128x128xf32, #tpu.memory_space<vmem>>, vector<1x128x128xf32>
    %185 = vector.shape_cast %184 : vector<1x128x128xf32> to vector<128x128xf32>
    %cst_185 = arith.constant dense<0.000000e+00> : vector<16x128xf32>
    %186 = tpu.matmul %183, %185, %cst_185 {dimension_numbers = #tpu.dot_dimension_numbers<[1], [0], [0], [1], [0, 0, 1, 1], [], []>} : vector<16x128xf32>, vector<128x128xf32>, vector<16x128xf32> -> vector<16x128xf32>
    %c1_186 = arith.constant 1 : index
    %c0_187 = arith.constant 0 : index
    %187 = vector.load %arg27[%c1_186, %c0_187] : memref<18x128xf32, #tpu.memory_space<vmem>>, vector<16x128xf32>
    %c1_188 = arith.constant 1 : index
    %c0_189 = arith.constant 0 : index
    %c0_190 = arith.constant 0 : index
    %188 = vector.load %arg16[%c1_188, %c0_189, %c0_190] : memref<3x128x128xf32, #tpu.memory_space<vmem>>, vector<1x128x128xf32>
    %189 = vector.shape_cast %188 : vector<1x128x128xf32> to vector<128x128xf32>
    %cst_191 = arith.constant dense<0.000000e+00> : vector<16x128xf32>
    %190 = tpu.matmul %187, %189, %cst_191 {dimension_numbers = #tpu.dot_dimension_numbers<[1], [0], [0], [1], [0, 0, 1, 1], [], []>} : vector<16x128xf32>, vector<128x128xf32>, vector<16x128xf32> -> vector<16x128xf32>
    %191 = arith.addf %186, %190 : vector<16x128xf32>
    %c2_192 = arith.constant 2 : index
    %c0_193 = arith.constant 0 : index
    %192 = vector.load %arg27[%c2_192, %c0_193] : memref<18x128xf32, #tpu.memory_space<vmem>>, vector<16x128xf32>
    %c2_194 = arith.constant 2 : index
    %c0_195 = arith.constant 0 : index
    %c0_196 = arith.constant 0 : index
    %193 = vector.load %arg16[%c2_194, %c0_195, %c0_196] : memref<3x128x128xf32, #tpu.memory_space<vmem>>, vector<1x128x128xf32>
    %194 = vector.shape_cast %193 : vector<1x128x128xf32> to vector<128x128xf32>
    %cst_197 = arith.constant dense<0.000000e+00> : vector<16x128xf32>
    %195 = tpu.matmul %192, %194, %cst_197 {dimension_numbers = #tpu.dot_dimension_numbers<[1], [0], [0], [1], [0, 0, 1, 1], [], []>} : vector<16x128xf32>, vector<128x128xf32>, vector<16x128xf32> -> vector<16x128xf32>
    %196 = arith.addf %191, %195 : vector<16x128xf32>
    %c0_198 = arith.constant 0 : index
    %c0_199 = arith.constant 0 : index
    %197 = vector.load %arg21[%c0_198, %c0_199] : memref<64x128xf32, #tpu.memory_space<vmem>>, vector<64x128xf32>
    %cst_200 = arith.constant dense<0.000000e+00> : vector<16x128xf32>
    %198 = tpu.matmul %16, %197, %cst_200 {dimension_numbers = #tpu.dot_dimension_numbers<[1], [0], [0], [1], [0, 0, 1, 1], [], []>} : vector<16x64xf32>, vector<64x128xf32>, vector<16x128xf32> -> vector<16x128xf32>
    %c0_201 = arith.constant 0 : index
    %c0_202 = arith.constant 0 : index
    %199 = vector.load %arg22[%c0_201, %c0_202] : memref<1x128xf32, #tpu.memory_space<vmem>>, vector<1x128xf32>
    %200 = vector.broadcast %199 : vector<1x128xf32> to vector<16x128xf32>
    %201 = arith.addf %198, %200 : vector<16x128xf32>
    %c0_203 = arith.constant 0 : index
    %c0_204 = arith.constant 0 : index
    %202 = vector.load %arg17[%c0_203, %c0_204] : memref<2x64xf32, #tpu.memory_space<vmem>>, vector<1x64xf32>
    %203 = vector.broadcast %202 : vector<1x64xf32> to vector<16x64xf32>
    %204 = arith.mulf %16, %203 : vector<16x64xf32>
    %c1_205 = arith.constant 1 : index
    %c0_206 = arith.constant 0 : index
    %205 = vector.load %arg17[%c1_205, %c0_206] : memref<2x64xf32, #tpu.memory_space<vmem>>, vector<1x64xf32>
    %206 = vector.broadcast %205 : vector<1x64xf32> to vector<16x64xf32>
    %207 = arith.addf %204, %206 : vector<16x64xf32>
    %cst_207 = arith.constant 0.000000e+00 : f32
    %208 = vector.broadcast %cst_207 : f32 to vector<16x64xf32>
    %209 = arith.maximumf %207, %208 : vector<16x64xf32>
    %c0_208 = arith.constant 0 : index
    %c0_209 = arith.constant 0 : index
    %210 = vector.load %arg19[%c0_208, %c0_209] : memref<64x128xf32, #tpu.memory_space<vmem>>, vector<64x128xf32>
    %cst_210 = arith.constant dense<0.000000e+00> : vector<16x128xf32>
    %211 = tpu.matmul %209, %210, %cst_210 {dimension_numbers = #tpu.dot_dimension_numbers<[1], [0], [0], [1], [0, 0, 1, 1], [], []>} : vector<16x64xf32>, vector<64x128xf32>, vector<16x128xf32> -> vector<16x128xf32>
    %212 = arith.addf %201, %211 : vector<16x128xf32>
    %c0_211 = arith.constant 0 : index
    %c0_212 = arith.constant 0 : index
    %213 = vector.load %arg18[%c0_211, %c0_212] : memref<6x128xf32, #tpu.memory_space<vmem>>, vector<1x128xf32>
    %214 = vector.broadcast %213 : vector<1x128xf32> to vector<16x128xf32>
    %215 = arith.mulf %76, %214 : vector<16x128xf32>
    %c1_213 = arith.constant 1 : index
    %c0_214 = arith.constant 0 : index
    %216 = vector.load %arg18[%c1_213, %c0_214] : memref<6x128xf32, #tpu.memory_space<vmem>>, vector<1x128xf32>
    %217 = vector.broadcast %216 : vector<1x128xf32> to vector<16x128xf32>
    %218 = arith.addf %215, %217 : vector<16x128xf32>
    %cst_215 = arith.constant 0.000000e+00 : f32
    %219 = vector.broadcast %cst_215 : f32 to vector<16x128xf32>
    %220 = arith.maximumf %218, %219 : vector<16x128xf32>
    %c0_216 = arith.constant 0 : index
    %c0_217 = arith.constant 0 : index
    %c0_218 = arith.constant 0 : index
    %221 = vector.load %arg20[%c0_216, %c0_217, %c0_218] : memref<3x128x128xf32, #tpu.memory_space<vmem>>, vector<1x128x128xf32>
    %222 = vector.shape_cast %221 : vector<1x128x128xf32> to vector<128x128xf32>
    %cst_219 = arith.constant dense<0.000000e+00> : vector<16x128xf32>
    %223 = tpu.matmul %220, %222, %cst_219 {dimension_numbers = #tpu.dot_dimension_numbers<[1], [0], [0], [1], [0, 0, 1, 1], [], []>} : vector<16x128xf32>, vector<128x128xf32>, vector<16x128xf32> -> vector<16x128xf32>
    %224 = arith.addf %212, %223 : vector<16x128xf32>
    %c2_220 = arith.constant 2 : index
    %c0_221 = arith.constant 0 : index
    %225 = vector.load %arg18[%c2_220, %c0_221] : memref<6x128xf32, #tpu.memory_space<vmem>>, vector<1x128xf32>
    %226 = vector.broadcast %225 : vector<1x128xf32> to vector<16x128xf32>
    %227 = arith.mulf %136, %226 : vector<16x128xf32>
    %c3_222 = arith.constant 3 : index
    %c0_223 = arith.constant 0 : index
    %228 = vector.load %arg18[%c3_222, %c0_223] : memref<6x128xf32, #tpu.memory_space<vmem>>, vector<1x128xf32>
    %229 = vector.broadcast %228 : vector<1x128xf32> to vector<16x128xf32>
    %230 = arith.addf %227, %229 : vector<16x128xf32>
    %cst_224 = arith.constant 0.000000e+00 : f32
    %231 = vector.broadcast %cst_224 : f32 to vector<16x128xf32>
    %232 = arith.maximumf %230, %231 : vector<16x128xf32>
    %c1_225 = arith.constant 1 : index
    %c0_226 = arith.constant 0 : index
    %c0_227 = arith.constant 0 : index
    %233 = vector.load %arg20[%c1_225, %c0_226, %c0_227] : memref<3x128x128xf32, #tpu.memory_space<vmem>>, vector<1x128x128xf32>
    %234 = vector.shape_cast %233 : vector<1x128x128xf32> to vector<128x128xf32>
    %cst_228 = arith.constant dense<0.000000e+00> : vector<16x128xf32>
    %235 = tpu.matmul %232, %234, %cst_228 {dimension_numbers = #tpu.dot_dimension_numbers<[1], [0], [0], [1], [0, 0, 1, 1], [], []>} : vector<16x128xf32>, vector<128x128xf32>, vector<16x128xf32> -> vector<16x128xf32>
    %236 = arith.addf %224, %235 : vector<16x128xf32>
    %c4_229 = arith.constant 4 : index
    %c0_230 = arith.constant 0 : index
    %237 = vector.load %arg18[%c4_229, %c0_230] : memref<6x128xf32, #tpu.memory_space<vmem>>, vector<1x128xf32>
    %238 = vector.broadcast %237 : vector<1x128xf32> to vector<16x128xf32>
    %239 = arith.mulf %196, %238 : vector<16x128xf32>
    %c5 = arith.constant 5 : index
    %c0_231 = arith.constant 0 : index
    %240 = vector.load %arg18[%c5, %c0_231] : memref<6x128xf32, #tpu.memory_space<vmem>>, vector<1x128xf32>
    %241 = vector.broadcast %240 : vector<1x128xf32> to vector<16x128xf32>
    %242 = arith.addf %239, %241 : vector<16x128xf32>
    %cst_232 = arith.constant 0.000000e+00 : f32
    %243 = vector.broadcast %cst_232 : f32 to vector<16x128xf32>
    %244 = arith.maximumf %242, %243 : vector<16x128xf32>
    %c2_233 = arith.constant 2 : index
    %c0_234 = arith.constant 0 : index
    %c0_235 = arith.constant 0 : index
    %245 = vector.load %arg20[%c2_233, %c0_234, %c0_235] : memref<3x128x128xf32, #tpu.memory_space<vmem>>, vector<1x128x128xf32>
    %246 = vector.shape_cast %245 : vector<1x128x128xf32> to vector<128x128xf32>
    %cst_236 = arith.constant dense<0.000000e+00> : vector<16x128xf32>
    %247 = tpu.matmul %244, %246, %cst_236 {dimension_numbers = #tpu.dot_dimension_numbers<[1], [0], [0], [1], [0, 0, 1, 1], [], []>} : vector<16x128xf32>, vector<128x128xf32>, vector<16x128xf32> -> vector<16x128xf32>
    %248 = arith.addf %236, %247 : vector<16x128xf32>
    %c0_237 = arith.constant 0 : index
    %c0_238 = arith.constant 0 : index
    %249 = vector.load %arg23[%c0_237, %c0_238] : memref<16x128xf32, #tpu.memory_space<vmem>>, vector<16x128xf32>
    tpu.vector_store %arg23[%c0_237, %c0_238], %248 {strides = array<i32>} : memref<16x128xf32, #tpu.memory_space<vmem>>, vector<16x128xf32>,
    return
  }
  func.func @transform_0(%arg0: i32) -> (i32, i32) {
    %c0_i32 = arith.constant 0 : i32
    %c0_i32_0 = arith.constant 0 : i32
    return %arg0, %c0_i32 : i32, i32
  }
  func.func @transform_1(%arg0: i32) -> (i32, i32) {
    %c0_i32 = arith.constant 0 : i32
    %c0_i32_0 = arith.constant 0 : i32
    %c0_i32_1 = arith.constant 0 : i32
    return %c0_i32, %c0_i32_0 : i32, i32
  }
  func.func @transform_2(%arg0: i32) -> (i32, i32) {
    %c0_i32 = arith.constant 0 : i32
    %c0_i32_0 = arith.constant 0 : i32
    %c0_i32_1 = arith.constant 0 : i32
    return %c0_i32, %c0_i32_0 : i32, i32
  }
  func.func @transform_3(%arg0: i32) -> (i32, i32, i32) {
    %c0_i32 = arith.constant 0 : i32
    %c0_i32_0 = arith.constant 0 : i32
    %c0_i32_1 = arith.constant 0 : i32
    %c0_i32_2 = arith.constant 0 : i32
    return %c0_i32, %c0_i32_0, %c0_i32_1 : i32, i32, i32
  }
  func.func @transform_4(%arg0: i32) -> (i32, i32) {
    %c0_i32 = arith.constant 0 : i32
    %c0_i32_0 = arith.constant 0 : i32
    %c0_i32_1 = arith.constant 0 : i32
    return %c0_i32, %c0_i32_0 : i32, i32
  }
  func.func @transform_5(%arg0: i32) -> (i32, i32, i32) {
    %c0_i32 = arith.constant 0 : i32
    %c0_i32_0 = arith.constant 0 : i32
    %c0_i32_1 = arith.constant 0 : i32
    %c0_i32_2 = arith.constant 0 : i32
    return %c0_i32, %c0_i32_0, %c0_i32_1 : i32, i32, i32
  }
  func.func @transform_6(%arg0: i32) -> (i32, i32) {
    %c0_i32 = arith.constant 0 : i32
    %c0_i32_0 = arith.constant 0 : i32
    %c0_i32_1 = arith.constant 0 : i32
    return %c0_i32, %c0_i32_0 : i32, i32
  }
  func.func @transform_7(%arg0: i32) -> (i32, i32) {
    %c0_i32 = arith.constant 0 : i32
    %c0_i32_0 = arith.constant 0 : i32
    %c0_i32_1 = arith.constant 0 : i32
    return %c0_i32, %c0_i32_0 : i32, i32
  }
  func.func @transform_8(%arg0: i32) -> (i32, i32, i32) {
    %c0_i32 = arith.constant 0 : i32
    %c0_i32_0 = arith.constant 0 : i32
    %c0_i32_1 = arith.constant 0 : i32
    %c0_i32_2 = arith.constant 0 : i32
    return %c0_i32, %c0_i32_0, %c0_i32_1 : i32, i32, i32
  }
  func.func @transform_9(%arg0: i32) -> (i32, i32) {
    %c0_i32 = arith.constant 0 : i32
    %c0_i32_0 = arith.constant 0 : i32
    %c0_i32_1 = arith.constant 0 : i32
    return %c0_i32, %c0_i32_0 : i32, i32
  }
  func.func @transform_10(%arg0: i32) -> (i32, i32, i32) {
    %c0_i32 = arith.constant 0 : i32
    %c0_i32_0 = arith.constant 0 : i32
    %c0_i32_1 = arith.constant 0 : i32
    %c0_i32_2 = arith.constant 0 : i32
    return %c0_i32, %c0_i32_0, %c0_i32_1 : i32, i32, i32
  }
  func.func @transform_11(%arg0: i32) -> (i32, i32) {
    %c0_i32 = arith.constant 0 : i32
    %c0_i32_0 = arith.constant 0 : i32
    %c0_i32_1 = arith.constant 0 : i32
    return %c0_i32, %c0_i32_0 : i32, i32
  }
  func.func @transform_12(%arg0: i32) -> (i32, i32) {
    %c0_i32 = arith.constant 0 : i32
    %c0_i32_0 = arith.constant 0 : i32
    %c0_i32_1 = arith.constant 0 : i32
    return %c0_i32, %c0_i32_0 : i32, i32
  }
  func.func @transform_13(%arg0: i32) -> (i32, i32, i32) {
    %c0_i32 = arith.constant 0 : i32
    %c0_i32_0 = arith.constant 0 : i32
    %c0_i32_1 = arith.constant 0 : i32
    %c0_i32_2 = arith.constant 0 : i32
    return %c0_i32, %c0_i32_0, %c0_i32_1 : i32, i32, i32
  }
  func.func @transform_14(%arg0: i32) -> (i32, i32) {
    %c0_i32 = arith.constant 0 : i32
    %c0_i32_0 = arith.constant 0 : i32
    %c0_i32_1 = arith.constant 0 : i32
    return %c0_i32, %c0_i32_0 : i32, i32
  }
  func.func @transform_15(%arg0: i32) -> (i32, i32, i32) {
    %c0_i32 = arith.constant 0 : i32
    %c0_i32_0 = arith.constant 0 : i32
    %c0_i32_1 = arith.constant 0 : i32
    %c0_i32_2 = arith.constant 0 : i32
    return %c0_i32, %c0_i32_0, %c0_i32_1 : i32, i32, i32
  }
  func.func @transform_16(%arg0: i32) -> (i32, i32) {
    %c0_i32 = arith.constant 0 : i32
    %c0_i32_0 = arith.constant 0 : i32
    %c0_i32_1 = arith.constant 0 : i32
    return %c0_i32, %c0_i32_0 : i32, i32
  }
  func.func @transform_17(%arg0: i32) -> (i32, i32) {
    %c0_i32 = arith.constant 0 : i32
    %c0_i32_0 = arith.constant 0 : i32
    %c0_i32_1 = arith.constant 0 : i32
    return %c0_i32, %c0_i32_0 : i32, i32
  }
  func.func @transform_18(%arg0: i32) -> (i32, i32) {
    %c0_i32 = arith.constant 0 : i32
    %c0_i32_0 = arith.constant 0 : i32
    %c0_i32_1 = arith.constant 0 : i32
    return %c0_i32, %c0_i32_0 : i32, i32
  }
  func.func @transform_19(%arg0: i32) -> (i32, i32, i32) {
    %c0_i32 = arith.constant 0 : i32
    %c0_i32_0 = arith.constant 0 : i32
    %c0_i32_1 = arith.constant 0 : i32
    %c0_i32_2 = arith.constant 0 : i32
    return %c0_i32, %c0_i32_0, %c0_i32_1 : i32, i32, i32
  }
  func.func @transform_20(%arg0: i32) -> (i32, i32) {
    %c0_i32 = arith.constant 0 : i32
    %c0_i32_0 = arith.constant 0 : i32
    %c0_i32_1 = arith.constant 0 : i32
    return %c0_i32, %c0_i32_0 : i32, i32
  }
  func.func @transform_21(%arg0: i32) -> (i32, i32) {
    %c0_i32 = arith.constant 0 : i32
    %c0_i32_0 = arith.constant 0 : i32
    %c0_i32_1 = arith.constant 0 : i32
    return %c0_i32, %c0_i32_0 : i32, i32
  }
  func.func @transform_22(%arg0: i32) -> (i32, i32) {
    %c0_i32 = arith.constant 0 : i32
    %c0_i32_0 = arith.constant 0 : i32
    return %arg0, %c0_i32 : i32, i32
  }
}

</mosaic_0001>

<llo_original>
// kernel: tile.268
$region0: #{tile.268}
  #allocation0 [shape = 's32[1]{0}', space=sflag, size = 0x4, scoped, tag = 'scoped memory for tile.268']
  %s0 = inlined_call_operand.vmem [shape: f32[8], index: 0, kind: input, shape index: {}]
  %s1 = inlined_call_operand.vmem [shape: f32[16,8], index: 1, kind: output, shape index: {}]
  // Predicated region
  $region2: #{tile.268} parent=0 // pred_check
    _
  $region3: #{tile.268} parent=0 // pred_check_branch
    %3 = sbr.rel (0) target = $region5
  $region4: #{tile.268} parent=0 // pred_region
    _
  $region5: #{tile.268} parent=0 // pred_fallthru
    _
  %v4 = vld [vmem:[%s0] ss:$0 sm:$0xff]
  %5 = vst [vmem:[%s1] sm:$0xff] %v4
  %s6 = scalar_lea.vmem %s1, 8
  %7 = vst [vmem:[%s6] sm:$0xff] %v4

// kernel: tile.269
$region0: #{tile.269}
  %s0 = inlined_call_operand.vmem [shape: f32[16,8], index: 0, kind: input, shape index: {}]
  %s1 = inlined_call_operand.vmem [shape: f32[1,128], index: 1, kind: output, shape index: {}]
  $region1: #{tile.269} parent=0
    #allocation0 [shape = 'u8[4096]{0}', space=vmem, size = 0x1000, scoped, tag = 'scoped mem for output reshape']
    %v2 = vld [vmem:[%s0] sm:$0x1]
    %vm3 = vcmask 64512
    %4 = vst.msk [vmem:[#allocation0] sm:$0x1] %vm3, %v2
    %s5 = scalar_lea.vmem %s0, 15
    %v6 = vld [vmem:[%s5] sm:$0x1]
    %7 = vrot.lane.b32.xlu0 %v6, 120
    %v8 = vpop.permute.xlu0 %7
    %vm9 = vcmask 1048512
    %10 = vst.msk [vmem:[#allocation0] sm:$0x1] %vm9, %v8
    %s11 = scalar_lea.vmem %s0, 14
    %v12 = vld [vmem:[%s11] sm:$0x1]
    %13 = vrot.lane.b32.xlu0 %v12, 112
    %v14 = vpop.permute.xlu0 %13
    %vm15 = vcmask 982912
    %16 = vst.msk [vmem:[#allocation0] sm:$0x1] %vm15, %v14
    %s17 = scalar_lea.vmem %s0, 13
    %v18 = vld [vmem:[%s17] sm:$0x1]
    %19 = vrot.lane.b32.xlu0 %v18, 104
    %v20 = vpop.permute.xlu0 %19
    %vm21 = vcmask 917312
    %22 = vst.msk [vmem:[#allocation0] sm:$0x1] %vm21, %v20
    %s23 = scalar_lea.vmem %s0, 12
    %v24 = vld [vmem:[%s23] sm:$0x1]
    %25 = vrot.lane.b32.xlu0 %v24, 96
    %v26 = vpop.permute.xlu0 %25
    %vm27 = vcmask 851712
    %28 = vst.msk [vmem:[#allocation0] sm:$0x1] %vm27, %v26
    %s29 = scalar_lea.vmem %s0, 11
    %v30 = vld [vmem:[%s29] sm:$0x1]
    %31 = vrot.lane.b32.xlu0 %v30, 88
    %v32 = vpop.permute.xlu0 %31
    %vm33 = vcmask 786112
    %34 = vst.msk [vmem:[#allocation0] sm:$0x1] %vm33, %v32
    %s35 = scalar_lea.vmem %s0, 10
    %v36 = vld [vmem:[%s35] sm:$0x1]
    %37 = vrot.lane.b32.xlu0 %v36, 80
    %v38 = vpop.permute.xlu0 %37
    %vm39 = vcmask 720512
    %40 = vst.msk [vmem:[#allocation0] sm:$0x1] %vm39, %v38
    %s41 = scalar_lea.vmem %s0, 9
    %v42 = vld [vmem:[%s41] sm:$0x1]
    %43 = vrot.lane.b32.xlu0 %v42, 72
    %v44 = vpop.permute.xlu0 %43
    %vm45 = vcmask 654912
    %46 = vst.msk [vmem:[#allocation0] sm:$0x1] %vm45, %v44
    %s47 = scalar_lea.vmem %s0, 8
    %v48 = vld [vmem:[%s47] sm:$0x1]
    %49 = vrot.lane.b32.xlu0 %v48, 64
    %v50 = vpop.permute.xlu0 %49
    %vm51 = vcmask 589312
    %52 = vst.msk [vmem:[#allocation0] sm:$0x1] %vm51, %v50
    %s53 = scalar_lea.vmem %s0, 7
    %v54 = vld [vmem:[%s53] sm:$0x1]
    %55 = vrot.lane.b32.xlu0 %v54, 56
    %v56 = vpop.permute.xlu0 %55
    %vm57 = vcmask 523712
    %58 = vst.msk [vmem:[#allocation0] sm:$0x1] %vm57, %v56
    %s59 = scalar_lea.vmem %s0, 6
    %v60 = vld [vmem:[%s59] sm:$0x1]
    %61 = vrot.lane.b32.xlu0 %v60, 48
    %v62 = vpop.permute.xlu0 %61
    %vm63 = vcmask 458112
    %64 = vst.msk [vmem:[#allocation0] sm:$0x1] %vm63, %v62
    %s65 = scalar_lea.vmem %s0, 5
    %v66 = vld [vmem:[%s65] sm:$0x1]
    %67 = vrot.lane.b32.xlu0 %v66, 40
    %v68 = vpop.permute.xlu0 %67
    %vm69 = vcmask 392512
    %70 = vst.msk [vmem:[#allocation0] sm:$0x1] %vm69, %v68
    %s71 = scalar_lea.vmem %s0, 4
    %v72 = vld [vmem:[%s71] sm:$0x1]
    %73 = vrot.lane.b32.xlu0 %v72, 32
    %v74 = vpop.permute.xlu0 %73
    %vm75 = vcmask 326912
    %76 = vst.msk [vmem:[#allocation0] sm:$0x1] %vm75, %v74
    %s77 = scalar_lea.vmem %s0, 3
    %v78 = vld [vmem:[%s77] sm:$0x1]
    %79 = vrot.lane.b32.xlu0 %v78, 24
    %v80 = vpop.permute.xlu0 %79
    %vm81 = vcmask 261312
    %82 = vst.msk [vmem:[#allocation0] sm:$0x1] %vm81, %v80
    %s83 = scalar_lea.vmem %s0, 2
    %v84 = vld [vmem:[%s83] sm:$0x1]
    %85 = vrot.lane.b32.xlu0 %v84, 16
    %v86 = vpop.permute.xlu0 %85
    %vm87 = vcmask 195712
    %88 = vst.msk [vmem:[#allocation0] sm:$0x1] %vm87, %v86
    %s89 = scalar_lea.vmem %s0, 1
    %v90 = vld [vmem:[%s89] sm:$0x1]
    %91 = vrot.lane.b32.xlu0 %v90, 8
    %v92 = vpop.permute.xlu0 %91
    %vm93 = vcmask 130112
    %94 = vst.msk [vmem:[#allocation0] sm:$0x1] %vm93, %v92
    %s96 = sshllo.u32 0, 1
    %v98 = vld [vmem:[#allocation0] sm:%s96]
    %s99 = sshllo.u32 0, 1
    %100 = vst [vmem:[%s1] sm:%s99] %v98

// kernel: tile.153
$region0: #{tile.153}
  #allocation0 [shape = 's32[1]{0}', space=sflag, size = 0x4, scoped, tag = 'scoped memory for tile.153']
  %s0 = inlined_call_operand.vmem [shape: f32[4], index: 0, kind: input, shape index: {}]
  %s1 = inlined_call_operand.vmem [shape: f32[16,4], index: 1, kind: output, shape index: {}]
  // Predicated region
  $region2: #{tile.153} parent=0 // pred_check
    _
  $region3: #{tile.153} parent=0 // pred_check_branch
    %3 = sbr.rel (0) target = $region5
  $region4: #{tile.153} parent=0 // pred_region
    _
  $region5: #{tile.153} parent=0 // pred_fallthru
    _
  %v4 = vld [vmem:[%s0] ss:$0 sm:$0xff]
  %5 = vst [vmem:[%s1] sm:$0xff] %v4
  %s6 = scalar_lea.vmem %s1, 8
  %7 = vst [vmem:[%s6] sm:$0xff] %v4

// kernel: tile.154
$region0: #{tile.154}
  %s0 = inlined_call_operand.vmem [shape: f32[16,4], index: 0, kind: input, shape index: {}]
  %s1 = inlined_call_operand.vmem [shape: f32[1,64], index: 1, kind: output, shape index: {}]
  $region1: #{tile.154} parent=0
    #allocation0 [shape = 'u8[4096]{0}', space=vmem, size = 0x1000, scoped, tag = 'scoped mem for output reshape']
    %v2 = vld [vmem:[%s0] sm:$0x1]
    %vm3 = vcmask 31744
    %4 = vst.msk [vmem:[#allocation0] sm:$0x1] %vm3, %v2
    %s5 = scalar_lea.vmem %s0, 15
    %v6 = vld [vmem:[%s5] sm:$0x1]
    %7 = vrot.lane.b32.xlu0 %v6, 60
    %v8 = vpop.permute.xlu0 %7
    %vm9 = vcmask 523744
    %10 = vst.msk [vmem:[#allocation0] sm:$0x1] %vm9, %v8
    %s11 = scalar_lea.vmem %s0, 14
    %v12 = vld [vmem:[%s11] sm:$0x1]
    %13 = vrot.lane.b32.xlu0 %v12, 56
    %v14 = vpop.permute.xlu0 %13
    %vm15 = vcmask 490944
    %16 = vst.msk [vmem:[#allocation0] sm:$0x1] %vm15, %v14
    %s17 = scalar_lea.vmem %s0, 13
    %v18 = vld [vmem:[%s17] sm:$0x1]
    %19 = vrot.lane.b32.xlu0 %v18, 52
    %v20 = vpop.permute.xlu0 %19
    %vm21 = vcmask 458144
    %22 = vst.msk [vmem:[#allocation0] sm:$0x1] %vm21, %v20
    %s23 = scalar_lea.vmem %s0, 12
    %v24 = vld [vmem:[%s23] sm:$0x1]
    %25 = vrot.lane.b32.xlu0 %v24, 48
    %v26 = vpop.permute.xlu0 %25
    %vm27 = vcmask 425344
    %28 = vst.msk [vmem:[#allocation0] sm:$0x1] %vm27, %v26
    %s29 = scalar_lea.vmem %s0, 11
    %v30 = vld [vmem:[%s29] sm:$0x1]
    %31 = vrot.lane.b32.xlu0 %v30, 44
    %v32 = vpop.permute.xlu0 %31
    %vm33 = vcmask 392544
    %34 = vst.msk [vmem:[#allocation0] sm:$0x1] %vm33, %v32
    %s35 = scalar_lea.vmem %s0, 10
    %v36 = vld [vmem:[%s35] sm:$0x1]
    %37 = vrot.lane.b32.xlu0 %v36, 40
    %v38 = vpop.permute.xlu0 %37
    %vm39 = vcmask 359744
    %40 = vst.msk [vmem:[#allocation0] sm:$0x1] %vm39, %v38
    %s41 = scalar_lea.vmem %s0, 9
    %v42 = vld [vmem:[%s41] sm:$0x1]
    %43 = vrot.lane.b32.xlu0 %v42, 36
    %v44 = vpop.permute.xlu0 %43
    %vm45 = vcmask 326944
    %46 = vst.msk [vmem:[#allocation0] sm:$0x1] %vm45, %v44
    %s47 = scalar_lea.vmem %s0, 8
    %v48 = vld [vmem:[%s47] sm:$0x1]
    %49 = vrot.lane.b32.xlu0 %v48, 32
    %v50 = vpop.permute.xlu0 %49
    %vm51 = vcmask 294144
    %52 = vst.msk [vmem:[#allocation0] sm:$0x1] %vm51, %v50
    %s53 = scalar_lea.vmem %s0, 7
    %v54 = vld [vmem:[%s53] sm:$0x1]
    %55 = vrot.lane.b32.xlu0 %v54, 28
    %v56 = vpop.permute.xlu0 %55
    %vm57 = vcmask 261344
    %58 = vst.msk [vmem:[#allocation0] sm:$0x1] %vm57, %v56
    %s59 = scalar_lea.vmem %s0, 6
    %v60 = vld [vmem:[%s59] sm:$0x1]
    %61 = vrot.lane.b32.xlu0 %v60, 24
    %v62 = vpop.permute.xlu0 %61
    %vm63 = vcmask 228544
    %64 = vst.msk [vmem:[#allocation0] sm:$0x1] %vm63, %v62
    %s65 = scalar_lea.vmem %s0, 5
    %v66 = vld [vmem:[%s65] sm:$0x1]
    %67 = vrot.lane.b32.xlu0 %v66, 20
    %v68 = vpop.permute.xlu0 %67
    %vm69 = vcmask 195744
    %70 = vst.msk [vmem:[#allocation0] sm:$0x1] %vm69, %v68
    %s71 = scalar_lea.vmem %s0, 4
    %v72 = vld [vmem:[%s71] sm:$0x1]
    %73 = vrot.lane.b32.xlu0 %v72, 16
    %v74 = vpop.permute.xlu0 %73
    %vm75 = vcmask 162944
    %76 = vst.msk [vmem:[#allocation0] sm:$0x1] %vm75, %v74
    %s77 = scalar_lea.vmem %s0, 3
    %v78 = vld [vmem:[%s77] sm:$0x1]
    %79 = vrot.lane.b32.xlu0 %v78, 12
    %v80 = vpop.permute.xlu0 %79
    %vm81 = vcmask 130144
    %82 = vst.msk [vmem:[#allocation0] sm:$0x1] %vm81, %v80
    %s83 = scalar_lea.vmem %s0, 2
    %v84 = vld [vmem:[%s83] sm:$0x1]
    %85 = vrot.lane.b32.xlu0 %v84, 8
    %v86 = vpop.permute.xlu0 %85
    %vm87 = vcmask 97344
    %88 = vst.msk [vmem:[#allocation0] sm:$0x1] %vm87, %v86
    %s89 = scalar_lea.vmem %s0, 1
    %v90 = vld [vmem:[%s89] sm:$0x1]
    %91 = vrot.lane.b32.xlu0 %v90, 4
    %v92 = vpop.permute.xlu0 %91
    %vm93 = vcmask 64544
    %94 = vst.msk [vmem:[#allocation0] sm:$0x1] %vm93, %v92
    %s96 = sshllo.u32 0, 1
    %v98 = vld [vmem:[#allocation0] sm:%s96]
    %s99 = sshllo.u32 0, 1
    %100 = vst [vmem:[%s1] sm:%s99] %v98

// kernel: dense_block_forward.1
$region0: #{dense_block_forward.1}
  #allocation0 [shape = 'u32[]', space=smem, size = 0x4, offset = 0x4, fixed_abs, tag = 'smem constant byte address 0x4 - core index']
  #allocation1 [shape = 'u32[144,128]{1,0:T(1,128)}', space=vmem, size = 0x12000, scoped, tag = 'internal scratch']
  #allocation2 [shape = 'f32[20,64]{1,0:T(8,128)}', space=vmem, size = 0x3000, scoped, tag = 'scratch operand']
  #allocation3 [shape = 'f32[20,128]{1,0:T(8,128)}', space=vmem, size = 0x3000, scoped, tag = 'scratch operand']
  #allocation4 [shape = 'f32[20,128]{1,0:T(8,128)}', space=vmem, size = 0x3000, scoped, tag = 'scratch operand']
  #allocation5 [shape = 'f32[18,128]{1,0:T(8,128)}', space=vmem, size = 0x3000, scoped, tag = 'scratch operand']
  %s0 = inlined_call_operand.vmem [shape: f32[32,64], index: 0, kind: input, shape index: {}]
  %s1 = inlined_call_operand.vmem [shape: f32[4,64], index: 1, kind: input, shape index: {}]
  %s2 = inlined_call_operand.vmem [shape: f32[3,128], index: 2, kind: input, shape index: {}]
  %s3 = inlined_call_operand.vmem [shape: f32[3,64,128], index: 3, kind: input, shape index: {}]
  %s4 = inlined_call_operand.vmem [shape: f32[64,128], index: 4, kind: input, shape index: {}]
  %s5 = inlined_call_operand.vmem [shape: f32[3,128,128], index: 5, kind: input, shape index: {}]
  %s6 = inlined_call_operand.vmem [shape: f32[4,128], index: 6, kind: input, shape index: {}]
  %s7 = inlined_call_operand.vmem [shape: f32[3,128], index: 7, kind: input, shape index: {}]
  %s8 = inlined_call_operand.vmem [shape: f32[3,128,128], index: 8, kind: input, shape index: {}]
  %s9 = inlined_call_operand.vmem [shape: f32[128,128], index: 9, kind: input, shape index: {}]
  %s10 = inlined_call_operand.vmem [shape: f32[3,128,128], index: 10, kind: input, shape index: {}]
  %s11 = inlined_call_operand.vmem [shape: f32[4,128], index: 11, kind: input, shape index: {}]
  %s12 = inlined_call_operand.vmem [shape: f32[3,128], index: 12, kind: input, shape index: {}]
  %s13 = inlined_call_operand.vmem [shape: f32[3,128,128], index: 13, kind: input, shape index: {}]
  %s14 = inlined_call_operand.vmem [shape: f32[128,128], index: 14, kind: input, shape index: {}]
  %s15 = inlined_call_operand.vmem [shape: f32[3,128,128], index: 15, kind: input, shape index: {}]
  %s16 = inlined_call_operand.vmem [shape: f32[2,64], index: 16, kind: input, shape index: {}]
  %s17 = inlined_call_operand.vmem [shape: f32[6,128], index: 17, kind: input, shape index: {}]
  %s18 = inlined_call_operand.vmem [shape: f32[64,128], index: 18, kind: input, shape index: {}]
  %s19 = inlined_call_operand.vmem [shape: f32[3,128,128], index: 19, kind: input, shape index: {}]
  %s20 = inlined_call_operand.vmem [shape: f32[64,128], index: 20, kind: input, shape index: {}]
  %s21 = inlined_call_operand.vmem [shape: f32[1,128], index: 21, kind: input, shape index: {}]
  %s22 = inlined_call_operand.vmem [shape: f32[32,128], index: 22, kind: output, shape index: {}]
  %s23 = sld [smem:[#allocation0]]
  $region121: #{dense_block_forward.1} parent=0
    _
  %s25 = ssub.s32 1, %s23
  %s26 = scalar_select 0, %s25, %s23
  loop: start=0, step=1, limit=4
  $region2: #{dense_block_forward.1} parent=0 // loop_pre_header
    _
  $region3: #{dense_block_forward.1} parent=0 // loop_header
    %s28 = sphi 0, %s32
    %p29 = scmp.ge.s32.totalorder %s28, 4
    %s38 = sphi 0, %s40
    %s41 = sphi 0, %s38
    %s42 = sphi 0, %s41
    %s58 = sphi 0, %s42
    %s62 = sphi 0, %s62
    %s64 = sphi 0, %s62
    %s65 = sphi 0, %s64
    %s79 = sphi 0, %s65
    %s83 = sphi 0, %s83
    %s85 = sphi 0, %s83
    %s86 = sphi 0, %s85
    %s100 = sphi 0, %s86
    %s104 = sphi 0, %s104
    %s106 = sphi 0, %s104
    %s107 = sphi 0, %s106
    %s121 = sphi 0, %s107
    %s125 = sphi 0, %s125
    %s127 = sphi 0, %s125
    %s128 = sphi 0, %s127
    %s142 = sphi 0, %s128
    %s146 = sphi 0, %s146
    %s148 = sphi 0, %s146
    %s149 = sphi 0, %s148
    %s163 = sphi 0, %s149
    %s167 = sphi 0, %s167
    %s169 = sphi 0, %s167
    %s170 = sphi 0, %s169
    %s184 = sphi 0, %s170
    %s188 = sphi 0, %s188
    %s190 = sphi 0, %s188
    %s191 = sphi 0, %s190
    %s205 = sphi 0, %s191
    %s209 = sphi 0, %s209
    %s211 = sphi 0, %s209
    %s212 = sphi 0, %s211
    %s226 = sphi 0, %s212
    %s230 = sphi 0, %s230
    %s232 = sphi 0, %s230
    %s233 = sphi 0, %s232
    %s247 = sphi 0, %s233
    %s251 = sphi 0, %s251
    %s253 = sphi 0, %s251
    %s254 = sphi 0, %s253
    %s268 = sphi 0, %s254
    %s272 = sphi 0, %s272
    %s274 = sphi 0, %s272
    %s275 = sphi 0, %s274
    %s289 = sphi 0, %s275
    %s293 = sphi 0, %s293
    %s295 = sphi 0, %s293
    %s296 = sphi 0, %s295
    %s310 = sphi 0, %s296
    %s314 = sphi 0, %s314
    %s316 = sphi 0, %s314
    %s317 = sphi 0, %s316
    %s331 = sphi 0, %s317
    %s335 = sphi 0, %s335
    %s337 = sphi 0, %s335
    %s338 = sphi 0, %s337
    %s352 = sphi 0, %s338
    %s356 = sphi 0, %s356
    %s358 = sphi 0, %s356
    %s359 = sphi 0, %s358
    %s373 = sphi 0, %s359
    %s377 = sphi 0, %s377
    %s379 = sphi 0, %s377
    %s380 = sphi 0, %s379
    %s394 = sphi 0, %s380
    %s398 = sphi 0, %s398
    %s400 = sphi 0, %s398
    %s401 = sphi 0, %s400
    %s415 = sphi 0, %s401
    %s419 = sphi 0, %s419
    %s421 = sphi 0, %s419
    %s422 = sphi 0, %s421
    %s436 = sphi 0, %s422
    %s440 = sphi 0, %s440
    %s442 = sphi 0, %s440
    %s443 = sphi 0, %s442
    %s457 = sphi 0, %s443
    %s461 = sphi 0, %s461
    %s463 = sphi 0, %s461
    %s464 = sphi 0, %s463
    %s478 = sphi 0, %s464
    %s482 = sphi 0, %s482
    %s484 = sphi 0, %s482
    %s485 = sphi 0, %s484
    %s499 = sphi 0, %s485
    %s505 = sphi 0, %s507
    %s508 = sphi 0, %s505
    %s509 = sphi 0, %s508
    %s525 = sphi 0, %s509
  $region4: #{dense_block_forward.1} parent=0 // loop_header_branch
    %31 = sbr.rel (%p29) target = $region8
  $region5: #{dense_block_forward.1} parent=0 // loop_body
    %s33 = ssub.s32 %s28, 1
    %s34 = ssub.s32 %s28, 2
    %s35 = sadd.s32 %s28, 1
    %s36 = ssub.s32 %s28, %s35
    %p37 = scmp.eq.s32.totalorder %s36, 0
    %s39 = sadd.s32 %s38, 1
    %s40 = scalar_select %p37, %s38, %s39
    %p43 = pneg %p37
    %p44 = scmp.eq.s32.totalorder %s28, 1
    %p45 = por %p43, %p44
    %p46 = scmp.ne.s32.totalorder %s38, %s41
    %p47 = scmp.eq.s32.totalorder %s28, 0
    %p48 = por %p46, %p47
    %p49 = scmp.ne.s32.totalorder %s38, %s41
    %p50 = scmp.eq.s32.totalorder %s33, 1
    %p51 = por %p49, %p50
    %p52 = scmp.ne.s32.totalorder %s41, %s42
    %p53 = scmp.eq.s32.totalorder %s33, 0
    %p54 = por %p52, %p53
    %p55 = scmp.ne.s32.totalorder %s41, %s42
    %p56 = scmp.eq.s32.totalorder %s34, 1
    %p57 = por %p55, %p56
    %p59 = scmp.ne.s32.totalorder %s42, %s58
    %p60 = scmp.eq.s32.totalorder %s34, 0
    %p61 = por %p59, %p60
    %s63 = sadd.s32 %s62, 1
    %p66 = scmp.eq.s32.totalorder %s28, 1
    %p67 = scmp.ne.s32.totalorder %s62, %s64
    %p68 = scmp.eq.s32.totalorder %s28, 0
    %p69 = por %p67, %p68
    %p70 = scmp.ne.s32.totalorder %s62, %s64
    %p71 = scmp.eq.s32.totalorder %s33, 1
    %p72 = por %p70, %p71
    %p73 = scmp.ne.s32.totalorder %s64, %s65
    %p74 = scmp.eq.s32.totalorder %s33, 0
    %p75 = por %p73, %p74
    %p76 = scmp.ne.s32.totalorder %s64, %s65
    %p77 = scmp.eq.s32.totalorder %s34, 1
    %p78 = por %p76, %p77
    %p80 = scmp.ne.s32.totalorder %s65, %s79
    %p81 = scmp.eq.s32.totalorder %s34, 0
    %p82 = por %p80, %p81
    %s84 = sadd.s32 %s83, 1
    %p87 = scmp.eq.s32.totalorder %s28, 1
    %p88 = scmp.ne.s32.totalorder %s83, %s85
    %p89 = scmp.eq.s32.totalorder %s28, 0
    %p90 = por %p88, %p89
    %p91 = scmp.ne.s32.totalorder %s83, %s85
    %p92 = scmp.eq.s32.totalorder %s33, 1
    %p93 = por %p91, %p92
    %p94 = scmp.ne.s32.totalorder %s85, %s86
    %p95 = scmp.eq.s32.totalorder %s33, 0
    %p96 = por %p94, %p95
    %p97 = scmp.ne.s32.totalorder %s85, %s86
    %p98 = scmp.eq.s32.totalorder %s34, 1
    %p99 = por %p97, %p98
    %p101 = scmp.ne.s32.totalorder %s86, %s100
    %p102 = scmp.eq.s32.totalorder %s34, 0
    %p103 = por %p101, %p102
    %s105 = sadd.s32 %s104, 1
    %p108 = scmp.eq.s32.totalorder %s28, 1
    %p109 = scmp.ne.s32.totalorder %s104, %s106
    %p110 = scmp.eq.s32.totalorder %s28, 0
    %p111 = por %p109, %p110
    %p112 = scmp.ne.s32.totalorder %s104, %s106
    %p113 = scmp.eq.s32.totalorder %s33, 1
    %p114 = por %p112, %p113
    %p115 = scmp.ne.s32.totalorder %s106, %s107
    %p116 = scmp.eq.s32.totalorder %s33, 0
    %p117 = por %p115, %p116
    %p118 = scmp.ne.s32.totalorder %s106, %s107
    %p119 = scmp.eq.s32.totalorder %s34, 1
    %p120 = por %p118, %p119
    %p122 = scmp.ne.s32.totalorder %s107, %s121
    %p123 = scmp.eq.s32.totalorder %s34, 0
    %p124 = por %p122, %p123
    %s126 = sadd.s32 %s125, 1
    %p129 = scmp.eq.s32.totalorder %s28, 1
    %p130 = scmp.ne.s32.totalorder %s125, %s127
    %p131 = scmp.eq.s32.totalorder %s28, 0
    %p132 = por %p130, %p131
    %p133 = scmp.ne.s32.totalorder %s125, %s127
    %p134 = scmp.eq.s32.totalorder %s33, 1
    %p135 = por %p133, %p134
    %p136 = scmp.ne.s32.totalorder %s127, %s128
    %p137 = scmp.eq.s32.totalorder %s33, 0
    %p138 = por %p136, %p137
    %p139 = scmp.ne.s32.totalorder %s127, %s128
    %p140 = scmp.eq.s32.totalorder %s34, 1
    %p141 = por %p139, %p140
    %p143 = scmp.ne.s32.totalorder %s128, %s142
    %p144 = scmp.eq.s32.totalorder %s34, 0
    %p145 = por %p143, %p144
    %s147 = sadd.s32 %s146, 1
    %p150 = scmp.eq.s32.totalorder %s28, 1
    %p151 = scmp.ne.s32.totalorder %s146, %s148
    %p152 = scmp.eq.s32.totalorder %s28, 0
    %p153 = por %p151, %p152
    %p154 = scmp.ne.s32.totalorder %s146, %s148
    %p155 = scmp.eq.s32.totalorder %s33, 1
    %p156 = por %p154, %p155
    %p157 = scmp.ne.s32.totalorder %s148, %s149
    %p158 = scmp.eq.s32.totalorder %s33, 0
    %p159 = por %p157, %p158
    %p160 = scmp.ne.s32.totalorder %s148, %s149
    %p161 = scmp.eq.s32.totalorder %s34, 1
    %p162 = por %p160, %p161
    %p164 = scmp.ne.s32.totalorder %s149, %s163
    %p165 = scmp.eq.s32.totalorder %s34, 0
    %p166 = por %p164, %p165
    %s168 = sadd.s32 %s167, 1
    %p171 = scmp.eq.s32.totalorder %s28, 1
    %p172 = scmp.ne.s32.totalorder %s167, %s169
    %p173 = scmp.eq.s32.totalorder %s28, 0
    %p174 = por %p172, %p173
    %p175 = scmp.ne.s32.totalorder %s167, %s169
    %p176 = scmp.eq.s32.totalorder %s33, 1
    %p177 = por %p175, %p176
    %p178 = scmp.ne.s32.totalorder %s169, %s170
    %p179 = scmp.eq.s32.totalorder %s33, 0
    %p180 = por %p178, %p179
    %p181 = scmp.ne.s32.totalorder %s169, %s170
    %p182 = scmp.eq.s32.totalorder %s34, 1
    %p183 = por %p181, %p182
    %p185 = scmp.ne.s32.totalorder %s170, %s184
    %p186 = scmp.eq.s32.totalorder %s34, 0
    %p187 = por %p185, %p186
    %s189 = sadd.s32 %s188, 1
    %p192 = scmp.eq.s32.totalorder %s28, 1
    %p193 = scmp.ne.s32.totalorder %s188, %s190
    %p194 = scmp.eq.s32.totalorder %s28, 0
    %p195 = por %p193, %p194
    %p196 = scmp.ne.s32.totalorder %s188, %s190
    %p197 = scmp.eq.s32.totalorder %s33, 1
    %p198 = por %p196, %p197
    %p199 = scmp.ne.s32.totalorder %s190, %s191
    %p200 = scmp.eq.s32.totalorder %s33, 0
    %p201 = por %p199, %p200
    %p202 = scmp.ne.s32.totalorder %s190, %s191
    %p203 = scmp.eq.s32.totalorder %s34, 1
    %p204 = por %p202, %p203
    %p206 = scmp.ne.s32.totalorder %s191, %s205
    %p207 = scmp.eq.s32.totalorder %s34, 0
    %p208 = por %p206, %p207
    %s210 = sadd.s32 %s209, 1
    %p213 = scmp.eq.s32.totalorder %s28, 1
    %p214 = scmp.ne.s32.totalorder %s209, %s211
    %p215 = scmp.eq.s32.totalorder %s28, 0
    %p216 = por %p214, %p215
    %p217 = scmp.ne.s32.totalorder %s209, %s211
    %p218 = scmp.eq.s32.totalorder %s33, 1
    %p219 = por %p217, %p218
    %p220 = scmp.ne.s32.totalorder %s211, %s212
    %p221 = scmp.eq.s32.totalorder %s33, 0
    %p222 = por %p220, %p221
    %p223 = scmp.ne.s32.totalorder %s211, %s212
    %p224 = scmp.eq.s32.totalorder %s34, 1
    %p225 = por %p223, %p224
    %p227 = scmp.ne.s32.totalorder %s212, %s226
    %p228 = scmp.eq.s32.totalorder %s34, 0
    %p229 = por %p227, %p228
    %s231 = sadd.s32 %s230, 1
    %p234 = scmp.eq.s32.totalorder %s28, 1
    %p235 = scmp.ne.s32.totalorder %s230, %s232
    %p236 = scmp.eq.s32.totalorder %s28, 0
    %p237 = por %p235, %p236
    %p238 = scmp.ne.s32.totalorder %s230, %s232
    %p239 = scmp.eq.s32.totalorder %s33, 1
    %p240 = por %p238, %p239
    %p241 = scmp.ne.s32.totalorder %s232, %s233
    %p242 = scmp.eq.s32.totalorder %s33, 0
    %p243 = por %p241, %p242
    %p244 = scmp.ne.s32.totalorder %s232, %s233
    %p245 = scmp.eq.s32.totalorder %s34, 1
    %p246 = por %p244, %p245
    %p248 = scmp.ne.s32.totalorder %s233, %s247
    %p249 = scmp.eq.s32.totalorder %s34, 0
    %p250 = por %p248, %p249
    %s252 = sadd.s32 %s251, 1
    %p255 = scmp.eq.s32.totalorder %s28, 1
    %p256 = scmp.ne.s32.totalorder %s251, %s253
    %p257 = scmp.eq.s32.totalorder %s28, 0
    %p258 = por %p256, %p257
    %p259 = scmp.ne.s32.totalorder %s251, %s253
    %p260 = scmp.eq.s32.totalorder %s33, 1
    %p261 = por %p259, %p260
    %p262 = scmp.ne.s32.totalorder %s253, %s254
    %p263 = scmp.eq.s32.totalorder %s33, 0
    %p264 = por %p262, %p263
    %p265 = scmp.ne.s32.totalorder %s253, %s254
    %p266 = scmp.eq.s32.totalorder %s34, 1
    %p267 = por %p265, %p266
    %p269 = scmp.ne.s32.totalorder %s254, %s268
    %p270 = scmp.eq.s32.totalorder %s34, 0
    %p271 = por %p269, %p270
    %s273 = sadd.s32 %s272, 1
    %p276 = scmp.eq.s32.totalorder %s28, 1
    %p277 = scmp.ne.s32.totalorder %s272, %s274
    %p278 = scmp.eq.s32.totalorder %s28, 0
    %p279 = por %p277, %p278
    %p280 = scmp.ne.s32.totalorder %s272, %s274
    %p281 = scmp.eq.s32.totalorder %s33, 1
    %p282 = por %p280, %p281
    %p283 = scmp.ne.s32.totalorder %s274, %s275
    %p284 = scmp.eq.s32.totalorder %s33, 0
    %p285 = por %p283, %p284
    %p286 = scmp.ne.s32.totalorder %s274, %s275
    %p287 = scmp.eq.s32.totalorder %s34, 1
    %p288 = por %p286, %p287
    %p290 = scmp.ne.s32.totalorder %s275, %s289
    %p291 = scmp.eq.s32.totalorder %s34, 0
    %p292 = por %p290, %p291
    %s294 = sadd.s32 %s293, 1
    %p297 = scmp.eq.s32.totalorder %s28, 1
    %p298 = scmp.ne.s32.totalorder %s293, %s295
    %p299 = scmp.eq.s32.totalorder %s28, 0
    %p300 = por %p298, %p299
    %p301 = scmp.ne.s32.totalorder %s293, %s295
    %p302 = scmp.eq.s32.totalorder %s33, 1
    %p303 = por %p301, %p302
    %p304 = scmp.ne.s32.totalorder %s295, %s296
    %p305 = scmp.eq.s32.totalorder %s33, 0
    %p306 = por %p304, %p305
    %p307 = scmp.ne.s32.totalorder %s295, %s296
    %p308 = scmp.eq.s32.totalorder %s34, 1
    %p309 = por %p307, %p308
    %p311 = scmp.ne.s32.totalorder %s296, %s310
    %p312 = scmp.eq.s32.totalorder %s34, 0
    %p313 = por %p311, %p312
    %s315 = sadd.s32 %s314, 1
    %p318 = scmp.eq.s32.totalorder %s28, 1
    %p319 = scmp.ne.s32.totalorder %s314, %s316
    %p320 = scmp.eq.s32.totalorder %s28, 0
    %p321 = por %p319, %p320
    %p322 = scmp.ne.s32.totalorder %s314, %s316
    %p323 = scmp.eq.s32.totalorder %s33, 1
    %p324 = por %p322, %p323
    %p325 = scmp.ne.s32.totalorder %s316, %s317
    %p326 = scmp.eq.s32.totalorder %s33, 0
    %p327 = por %p325, %p326
    %p328 = scmp.ne.s32.totalorder %s316, %s317
    %p329 = scmp.eq.s32.totalorder %s34, 1
    %p330 = por %p328, %p329
    %p332 = scmp.ne.s32.totalorder %s317, %s331
    %p333 = scmp.eq.s32.totalorder %s34, 0
    %p334 = por %p332, %p333
    %s336 = sadd.s32 %s335, 1
    %p339 = scmp.eq.s32.totalorder %s28, 1
    %p340 = scmp.ne.s32.totalorder %s335, %s337
    %p341 = scmp.eq.s32.totalorder %s28, 0
    %p342 = por %p340, %p341
    %p343 = scmp.ne.s32.totalorder %s335, %s337
    %p344 = scmp.eq.s32.totalorder %s33, 1
    %p345 = por %p343, %p344
    %p346 = scmp.ne.s32.totalorder %s337, %s338
    %p347 = scmp.eq.s32.totalorder %s33, 0
    %p348 = por %p346, %p347
    %p349 = scmp.ne.s32.totalorder %s337, %s338
    %p350 = scmp.eq.s32.totalorder %s34, 1
    %p351 = por %p349, %p350
    %p353 = scmp.ne.s32.totalorder %s338, %s352
    %p354 = scmp.eq.s32.totalorder %s34, 0
    %p355 = por %p353, %p354
    %s357 = sadd.s32 %s356, 1
    %p360 = scmp.eq.s32.totalorder %s28, 1
    %p361 = scmp.ne.s32.totalorder %s356, %s358
    %p362 = scmp.eq.s32.totalorder %s28, 0
    %p363 = por %p361, %p362
    %p364 = scmp.ne.s32.totalorder %s356, %s358
    %p365 = scmp.eq.s32.totalorder %s33, 1
    %p366 = por %p364, %p365
    %p367 = scmp.ne.s32.totalorder %s358, %s359
    %p368 = scmp.eq.s32.totalorder %s33, 0
    %p369 = por %p367, %p368
    %p370 = scmp.ne.s32.totalorder %s358, %s359
    %p371 = scmp.eq.s32.totalorder %s34, 1
    %p372 = por %p370, %p371
    %p374 = scmp.ne.s32.totalorder %s359, %s373
    %p375 = scmp.eq.s32.totalorder %s34, 0
    %p376 = por %p374, %p375
    %s378 = sadd.s32 %s377, 1
    %p381 = scmp.eq.s32.totalorder %s28, 1
    %p382 = scmp.ne.s32.totalorder %s377, %s379
    %p383 = scmp.eq.s32.totalorder %s28, 0
    %p384 = por %p382, %p383
    %p385 = scmp.ne.s32.totalorder %s377, %s379
    %p386 = scmp.eq.s32.totalorder %s33, 1
    %p387 = por %p385, %p386
    %p388 = scmp.ne.s32.totalorder %s379, %s380
    %p389 = scmp.eq.s32.totalorder %s33, 0
    %p390 = por %p388, %p389
    %p391 = scmp.ne.s32.totalorder %s379, %s380
    %p392 = scmp.eq.s32.totalorder %s34, 1
    %p393 = por %p391, %p392
    %p395 = scmp.ne.s32.totalorder %s380, %s394
    %p396 = scmp.eq.s32.totalorder %s34, 0
    %p397 = por %p395, %p396
    %s399 = sadd.s32 %s398, 1
    %p402 = scmp.eq.s32.totalorder %s28, 1
    %p403 = scmp.ne.s32.totalorder %s398, %s400
    %p404 = scmp.eq.s32.totalorder %s28, 0
    %p405 = por %p403, %p404
    %p406 = scmp.ne.s32.totalorder %s398, %s400
    %p407 = scmp.eq.s32.totalorder %s33, 1
    %p408 = por %p406, %p407
    %p409 = scmp.ne.s32.totalorder %s400, %s401
    %p410 = scmp.eq.s32.totalorder %s33, 0
    %p411 = por %p409, %p410
    %p412 = scmp.ne.s32.totalorder %s400, %s401
    %p413 = scmp.eq.s32.totalorder %s34, 1
    %p414 = por %p412, %p413
    %p416 = scmp.ne.s32.totalorder %s401, %s415
    %p417 = scmp.eq.s32.totalorder %s34, 0
    %p418 = por %p416, %p417
    %s420 = sadd.s32 %s419, 1
    %p423 = scmp.eq.s32.totalorder %s28, 1
    %p424 = scmp.ne.s32.totalorder %s419, %s421
    %p425 = scmp.eq.s32.totalorder %s28, 0
    %p426 = por %p424, %p425
    %p427 = scmp.ne.s32.totalorder %s419, %s421
    %p428 = scmp.eq.s32.totalorder %s33, 1
    %p429 = por %p427, %p428
    %p430 = scmp.ne.s32.totalorder %s421, %s422
    %p431 = scmp.eq.s32.totalorder %s33, 0
    %p432 = por %p430, %p431
    %p433 = scmp.ne.s32.totalorder %s421, %s422
    %p434 = scmp.eq.s32.totalorder %s34, 1
    %p435 = por %p433, %p434
    %p437 = scmp.ne.s32.totalorder %s422, %s436
    %p438 = scmp.eq.s32.totalorder %s34, 0
    %p439 = por %p437, %p438
    %s441 = sadd.s32 %s440, 1
    %p444 = scmp.eq.s32.totalorder %s28, 1
    %p445 = scmp.ne.s32.totalorder %s440, %s442
    %p446 = scmp.eq.s32.totalorder %s28, 0
    %p447 = por %p445, %p446
    %p448 = scmp.ne.s32.totalorder %s440, %s442
    %p449 = scmp.eq.s32.totalorder %s33, 1
    %p450 = por %p448, %p449
    %p451 = scmp.ne.s32.totalorder %s442, %s443
    %p452 = scmp.eq.s32.totalorder %s33, 0
    %p453 = por %p451, %p452
    %p454 = scmp.ne.s32.totalorder %s442, %s443
    %p455 = scmp.eq.s32.totalorder %s34, 1
    %p456 = por %p454, %p455
    %p458 = scmp.ne.s32.totalorder %s443, %s457
    %p459 = scmp.eq.s32.totalorder %s34, 0
    %p460 = por %p458, %p459
    %s462 = sadd.s32 %s461, 1
    %p465 = scmp.eq.s32.totalorder %s28, 1
    %p466 = scmp.ne.s32.totalorder %s461, %s463
    %p467 = scmp.eq.s32.totalorder %s28, 0
    %p468 = por %p466, %p467
    %p469 = scmp.ne.s32.totalorder %s461, %s463
    %p470 = scmp.eq.s32.totalorder %s33, 1
    %p471 = por %p469, %p470
    %p472 = scmp.ne.s32.totalorder %s463, %s464
    %p473 = scmp.eq.s32.totalorder %s33, 0
    %p474 = por %p472, %p473
    %p475 = scmp.ne.s32.totalorder %s463, %s464
    %p476 = scmp.eq.s32.totalorder %s34, 1
    %p477 = por %p475, %p476
    %p479 = scmp.ne.s32.totalorder %s464, %s478
    %p480 = scmp.eq.s32.totalorder %s34, 0
    %p481 = por %p479, %p480
    %s483 = sadd.s32 %s482, 1
    %p486 = scmp.eq.s32.totalorder %s28, 1
    %p487 = scmp.ne.s32.totalorder %s482, %s484
    %p488 = scmp.eq.s32.totalorder %s28, 0
    %p489 = por %p487, %p488
    %p490 = scmp.ne.s32.totalorder %s482, %s484
    %p491 = scmp.eq.s32.totalorder %s33, 1
    %p492 = por %p490, %p491
    %p493 = scmp.ne.s32.totalorder %s484, %s485
    %p494 = scmp.eq.s32.totalorder %s33, 0
    %p495 = por %p493, %p494
    %p496 = scmp.ne.s32.totalorder %s484, %s485
    %p497 = scmp.eq.s32.totalorder %s34, 1
    %p498 = por %p496, %p497
    %p500 = scmp.ne.s32.totalorder %s485, %s499
    %p501 = scmp.eq.s32.totalorder %s34, 0
    %p502 = por %p500, %p501
    %s503 = ssub.s32 %s28, %s35
    %p504 = scmp.eq.s32.totalorder %s503, 0
    %s506 = sadd.s32 %s505, 1
    %s507 = scalar_select %p504, %s505, %s506
    %p510 = pneg %p504
    %p511 = scmp.eq.s32.totalorder %s28, 1
    %p512 = por %p510, %p511
    %p513 = scmp.ne.s32.totalorder %s505, %s508
    %p514 = scmp.eq.s32.totalorder %s28, 0
    %p515 = por %p513, %p514
    %p516 = scmp.ne.s32.totalorder %s505, %s508
    %p517 = scmp.eq.s32.totalorder %s33, 1
    %p518 = por %p516, %p517
    %p519 = scmp.ne.s32.totalorder %s508, %s509
    %p520 = scmp.eq.s32.totalorder %s33, 0
    %p521 = por %p519, %p520
    %p522 = scmp.ne.s32.totalorder %s508, %s509
    %p523 = scmp.eq.s32.totalorder %s34, 1
    %p524 = por %p522, %p523
    %p526 = scmp.ne.s32.totalorder %s509, %s525
    %p527 = scmp.eq.s32.totalorder %s34, 0
    %p528 = por %p526, %p527
    %p529 = scmp.le.s32.totalorder 1, %s28
    %p530 = scmp.lt.s32.totalorder %s28, 3
    %p531 = pnand %p529, %p530
    %p532 = pneg %p531
    // Predicated region
    $region9: #{dense_block_forward.1} parent=5 // pred_check
      _
    $region10: #{dense_block_forward.1} parent=5 // pred_check_branch
      %534 = sbr.rel (%p531) target = $region12
    $region11: #{dense_block_forward.1} parent=5 // pred_region
      %s535 = ssub.s32 %s28, 1
      // Predicated region
      $region13: #{dense_block_forward.1} parent=11 // pred_check
        %p536 = pneg %p75
      $region14: #{dense_block_forward.1} parent=11 // pred_check_branch
        %538 = sbr.rel (%p536) target = $region16
      $region15: #{dense_block_forward.1} parent=11 // pred_region
        _
      $region16: #{dense_block_forward.1} parent=11 // pred_fallthru
        _
      // Predicated region
      $region17: #{dense_block_forward.1} parent=11 // pred_check
        %p539 = pneg %p96
      $region18: #{dense_block_forward.1} parent=11 // pred_check_branch
        %541 = sbr.rel (%p539) target = $region20
      $region19: #{dense_block_forward.1} parent=11 // pred_region
        _
      $region20: #{dense_block_forward.1} parent=11 // pred_fallthru
        _
      // Predicated region
      $region21: #{dense_block_forward.1} parent=11 // pred_check
        %p542 = pneg %p117
      $region22: #{dense_block_forward.1} parent=11 // pred_check_branch
        %544 = sbr.rel (%p542) target = $region24
      $region23: #{dense_block_forward.1} parent=11 // pred_region
        _
      $region24: #{dense_block_forward.1} parent=11 // pred_fallthru
        _
      // Predicated region
      $region25: #{dense_block_forward.1} parent=11 // pred_check
        %p545 = pneg %p138
      $region26: #{dense_block_forward.1} parent=11 // pred_check_branch
        %547 = sbr.rel (%p545) target = $region28
      $region27: #{dense_block_forward.1} parent=11 // pred_region
        _
      $region28: #{dense_block_forward.1} parent=11 // pred_fallthru
        _
      // Predicated region
      $region29: #{dense_block_forward.1} parent=11 // pred_check
        %p548 = pneg %p159
      $region30: #{dense_block_forward.1} parent=11 // pred_check_branch
        %550 = sbr.rel (%p548) target = $region32
      $region31: #{dense_block_forward.1} parent=11 // pred_region
        _
      $region32: #{dense_block_forward.1} parent=11 // pred_fallthru
        _
      // Predicated region
      $region33: #{dense_block_forward.1} parent=11 // pred_check
        %p551 = pneg %p180
      $region34: #{dense_block_forward.1} parent=11 // pred_check_branch
        %553 = sbr.rel (%p551) target = $region36
      $region35: #{dense_block_forward.1} parent=11 // pred_region
        _
      $region36: #{dense_block_forward.1} parent=11 // pred_fallthru
        _
      // Predicated region
      $region37: #{dense_block_forward.1} parent=11 // pred_check
        %p554 = pneg %p201
      $region38: #{dense_block_forward.1} parent=11 // pred_check_branch
        %556 = sbr.rel (%p554) target = $region40
      $region39: #{dense_block_forward.1} parent=11 // pred_region
        _
      $region40: #{dense_block_forward.1} parent=11 // pred_fallthru
        _
      // Predicated region
      $region41: #{dense_block_forward.1} parent=11 // pred_check
        %p557 = pneg %p222
      $region42: #{dense_block_forward.1} parent=11 // pred_check_branch
        %559 = sbr.rel (%p557) target = $region44
      $region43: #{dense_block_forward.1} parent=11 // pred_region
        _
      $region44: #{dense_block_forward.1} parent=11 // pred_fallthru
        _
      // Predicated region
      $region45: #{dense_block_forward.1} parent=11 // pred_check
        %p560 = pneg %p243
      $region46: #{dense_block_forward.1} parent=11 // pred_check_branch
        %562 = sbr.rel (%p560) target = $region48
      $region47: #{dense_block_forward.1} parent=11 // pred_region
        _
      $region48: #{dense_block_forward.1} parent=11 // pred_fallthru
        _
      // Predicated region
      $region49: #{dense_block_forward.1} parent=11 // pred_check
        %p563 = pneg %p264
      $region50: #{dense_block_forward.1} parent=11 // pred_check_branch
        %565 = sbr.rel (%p563) target = $region52
      $region51: #{dense_block_forward.1} parent=11 // pred_region
        _
      $region52: #{dense_block_forward.1} parent=11 // pred_fallthru
        _
      // Predicated region
      $region53: #{dense_block_forward.1} parent=11 // pred_check
        %p566 = pneg %p285
      $region54: #{dense_block_forward.1} parent=11 // pred_check_branch
        %568 = sbr.rel (%p566) target = $region56
      $region55: #{dense_block_forward.1} parent=11 // pred_region
        _
      $region56: #{dense_block_forward.1} parent=11 // pred_fallthru
        _
      // Predicated region
      $region57: #{dense_block_forward.1} parent=11 // pred_check
        %p569 = pneg %p306
      $region58: #{dense_block_forward.1} parent=11 // pred_check_branch
        %571 = sbr.rel (%p569) target = $region60
      $region59: #{dense_block_forward.1} parent=11 // pred_region
        _
      $region60: #{dense_block_forward.1} parent=11 // pred_fallthru
        _
      // Predicated region
      $region61: #{dense_block_forward.1} parent=11 // pred_check
        %p572 = pneg %p327
      $region62: #{dense_block_forward.1} parent=11 // pred_check_branch
        %574 = sbr.rel (%p572) target = $region64
      $region63: #{dense_block_forward.1} parent=11 // pred_region
        _
      $region64: #{dense_block_forward.1} parent=11 // pred_fallthru
        _
      // Predicated region
      $region65: #{dense_block_forward.1} parent=11 // pred_check
        %p575 = pneg %p348
      $region66: #{dense_block_forward.1} parent=11 // pred_check_branch
        %577 = sbr.rel (%p575) target = $region68
      $region67: #{dense_block_forward.1} parent=11 // pred_region
        _
      $region68: #{dense_block_forward.1} parent=11 // pred_fallthru
        _
      // Predicated region
      $region69: #{dense_block_forward.1} parent=11 // pred_check
        %p578 = pneg %p369
      $region70: #{dense_block_forward.1} parent=11 // pred_check_branch
        %580 = sbr.rel (%p578) target = $region72
      $region71: #{dense_block_forward.1} parent=11 // pred_region
        _
      $region72: #{dense_block_forward.1} parent=11 // pred_fallthru
        _
      // Predicated region
      $region73: #{dense_block_forward.1} parent=11 // pred_check
        %p581 = pneg %p390
      $region74: #{dense_block_forward.1} parent=11 // pred_check_branch
        %583 = sbr.rel (%p581) target = $region76
      $region75: #{dense_block_forward.1} parent=11 // pred_region
        _
      $region76: #{dense_block_forward.1} parent=11 // pred_fallthru
        _
      // Predicated region
      $region77: #{dense_block_forward.1} parent=11 // pred_check
        %p584 = pneg %p411
      $region78: #{dense_block_forward.1} parent=11 // pred_check_branch
        %586 = sbr.rel (%p584) target = $region80
      $region79: #{dense_block_forward.1} parent=11 // pred_region
        _
      $region80: #{dense_block_forward.1} parent=11 // pred_fallthru
        _
      // Predicated region
      $region81: #{dense_block_forward.1} parent=11 // pred_check
        %p587 = pneg %p432
      $region82: #{dense_block_forward.1} parent=11 // pred_check_branch
        %589 = sbr.rel (%p587) target = $region84
      $region83: #{dense_block_forward.1} parent=11 // pred_region
        _
      $region84: #{dense_block_forward.1} parent=11 // pred_fallthru
        _
      // Predicated region
      $region85: #{dense_block_forward.1} parent=11 // pred_check
        %p590 = pneg %p453
      $region86: #{dense_block_forward.1} parent=11 // pred_check_branch
        %592 = sbr.rel (%p590) target = $region88
      $region87: #{dense_block_forward.1} parent=11 // pred_region
        _
      $region88: #{dense_block_forward.1} parent=11 // pred_fallthru
        _
      // Predicated region
      $region89: #{dense_block_forward.1} parent=11 // pred_check
        %p593 = pneg %p474
      $region90: #{dense_block_forward.1} parent=11 // pred_check_branch
        %595 = sbr.rel (%p593) target = $region92
      $region91: #{dense_block_forward.1} parent=11 // pred_region
        _
      $region92: #{dense_block_forward.1} parent=11 // pred_fallthru
        _
      // Predicated region
      $region93: #{dense_block_forward.1} parent=11 // pred_check
        %p596 = pneg %p495
      $region94: #{dense_block_forward.1} parent=11 // pred_check_branch
        %598 = sbr.rel (%p596) target = $region96
      $region95: #{dense_block_forward.1} parent=11 // pred_region
        _
      $region96: #{dense_block_forward.1} parent=11 // pred_fallthru
        _
    $region12: #{dense_block_forward.1} parent=5 // pred_fallthru
      _
    %p599 = scmp.lt.s32.totalorder %s28, 2
    // Predicated region
    $region97: #{dense_block_forward.1} parent=5 // pred_check
      %p600 = pneg %p599
    $region98: #{dense_block_forward.1} parent=5 // pred_check_branch
      %602 = sbr.rel (%p600) target = $region100
    $region99: #{dense_block_forward.1} parent=5 // pred_region
      // Predicated region
      $region101: #{dense_block_forward.1} parent=99 // pred_check
        %p603 = pneg %p48
      $region102: #{dense_block_forward.1} parent=99 // pred_check_branch
        %605 = sbr.rel (%p603) target = $region104
      $region103: #{dense_block_forward.1} parent=99 // pred_region
        %s606 = smul.u32 2, %s28
        %p607 = scmp.lt.s32.totalorder %s606, 3
        %s608 = scalar_select %p607, %s606, 3
        %s609 = smul.addr %s608, 8
        %s610 = scalar_lea.vmem %s0, %s609
        %s611 = smul.u32 2, %s28
      $region104: #{dense_block_forward.1} parent=99 // pred_fallthru
        _
    $region100: #{dense_block_forward.1} parent=5 // pred_fallthru
      _
    %p612 = scmp.le.s32.totalorder 1, %s28
    %p613 = scmp.lt.s32.totalorder %s28, 3
    %p614 = pnand %p612, %p613
    %p615 = pneg %p614
    // Predicated region
    $region105: #{dense_block_forward.1} parent=5 // pred_check
      _
    $region106: #{dense_block_forward.1} parent=5 // pred_check_branch
      %617 = sbr.rel (%p614) target = $region108
    $region107: #{dense_block_forward.1} parent=5 // pred_region
      %s618 = ssub.s32 %s28, 1
      %s619 = smul.u32 2, %s33
      %p620 = scmp.lt.s32.totalorder %s619, 3
      %s621 = scalar_select %p620, %s619, 3
      %s622 = smul.addr %s621, 8
      %s623 = scalar_lea.vmem %s0, %s622
      %p624 = pneg %p54
      %p625 = pneg %p51
      %p626 = pneg %p75
      %p627 = pneg %p72
      %p628 = pneg %p96
      %p629 = pneg %p93
      %p630 = pneg %p117
      %p631 = pneg %p114
      %p632 = pneg %p138
      %p633 = pneg %p135
      %p634 = pneg %p159
      %p635 = pneg %p156
      %p636 = pneg %p180
      %p637 = pneg %p177
      %p638 = pneg %p201
      %p639 = pneg %p198
      %p640 = pneg %p222
      %p641 = pneg %p219
      %p642 = pneg %p243
      %p643 = pneg %p240
      %p644 = pneg %p264
      %p645 = pneg %p261
      %p646 = pneg %p285
      %p647 = pneg %p282
      %p648 = pneg %p306
      %p649 = pneg %p303
      %p650 = pneg %p327
      %p651 = pneg %p324
      %p652 = pneg %p348
      %p653 = pneg %p345
      %p654 = pneg %p369
      %p655 = pneg %p366
      %p656 = pneg %p390
      %p657 = pneg %p387
      %p658 = pneg %p411
      %p659 = pneg %p408
      %p660 = pneg %p432
      %p661 = pneg %p429
      %p662 = pneg %p453
      %p663 = pneg %p450
      %p664 = pneg %p474
      %p665 = pneg %p471
      %p666 = pneg %p495
      %p667 = pneg %p492
      %p668 = pneg %p521
      %p669 = pneg %p518
      %s670 = smul.u32 2, %s33
      %p671 = scmp.lt.s32.totalorder %s670, 3
      %s672 = scalar_select %p671, %s670, 3
      %s673 = smul.addr %s672, 8
      %s674 = scalar_lea.vmem %s22, %s673
      %s675 = smul.u32 2, %s33
      %p676 = scmp.lt.s32.totalorder %s675, 3
      %s677 = scalar_select %p676, %s675, 3
      %s678 = smul.addr %s677, 8
      %s679 = scalar_lea.vmem %s0, %s678
      %s680 = smul.u32 2, %s33
      %s681 = smul.u32 2, %s33
      %p682 = scmp.lt.s32.totalorder %s681, 3
      %s683 = scalar_select %p682, %s681, 3
      %s684 = smul.addr %s683, 8
      %s685 = scalar_lea.vmem %s22, %s684
      %s686 = smul.u32 2, %s33
      %vm687 = vcmask 517120
      %688 = vst.msk [vmem:[#allocation2] sm:$0x3] %vm687, 0.0
      %689 = vst.msk [vmem:[#allocation2 + $0x12] sm:$0x3] %vm687, 0.0
      %690 = vst [vmem:[#allocation3] sm:$0x3] 0.0
      %691 = vst [vmem:[#allocation3 + $0x12] sm:$0x3] 0.0
      %692 = vst [vmem:[#allocation4] sm:$0x3] 0.0
      %693 = vst [vmem:[#allocation4 + $0x12] sm:$0x3] 0.0
      %694 = vst [vmem:[#allocation5] sm:$0x1] 0.0
      %695 = vst [vmem:[#allocation5 + $0x11] sm:$0x1] 0.0
      %v696 = vld [vmem:[%s679] sm:$0xff]
      %v697 = vld [vmem:[%s679 + $0x8] sm:$0xff]
      %v698 = vld [vmem:[%s1] sm:$0x1]
      %v699 = vlaneseq
      %v700 = vshrl.u32 %v699, 7
      %v701 = vsub.s32 0, %v700
      %v702 = vrot.slane %v698, %v701
      %v703 = vmul.f32 %v696, %v702
      %v704 = vmul.f32 %v697, %v702
      %v705 = vld [vmem:[%s1 + $0x1] sm:$0x1]
      %v706 = vlaneseq
      %v707 = vshrl.u32 %v706, 7
      %v708 = vsub.s32 0, %v707
      %v709 = vrot.slane %v705, %v708
      %v710 = vadd.f32 %v703, %v709
      %v711 = vadd.f32 %v704, %v709
      %v712 = vmax.f32 %v710, 0.0
      %v713 = vmax.f32 %v711, 0.0
      %vm714 = vcmask 523264
      %715 = vst.msk [vmem:[#allocation2 + $0x2] sm:$0xff] %vm714, %v712
      %716 = vst.msk [vmem:[#allocation2 + $0xa] sm:$0xff] %vm714, %v713
      %v717 = vld [vmem:[%s1 + $0x2] sm:$0x1]
      %v718 = vlaneseq
      %v719 = vshrl.u32 %v718, 7
      %v720 = vsub.s32 0, %v719
      %v721 = vrot.slane %v717, %v720
      %v722 = vmul.f32 %v696, %v721
      %v723 = vmul.f32 %v697, %v721
      %v724 = vld [vmem:[%s1 + $0x3] sm:$0x1]
      %v725 = vlaneseq
      %v726 = vshrl.u32 %v725, 7
      %v727 = vsub.s32 0, %v726
      %v728 = vrot.slane %v724, %v727
      %v729 = vadd.f32 %v722, %v728
      %v730 = vadd.f32 %v723, %v728
      %v731 = vmax.f32 %v729, 0.0
      %v732 = vmax.f32 %v730, 0.0
      %v733 = vld [vmem:[%s4] sm:$0xff]
      %v734 = vld [vmem:[%s4 + $0x8] sm:$0xff]
      %v735 = vld [vmem:[%s4 + $0x10] sm:$0xff]
      %v736 = vld [vmem:[%s4 + $0x18] sm:$0xff]
      %v737 = vld [vmem:[%s4 + $0x20] sm:$0xff]
      %v738 = vld [vmem:[%s4 + $0x28] sm:$0xff]
      %v739 = vld [vmem:[%s4 + $0x30] sm:$0xff]
      %v740 = vld [vmem:[%s4 + $0x38] sm:$0xff]
      %v741 = vld [vmem:[#allocation2] sm:$0xff]
      %v742 = vld [vmem:[#allocation2 + $0x8] sm:$0xff]
      %v743 = vld [vmem:[%s3] sm:$0xff]
      %v744 = vld [vmem:[%s3 + $0x8] sm:$0xff]
      %v745 = vld [vmem:[%s3 + $0x10] sm:$0xff]
      %v746 = vld [vmem:[%s3 + $0x18] sm:$0xff]
      %v747 = vld [vmem:[%s3 + $0x20] sm:$0xff]
      %v748 = vld [vmem:[%s3 + $0x28] sm:$0xff]
      %v749 = vld [vmem:[%s3 + $0x30] sm:$0xff]
      %v750 = vld [vmem:[%s3 + $0x38] sm:$0xff]
      %v752 = vsel %vm714, %v741, 0
      %v755 = vsel %vm714, %v742, 0
      %757 = vmatprep.subr.mxu0 0.0
      %758 = vmatpush1.msra.mxu0 %v743
      %759 = vmatprep.subr.mxu0 0.0
      %760 = vmatpush1.msra.mxu0 %v744
      %761 = vmatprep.subr.mxu0 0.0
      %762 = vmatpush1.msra.mxu0 %v745
      %763 = vmatprep.subr.mxu0 0.0
      %764 = vmatpush1.msra.mxu0 %v746
      %765 = vmatprep.subr.mxu0 0.0
      %766 = vmatpush1.msra.mxu0 %v747
      %767 = vmatprep.subr.mxu0 0.0
      %768 = vmatpush1.msra.mxu0 %v748
      %769 = vmatprep.subr.mxu0 0.0
      %770 = vmatpush1.msra.mxu0 %v749
      %771 = vmatprep.subr.mxu0 0.0
      %772 = vmatpush1.msra.mxu0 %v750
      %773 = vmatprep.subr.mxu0 0.0
      %774 = vmatpush1.msra.mxu0 0.0
      %775 = vmatprep.subr.mxu0 0.0
      %776 = vmatpush1.msra.mxu0 0.0
      %777 = vmatprep.subr.mxu0 0.0
      %778 = vmatpush1.msra.mxu0 0.0
      %779 = vmatprep.subr.mxu0 0.0
      %780 = vmatpush1.msra.mxu0 0.0
      %781 = vmatprep.subr.mxu0 0.0
      %782 = vmatpush1.msra.mxu0 0.0
      %783 = vmatprep.subr.mxu0 0.0
      %784 = vmatpush1.msra.mxu0 0.0
      %785 = vmatprep.subr.mxu0 0.0
      %786 = vmatpush1.msra.mxu0 0.0
      %787 = vmatprep.subr.mxu0 0.0
      %788 = vmatpush1.msra.mxu0 0.0
      %789 = vmatprep.subr.mxu0 0.0
      %790 = vmatpush1.msra.mxu0 0.0
      %791 = vmatprep.subr.mxu0 0.0
      %792 = vmatpush1.msra.mxu0 0.0
      %793 = vmatprep.subr.mxu0 0.0
      %794 = vmatpush1.msra.mxu0 0.0
      %795 = vmatprep.subr.mxu0 0.0
      %796 = vmatpush1.msra.mxu0 0.0
      %797 = vmatprep.subr.mxu0 0.0
      %798 = vmatpush1.msra.mxu0 0.0
      %799 = vmatprep.subr.mxu0 0.0
      %800 = vmatpush1.msra.mxu0 0.0
      %801 = vmatprep.subr.mxu0 0.0
      %802 = vmatpush1.msra.mxu0 0.0
      %803 = vmatprep.subr.mxu0 0.0
      %804 = vmatpush1.msra.mxu0 0.0
      %805 = vmatprep.subr.mxu0 0.0
      %806 = vmatpush1.msra.mxu0 0.0
      %807 = vmatprep.subr.mxu0 0.0
      %808 = vmatpush1.msra.mxu0 0.0
      %809 = vmatprep.subr.mxu0 0.0
      %810 = vmatpush1.msra.mxu0 0.0
      %811 = vmatprep.subr.mxu0 0.0
      %812 = vmatpush1.msra.mxu0 0.0
      %813 = vmatprep.subr.mxu0 0.0
      %814 = vmatpush1.msra.mxu0 0.0
      %815 = vmatprep.subr.mxu0 0.0
      %816 = vmatpush1.msra.mxu0 0.0
      %817 = vmatprep.subr.mxu0 0.0
      %818 = vmatpush1.msra.mxu0 0.0
      %819 = vmatprep.subr.mxu0 0.0
      %820 = vmatpush1.msra.mxu0 0.0
      %821 = vmatprep.mubr.f32.mxu0 0.0
      %822 = vmatmul.mubr.f32.gmra.mrb[0].mxu0 %v752
      %v823 = vpop.f32.mrb[0].mxu0
      %v824 = vadd.f32 0.0, %v823
      %v825 = vpop.f32.mrb[0].mxu0
      %826 = vmatprep.mubr.f32.mxu0 0.0
      %827 = vmatmul.mubr.f32.gmra.mrb[0].mxu0 %v755
      %v828 = vpop.f32.mrb[0].mxu0
      %v829 = vadd.f32 0.0, %v828
      %v830 = vpop.f32.mrb[0].mxu0
      %831 = vdwg.mxu0
      %v833 = vsel %vm714, %v731, 0
      %v836 = vsel %vm714, %v732, 0
      %838 = vmatprep.subr.mxu0 0.0
      %839 = vmatpush1.msra.mxu0 %v733
      %840 = vmatprep.subr.mxu0 0.0
      %841 = vmatpush1.msra.mxu0 %v734
      %842 = vmatprep.subr.mxu0 0.0
      %843 = vmatpush1.msra.mxu0 %v735
      %844 = vmatprep.subr.mxu0 0.0
      %845 = vmatpush1.msra.mxu0 %v736
      %846 = vmatprep.subr.mxu0 0.0
      %847 = vmatpush1.msra.mxu0 %v737
      %848 = vmatprep.subr.mxu0 0.0
      %849 = vmatpush1.msra.mxu0 %v738
      %850 = vmatprep.subr.mxu0 0.0
      %851 = vmatpush1.msra.mxu0 %v739
      %852 = vmatprep.subr.mxu0 0.0
      %853 = vmatpush1.msra.mxu0 %v740
      %854 = vmatprep.subr.mxu0 0.0
      %855 = vmatpush1.msra.mxu0 0.0
      %856 = vmatprep.subr.mxu0 0.0
      %857 = vmatpush1.msra.mxu0 0.0
      %858 = vmatprep.subr.mxu0 0.0
      %859 = vmatpush1.msra.mxu0 0.0
      %860 = vmatprep.subr.mxu0 0.0
      %861 = vmatpush1.msra.mxu0 0.0
      %862 = vmatprep.subr.mxu0 0.0
      %863 = vmatpush1.msra.mxu0 0.0
      %864 = vmatprep.subr.mxu0 0.0
      %865 = vmatpush1.msra.mxu0 0.0
      %866 = vmatprep.subr.mxu0 0.0
      %867 = vmatpush1.msra.mxu0 0.0
      %868 = vmatprep.subr.mxu0 0.0
      %869 = vmatpush1.msra.mxu0 0.0
      %870 = vmatprep.subr.mxu0 0.0
      %871 = vmatpush1.msra.mxu0 0.0
      %872 = vmatprep.subr.mxu0 0.0
      %873 = vmatpush1.msra.mxu0 0.0
      %874 = vmatprep.subr.mxu0 0.0
      %875 = vmatpush1.msra.mxu0 0.0
      %876 = vmatprep.subr.mxu0 0.0
      %877 = vmatpush1.msra.mxu0 0.0
      %878 = vmatprep.subr.mxu0 0.0
      %879 = vmatpush1.msra.mxu0 0.0
      %880 = vmatprep.subr.mxu0 0.0
      %881 = vmatpush1.msra.mxu0 0.0
      %882 = vmatprep.subr.mxu0 0.0
      %883 = vmatpush1.msra.mxu0 0.0
      %884 = vmatprep.subr.mxu0 0.0
      %885 = vmatpush1.msra.mxu0 0.0
      %886 = vmatprep.subr.mxu0 0.0
      %887 = vmatpush1.msra.mxu0 0.0
      %888 = vmatprep.subr.mxu0 0.0
      %889 = vmatpush1.msra.mxu0 0.0
      %890 = vmatprep.subr.mxu0 0.0
      %891 = vmatpush1.msra.mxu0 0.0
      %892 = vmatprep.subr.mxu0 0.0
      %893 = vmatpush1.msra.mxu0 0.0
      %894 = vmatprep.subr.mxu0 0.0
      %895 = vmatpush1.msra.mxu0 0.0
      %896 = vmatprep.subr.mxu0 0.0
      %897 = vmatpush1.msra.mxu0 0.0
      %898 = vmatprep.subr.mxu0 0.0
      %899 = vmatpush1.msra.mxu0 0.0
      %900 = vmatprep.subr.mxu0 0.0
      %901 = vmatpush1.msra.mxu0 0.0
      %902 = vmatprep.mubr.f32.mxu0 0.0
      %903 = vmatmul.mubr.f32.gmra.mrb[0].mxu0 %v833
      %v904 = vpop.f32.mrb[0].mxu0
      %v905 = vadd.f32 %v824, %v904
      %v906 = vpop.f32.mrb[0].mxu0
      %907 = vmatprep.mubr.f32.mxu0 0.0
      %908 = vmatmul.mubr.f32.gmra.mrb[0].mxu0 %v836
      %v909 = vpop.f32.mrb[0].mxu0
      %v910 = vadd.f32 %v829, %v909
      %v911 = vpop.f32.mrb[0].mxu0
      %912 = vdwg.mxu0
      %v913 = vld [vmem:[#allocation2 + $0x2] sm:$0xff]
      %v914 = vld [vmem:[#allocation2 + $0xa] sm:$0xff]
      %s915 = scalar_lea.vmem %s3, 64
      %v916 = vld [vmem:[%s915] sm:$0xff]
      %v917 = vld [vmem:[%s915 + $0x8] sm:$0xff]
      %v918 = vld [vmem:[%s915 + $0x10] sm:$0xff]
      %v919 = vld [vmem:[%s915 + $0x18] sm:$0xff]
      %v920 = vld [vmem:[%s915 + $0x20] sm:$0xff]
      %v921 = vld [vmem:[%s915 + $0x28] sm:$0xff]
      %v922 = vld [vmem:[%s915 + $0x30] sm:$0xff]
      %v923 = vld [vmem:[%s915 + $0x38] sm:$0xff]
      %v925 = vsel %vm714, %v913, 0
      %v928 = vsel %vm714, %v914, 0
      %930 = vmatprep.subr.mxu0 0.0
      %931 = vmatpush1.msra.mxu0 %v916
      %932 = vmatprep.subr.mxu0 0.0
      %933 = vmatpush1.msra.mxu0 %v917
      %934 = vmatprep.subr.mxu0 0.0
      %935 = vmatpush1.msra.mxu0 %v918
      %936 = vmatprep.subr.mxu0 0.0
      %937 = vmatpush1.msra.mxu0 %v919
      %938 = vmatprep.subr.mxu0 0.0
      %939 = vmatpush1.msra.mxu0 %v920
      %940 = vmatprep.subr.mxu0 0.0
      %941 = vmatpush1.msra.mxu0 %v921
      %942 = vmatprep.subr.mxu0 0.0
      %943 = vmatpush1.msra.mxu0 %v922
      %944 = vmatprep.subr.mxu0 0.0
      %945 = vmatpush1.msra.mxu0 %v923
      %946 = vmatprep.subr.mxu0 0.0
      %947 = vmatpush1.msra.mxu0 0.0
      %948 = vmatprep.subr.mxu0 0.0
      %949 = vmatpush1.msra.mxu0 0.0
      %950 = vmatprep.subr.mxu0 0.0
      %951 = vmatpush1.msra.mxu0 0.0
      %952 = vmatprep.subr.mxu0 0.0
      %953 = vmatpush1.msra.mxu0 0.0
      %954 = vmatprep.subr.mxu0 0.0
      %955 = vmatpush1.msra.mxu0 0.0
      %956 = vmatprep.subr.mxu0 0.0
      %957 = vmatpush1.msra.mxu0 0.0
      %958 = vmatprep.subr.mxu0 0.0
      %959 = vmatpush1.msra.mxu0 0.0
      %960 = vmatprep.subr.mxu0 0.0
      %961 = vmatpush1.msra.mxu0 0.0
      %962 = vmatprep.subr.mxu0 0.0
      %963 = vmatpush1.msra.mxu0 0.0
      %964 = vmatprep.subr.mxu0 0.0
      %965 = vmatpush1.msra.mxu0 0.0
      %966 = vmatprep.subr.mxu0 0.0
      %967 = vmatpush1.msra.mxu0 0.0
      %968 = vmatprep.subr.mxu0 0.0
      %969 = vmatpush1.msra.mxu0 0.0
      %970 = vmatprep.subr.mxu0 0.0
      %971 = vmatpush1.msra.mxu0 0.0
      %972 = vmatprep.subr.mxu0 0.0
      %973 = vmatpush1.msra.mxu0 0.0
      %974 = vmatprep.subr.mxu0 0.0
      %975 = vmatpush1.msra.mxu0 0.0
      %976 = vmatprep.subr.mxu0 0.0
      %977 = vmatpush1.msra.mxu0 0.0
      %978 = vmatprep.subr.mxu0 0.0
      %979 = vmatpush1.msra.mxu0 0.0
      %980 = vmatprep.subr.mxu0 0.0
      %981 = vmatpush1.msra.mxu0 0.0
      %982 = vmatprep.subr.mxu0 0.0
      %983 = vmatpush1.msra.mxu0 0.0
      %984 = vmatprep.subr.mxu0 0.0
      %985 = vmatpush1.msra.mxu0 0.0
      %986 = vmatprep.subr.mxu0 0.0
      %987 = vmatpush1.msra.mxu0 0.0
      %988 = vmatprep.subr.mxu0 0.0
      %989 = vmatpush1.msra.mxu0 0.0
      %990 = vmatprep.subr.mxu0 0.0
      %991 = vmatpush1.msra.mxu0 0.0
      %992 = vmatprep.subr.mxu0 0.0
      %993 = vmatpush1.msra.mxu0 0.0
      %994 = vmatprep.mubr.f32.mxu0 0.0
      %995 = vmatmul.mubr.f32.gmra.mrb[0].mxu0 %v925
      %v996 = vpop.f32.mrb[0].mxu0
      %v997 = vadd.f32 0.0, %v996
      %v998 = vpop.f32.mrb[0].mxu0
      %999 = vmatprep.mubr.f32.mxu0 0.0
      %1000 = vmatmul.mubr.f32.gmra.mrb[0].mxu0 %v928
      %v1001 = vpop.f32.mrb[0].mxu0
      %v1002 = vadd.f32 0.0, %v1001
      %v1003 = vpop.f32.mrb[0].mxu0
      %1004 = vdwg.mxu0
      %v1005 = vadd.f32 %v905, %v997
      %v1006 = vadd.f32 %v910, %v1002
      %v1007 = vld [vmem:[#allocation2 + $0x4] sm:$0xff]
      %v1008 = vld [vmem:[#allocation2 + $0xc] sm:$0xff]
      %s1009 = scalar_lea.vmem %s3, 128
      %v1010 = vld [vmem:[%s1009] sm:$0xff]
      %v1011 = vld [vmem:[%s1009 + $0x8] sm:$0xff]
      %v1012 = vld [vmem:[%s1009 + $0x10] sm:$0xff]
      %v1013 = vld [vmem:[%s1009 + $0x18] sm:$0xff]
      %v1014 = vld [vmem:[%s1009 + $0x20] sm:$0xff]
      %v1015 = vld [vmem:[%s1009 + $0x28] sm:$0xff]
      %v1016 = vld [vmem:[%s1009 + $0x30] sm:$0xff]
      %v1017 = vld [vmem:[%s1009 + $0x38] sm:$0xff]
      %v1019 = vsel %vm714, %v1007, 0
      %v1022 = vsel %vm714, %v1008, 0
      %1024 = vmatprep.subr.mxu0 0.0
      %1025 = vmatpush1.msra.mxu0 %v1010
      %1026 = vmatprep.subr.mxu0 0.0
      %1027 = vmatpush1.msra.mxu0 %v1011
      %1028 = vmatprep.subr.mxu0 0.0
      %1029 = vmatpush1.msra.mxu0 %v1012
      %1030 = vmatprep.subr.mxu0 0.0
      %1031 = vmatpush1.msra.mxu0 %v1013
      %1032 = vmatprep.subr.mxu0 0.0
      %1033 = vmatpush1.msra.mxu0 %v1014
      %1034 = vmatprep.subr.mxu0 0.0
      %1035 = vmatpush1.msra.mxu0 %v1015
      %1036 = vmatprep.subr.mxu0 0.0
      %1037 = vmatpush1.msra.mxu0 %v1016
      %1038 = vmatprep.subr.mxu0 0.0
      %1039 = vmatpush1.msra.mxu0 %v1017
      %1040 = vmatprep.subr.mxu0 0.0
      %1041 = vmatpush1.msra.mxu0 0.0
      %1042 = vmatprep.subr.mxu0 0.0
      %1043 = vmatpush1.msra.mxu0 0.0
      %1044 = vmatprep.subr.mxu0 0.0
      %1045 = vmatpush1.msra.mxu0 0.0
      %1046 = vmatprep.subr.mxu0 0.0
      %1047 = vmatpush1.msra.mxu0 0.0
      %1048 = vmatprep.subr.mxu0 0.0
      %1049 = vmatpush1.msra.mxu0 0.0
      %1050 = vmatprep.subr.mxu0 0.0
      %1051 = vmatpush1.msra.mxu0 0.0
      %1052 = vmatprep.subr.mxu0 0.0
      %1053 = vmatpush1.msra.mxu0 0.0
      %1054 = vmatprep.subr.mxu0 0.0
      %1055 = vmatpush1.msra.mxu0 0.0
      %1056 = vmatprep.subr.mxu0 0.0
      %1057 = vmatpush1.msra.mxu0 0.0
      %1058 = vmatprep.subr.mxu0 0.0
      %1059 = vmatpush1.msra.mxu0 0.0
      %1060 = vmatprep.subr.mxu0 0.0
      %1061 = vmatpush1.msra.mxu0 0.0
      %1062 = vmatprep.subr.mxu0 0.0
      %1063 = vmatpush1.msra.mxu0 0.0
      %1064 = vmatprep.subr.mxu0 0.0
      %1065 = vmatpush1.msra.mxu0 0.0
      %1066 = vmatprep.subr.mxu0 0.0
      %1067 = vmatpush1.msra.mxu0 0.0
      %1068 = vmatprep.subr.mxu0 0.0
      %1069 = vmatpush1.msra.mxu0 0.0
      %1070 = vmatprep.subr.mxu0 0.0
      %1071 = vmatpush1.msra.mxu0 0.0
      %1072 = vmatprep.subr.mxu0 0.0
      %1073 = vmatpush1.msra.mxu0 0.0
      %1074 = vmatprep.subr.mxu0 0.0
      %1075 = vmatpush1.msra.mxu0 0.0
      %1076 = vmatprep.subr.mxu0 0.0
      %1077 = vmatpush1.msra.mxu0 0.0
      %1078 = vmatprep.subr.mxu0 0.0
      %1079 = vmatpush1.msra.mxu0 0.0
      %1080 = vmatprep.subr.mxu0 0.0
      %1081 = vmatpush1.msra.mxu0 0.0
      %1082 = vmatprep.subr.mxu0 0.0
      %1083 = vmatpush1.msra.mxu0 0.0
      %1084 = vmatprep.subr.mxu0 0.0
      %1085 = vmatpush1.msra.mxu0 0.0
      %1086 = vmatprep.subr.mxu0 0.0
      %1087 = vmatpush1.msra.mxu0 0.0
      %1088 = vmatprep.mubr.f32.mxu0 0.0
      %1089 = vmatmul.mubr.f32.gmra.mrb[0].mxu0 %v1019
      %v1090 = vpop.f32.mrb[0].mxu0
      %v1091 = vadd.f32 0.0, %v1090
      %v1092 = vpop.f32.mrb[0].mxu0
      %1093 = vmatprep.mubr.f32.mxu0 0.0
      %1094 = vmatmul.mubr.f32.gmra.mrb[0].mxu0 %v1022
      %v1095 = vpop.f32.mrb[0].mxu0
      %v1096 = vadd.f32 0.0, %v1095
      %v1097 = vpop.f32.mrb[0].mxu0
      %1098 = vdwg.mxu0
      %v1099 = vadd.f32 %v1005, %v1091
      %v1100 = vadd.f32 %v1006, %v1096
      %v1101 = vld [vmem:[%s2 + $0x2] sm:$0x1]
      %v1102 = vlaneseq
      %v1103 = vshrl.u32 %v1102, 7
      %v1104 = vsub.s32 0, %v1103
      %v1105 = vrot.slane %v1101, %v1104
      %v1106 = vadd.f32 %v1099, %v1105
      %v1107 = vadd.f32 %v1100, %v1105
      %v1108 = vld [vmem:[%s2] sm:$0x1]
      %v1109 = vlaneseq
      %v1110 = vshrl.u32 %v1109, 7
      %v1111 = vsub.s32 0, %v1110
      %v1112 = vrot.slane %v1108, %v1111
      %v1113 = vmul.f32 %v1106, %v1112
      %v1114 = vmul.f32 %v1107, %v1112
      %v1115 = vld [vmem:[%s2 + $0x1] sm:$0x1]
      %v1116 = vlaneseq
      %v1117 = vshrl.u32 %v1116, 7
      %v1118 = vsub.s32 0, %v1117
      %v1119 = vrot.slane %v1115, %v1118
      %v1120 = vadd.f32 %v1113, %v1119
      %v1121 = vadd.f32 %v1114, %v1119
      %v1122 = vmax.f32 %v1120, 0.0
      %v1123 = vmax.f32 %v1121, 0.0
      %1124 = vst [vmem:[#allocation5 + $0x1] sm:$0xff] %v1122
      %1125 = vst [vmem:[#allocation5 + $0x9] sm:$0xff] %v1123
      %v1126 = vld [vmem:[#allocation5] sm:$0xff]
      %v1127 = vld [vmem:[#allocation5 + $0x8] sm:$0xff]
      %v1128 = vld [vmem:[%s5] sm:$0xff]
      %v1129 = vld [vmem:[%s5 + $0x8] sm:$0xff]
      %v1130 = vld [vmem:[%s5 + $0x10] sm:$0xff]
      %v1131 = vld [vmem:[%s5 + $0x18] sm:$0xff]
      %v1132 = vld [vmem:[%s5 + $0x20] sm:$0xff]
      %v1133 = vld [vmem:[%s5 + $0x28] sm:$0xff]
      %v1134 = vld [vmem:[%s5 + $0x30] sm:$0xff]
      %v1135 = vld [vmem:[%s5 + $0x38] sm:$0xff]
      %v1136 = vld [vmem:[%s5 + $0x40] sm:$0xff]
      %v1137 = vld [vmem:[%s5 + $0x48] sm:$0xff]
      %v1138 = vld [vmem:[%s5 + $0x50] sm:$0xff]
      %v1139 = vld [vmem:[%s5 + $0x58] sm:$0xff]
      %v1140 = vld [vmem:[%s5 + $0x60] sm:$0xff]
      %v1141 = vld [vmem:[%s5 + $0x68] sm:$0xff]
      %v1142 = vld [vmem:[%s5 + $0x70] sm:$0xff]
      %v1143 = vld [vmem:[%s5 + $0x78] sm:$0xff]
      %v1144 = vld [vmem:[#allocation5 + $0x1] sm:$0xff]
      %v1145 = vld [vmem:[#allocation5 + $0x9] sm:$0xff]
      %s1146 = scalar_lea.vmem %s5, 128
      %v1147 = vld [vmem:[%s1146] sm:$0xff]
      %v1148 = vld [vmem:[%s1146 + $0x8] sm:$0xff]
      %v1149 = vld [vmem:[%s1146 + $0x10] sm:$0xff]
      %v1150 = vld [vmem:[%s1146 + $0x18] sm:$0xff]
      %v1151 = vld [vmem:[%s1146 + $0x20] sm:$0xff]
      %v1152 = vld [vmem:[%s1146 + $0x28] sm:$0xff]
      %v1153 = vld [vmem:[%s1146 + $0x30] sm:$0xff]
      %v1154 = vld [vmem:[%s1146 + $0x38] sm:$0xff]
      %v1155 = vld [vmem:[%s1146 + $0x40] sm:$0xff]
      %v1156 = vld [vmem:[%s1146 + $0x48] sm:$0xff]
      %v1157 = vld [vmem:[%s1146 + $0x50] sm:$0xff]
      %v1158 = vld [vmem:[%s1146 + $0x58] sm:$0xff]
      %v1159 = vld [vmem:[%s1146 + $0x60] sm:$0xff]
      %v1160 = vld [vmem:[%s1146 + $0x68] sm:$0xff]
      %v1161 = vld [vmem:[%s1146 + $0x70] sm:$0xff]
      %v1162 = vld [vmem:[%s1146 + $0x78] sm:$0xff]
      %1163 = vmatprep.subr.mxu0 0.0
      %1164 = vmatpush1.msra.mxu0 %v1147
      %1165 = vmatprep.subr.mxu0 0.0
      %1166 = vmatpush1.msra.mxu0 %v1148
      %1167 = vmatprep.subr.mxu0 0.0
      %1168 = vmatpush1.msra.mxu0 %v1149
      %1169 = vmatprep.subr.mxu0 0.0
      %1170 = vmatpush1.msra.mxu0 %v1150
      %1171 = vmatprep.subr.mxu0 0.0
      %1172 = vmatpush1.msra.mxu0 %v1151
      %1173 = vmatprep.subr.mxu0 0.0
      %1174 = vmatpush1.msra.mxu0 %v1152
      %1175 = vmatprep.subr.mxu0 0.0
      %1176 = vmatpush1.msra.mxu0 %v1153
      %1177 = vmatprep.subr.mxu0 0.0
      %1178 = vmatpush1.msra.mxu0 %v1154
      %1179 = vmatprep.subr.mxu0 0.0
      %1180 = vmatpush1.msra.mxu0 %v1155
      %1181 = vmatprep.subr.mxu0 0.0
      %1182 = vmatpush1.msra.mxu0 %v1156
      %1183 = vmatprep.subr.mxu0 0.0
      %1184 = vmatpush1.msra.mxu0 %v1157
      %1185 = vmatprep.subr.mxu0 0.0
      %1186 = vmatpush1.msra.mxu0 %v1158
      %1187 = vmatprep.subr.mxu0 0.0
      %1188 = vmatpush1.msra.mxu0 %v1159
      %1189 = vmatprep.subr.mxu0 0.0
      %1190 = vmatpush1.msra.mxu0 %v1160
      %1191 = vmatprep.subr.mxu0 0.0
      %1192 = vmatpush1.msra.mxu0 %v1161
      %1193 = vmatprep.subr.mxu0 0.0
      %1194 = vmatpush1.msra.mxu0 %v1162
      %1195 = vmatprep.subr.mxu0 0.0
      %1196 = vmatpush1.msra.mxu0 0.0
      %1197 = vmatprep.subr.mxu0 0.0
      %1198 = vmatpush1.msra.mxu0 0.0
      %1199 = vmatprep.subr.mxu0 0.0
      %1200 = vmatpush1.msra.mxu0 0.0
      %1201 = vmatprep.subr.mxu0 0.0
      %1202 = vmatpush1.msra.mxu0 0.0
      %1203 = vmatprep.subr.mxu0 0.0
      %1204 = vmatpush1.msra.mxu0 0.0
      %1205 = vmatprep.subr.mxu0 0.0
      %1206 = vmatpush1.msra.mxu0 0.0
      %1207 = vmatprep.subr.mxu0 0.0
      %1208 = vmatpush1.msra.mxu0 0.0
      %1209 = vmatprep.subr.mxu0 0.0
      %1210 = vmatpush1.msra.mxu0 0.0
      %1211 = vmatprep.subr.mxu0 0.0
      %1212 = vmatpush1.msra.mxu0 0.0
      %1213 = vmatprep.subr.mxu0 0.0
      %1214 = vmatpush1.msra.mxu0 0.0
      %1215 = vmatprep.subr.mxu0 0.0
      %1216 = vmatpush1.msra.mxu0 0.0
      %1217 = vmatprep.subr.mxu0 0.0
      %1218 = vmatpush1.msra.mxu0 0.0
      %1219 = vmatprep.subr.mxu0 0.0
      %1220 = vmatpush1.msra.mxu0 0.0
      %1221 = vmatprep.subr.mxu0 0.0
      %1222 = vmatpush1.msra.mxu0 0.0
      %1223 = vmatprep.subr.mxu0 0.0
      %1224 = vmatpush1.msra.mxu0 0.0
      %1225 = vmatprep.subr.mxu0 0.0
      %1226 = vmatpush1.msra.mxu0 0.0
      %1227 = vmatprep.mubr.f32.mxu0 0.0
      %1228 = vmatmul.mubr.f32.gmra.mrb[0].mxu0 %v1144
      %v1229 = vpop.f32.mrb[0].mxu0
      %v1230 = vadd.f32 0.0, %v1229
      %v1231 = vpop.f32.mrb[0].mxu0
      %1232 = vmatprep.mubr.f32.mxu0 0.0
      %1233 = vmatmul.mubr.f32.gmra.mrb[0].mxu0 %v1145
      %v1234 = vpop.f32.mrb[0].mxu0
      %v1235 = vadd.f32 0.0, %v1234
      %v1236 = vpop.f32.mrb[0].mxu0
      %1237 = vdwg.mxu0
      %1238 = vmatprep.subr.mxu0 0.0
      %1239 = vmatpush1.msra.mxu0 %v1128
      %1240 = vmatprep.subr.mxu0 0.0
      %1241 = vmatpush1.msra.mxu0 %v1129
      %1242 = vmatprep.subr.mxu0 0.0
      %1243 = vmatpush1.msra.mxu0 %v1130
      %1244 = vmatprep.subr.mxu0 0.0
      %1245 = vmatpush1.msra.mxu0 %v1131
      %1246 = vmatprep.subr.mxu0 0.0
      %1247 = vmatpush1.msra.mxu0 %v1132
      %1248 = vmatprep.subr.mxu0 0.0
      %1249 = vmatpush1.msra.mxu0 %v1133
      %1250 = vmatprep.subr.mxu0 0.0
      %1251 = vmatpush1.msra.mxu0 %v1134
      %1252 = vmatprep.subr.mxu0 0.0
      %1253 = vmatpush1.msra.mxu0 %v1135
      %1254 = vmatprep.subr.mxu0 0.0
      %1255 = vmatpush1.msra.mxu0 %v1136
      %1256 = vmatprep.subr.mxu0 0.0
      %1257 = vmatpush1.msra.mxu0 %v1137
      %1258 = vmatprep.subr.mxu0 0.0
      %1259 = vmatpush1.msra.mxu0 %v1138
      %1260 = vmatprep.subr.mxu0 0.0
      %1261 = vmatpush1.msra.mxu0 %v1139
      %1262 = vmatprep.subr.mxu0 0.0
      %1263 = vmatpush1.msra.mxu0 %v1140
      %1264 = vmatprep.subr.mxu0 0.0
      %1265 = vmatpush1.msra.mxu0 %v1141
      %1266 = vmatprep.subr.mxu0 0.0
      %1267 = vmatpush1.msra.mxu0 %v1142
      %1268 = vmatprep.subr.mxu0 0.0
      %1269 = vmatpush1.msra.mxu0 %v1143
      %1270 = vmatprep.subr.mxu0 0.0
      %1271 = vmatpush1.msra.mxu0 0.0
      %1272 = vmatprep.subr.mxu0 0.0
      %1273 = vmatpush1.msra.mxu0 0.0
      %1274 = vmatprep.subr.mxu0 0.0
      %1275 = vmatpush1.msra.mxu0 0.0
      %1276 = vmatprep.subr.mxu0 0.0
      %1277 = vmatpush1.msra.mxu0 0.0
      %1278 = vmatprep.subr.mxu0 0.0
      %1279 = vmatpush1.msra.mxu0 0.0
      %1280 = vmatprep.subr.mxu0 0.0
      %1281 = vmatpush1.msra.mxu0 0.0
      %1282 = vmatprep.subr.mxu0 0.0
      %1283 = vmatpush1.msra.mxu0 0.0
      %1284 = vmatprep.subr.mxu0 0.0
      %1285 = vmatpush1.msra.mxu0 0.0
      %1286 = vmatprep.subr.mxu0 0.0
      %1287 = vmatpush1.msra.mxu0 0.0
      %1288 = vmatprep.subr.mxu0 0.0
      %1289 = vmatpush1.msra.mxu0 0.0
      %1290 = vmatprep.subr.mxu0 0.0
      %1291 = vmatpush1.msra.mxu0 0.0
      %1292 = vmatprep.subr.mxu0 0.0
      %1293 = vmatpush1.msra.mxu0 0.0
      %1294 = vmatprep.subr.mxu0 0.0
      %1295 = vmatpush1.msra.mxu0 0.0
      %1296 = vmatprep.subr.mxu0 0.0
      %1297 = vmatpush1.msra.mxu0 0.0
      %1298 = vmatprep.subr.mxu0 0.0
      %1299 = vmatpush1.msra.mxu0 0.0
      %1300 = vmatprep.subr.mxu0 0.0
      %1301 = vmatpush1.msra.mxu0 0.0
      %1302 = vmatprep.mubr.f32.mxu0 0.0
      %1303 = vmatmul.mubr.f32.gmra.mrb[0].mxu0 %v1126
      %v1304 = vpop.f32.mrb[0].mxu0
      %v1305 = vadd.f32 %v1230, %v1304
      %v1306 = vpop.f32.mrb[0].mxu0
      %1307 = vmatprep.mubr.f32.mxu0 0.0
      %1308 = vmatmul.mubr.f32.gmra.mrb[0].mxu0 %v1127
      %v1309 = vpop.f32.mrb[0].mxu0
      %v1310 = vadd.f32 %v1235, %v1309
      %v1311 = vpop.f32.mrb[0].mxu0
      %1312 = vdwg.mxu0
      %v1313 = vld [vmem:[#allocation5 + $0x2] sm:$0xff]
      %v1314 = vld [vmem:[#allocation5 + $0xa] sm:$0xff]
      %s1315 = scalar_lea.vmem %s5, 256
      %v1316 = vld [vmem:[%s1315] sm:$0xff]
      %v1317 = vld [vmem:[%s1315 + $0x8] sm:$0xff]
      %v1318 = vld [vmem:[%s1315 + $0x10] sm:$0xff]
      %v1319 = vld [vmem:[%s1315 + $0x18] sm:$0xff]
      %v1320 = vld [vmem:[%s1315 + $0x20] sm:$0xff]
      %v1321 = vld [vmem:[%s1315 + $0x28] sm:$0xff]
      %v1322 = vld [vmem:[%s1315 + $0x30] sm:$0xff]
      %v1323 = vld [vmem:[%s1315 + $0x38] sm:$0xff]
      %v1324 = vld [vmem:[%s1315 + $0x40] sm:$0xff]
      %v1325 = vld [vmem:[%s1315 + $0x48] sm:$0xff]
      %v1326 = vld [vmem:[%s1315 + $0x50] sm:$0xff]
      %v1327 = vld [vmem:[%s1315 + $0x58] sm:$0xff]
      %v1328 = vld [vmem:[%s1315 + $0x60] sm:$0xff]
      %v1329 = vld [vmem:[%s1315 + $0x68] sm:$0xff]
      %v1330 = vld [vmem:[%s1315 + $0x70] sm:$0xff]
      %v1331 = vld [vmem:[%s1315 + $0x78] sm:$0xff]
      %1332 = vmatprep.subr.mxu0 0.0
      %1333 = vmatpush1.msra.mxu0 %v1316
      %1334 = vmatprep.subr.mxu0 0.0
      %1335 = vmatpush1.msra.mxu0 %v1317
      %1336 = vmatprep.subr.mxu0 0.0
      %1337 = vmatpush1.msra.mxu0 %v1318
      %1338 = vmatprep.subr.mxu0 0.0
      %1339 = vmatpush1.msra.mxu0 %v1319
      %1340 = vmatprep.subr.mxu0 0.0
      %1341 = vmatpush1.msra.mxu0 %v1320
      %1342 = vmatprep.subr.mxu0 0.0
      %1343 = vmatpush1.msra.mxu0 %v1321
      %1344 = vmatprep.subr.mxu0 0.0
      %1345 = vmatpush1.msra.mxu0 %v1322
      %1346 = vmatprep.subr.mxu0 0.0
      %1347 = vmatpush1.msra.mxu0 %v1323
      %1348 = vmatprep.subr.mxu0 0.0
      %1349 = vmatpush1.msra.mxu0 %v1324
      %1350 = vmatprep.subr.mxu0 0.0
      %1351 = vmatpush1.msra.mxu0 %v1325
      %1352 = vmatprep.subr.mxu0 0.0
      %1353 = vmatpush1.msra.mxu0 %v1326
      %1354 = vmatprep.subr.mxu0 0.0
      %1355 = vmatpush1.msra.mxu0 %v1327
      %1356 = vmatprep.subr.mxu0 0.0
      %1357 = vmatpush1.msra.mxu0 %v1328
      %1358 = vmatprep.subr.mxu0 0.0
      %1359 = vmatpush1.msra.mxu0 %v1329
      %1360 = vmatprep.subr.mxu0 0.0
      %1361 = vmatpush1.msra.mxu0 %v1330
      %1362 = vmatprep.subr.mxu0 0.0
      %1363 = vmatpush1.msra.mxu0 %v1331
      %1364 = vmatprep.subr.mxu0 0.0
      %1365 = vmatpush1.msra.mxu0 0.0
      %1366 = vmatprep.subr.mxu0 0.0
      %1367 = vmatpush1.msra.mxu0 0.0
      %1368 = vmatprep.subr.mxu0 0.0
      %1369 = vmatpush1.msra.mxu0 0.0
      %1370 = vmatprep.subr.mxu0 0.0
      %1371 = vmatpush1.msra.mxu0 0.0
      %1372 = vmatprep.subr.mxu0 0.0
      %1373 = vmatpush1.msra.mxu0 0.0
      %1374 = vmatprep.subr.mxu0 0.0
      %1375 = vmatpush1.msra.mxu0 0.0
      %1376 = vmatprep.subr.mxu0 0.0
      %1377 = vmatpush1.msra.mxu0 0.0
      %1378 = vmatprep.subr.mxu0 0.0
      %1379 = vmatpush1.msra.mxu0 0.0
      %1380 = vmatprep.subr.mxu0 0.0
      %1381 = vmatpush1.msra.mxu0 0.0
      %1382 = vmatprep.subr.mxu0 0.0
      %1383 = vmatpush1.msra.mxu0 0.0
      %1384 = vmatprep.subr.mxu0 0.0
      %1385 = vmatpush1.msra.mxu0 0.0
      %1386 = vmatprep.subr.mxu0 0.0
      %1387 = vmatpush1.msra.mxu0 0.0
      %1388 = vmatprep.subr.mxu0 0.0
      %1389 = vmatpush1.msra.mxu0 0.0
      %1390 = vmatprep.subr.mxu0 0.0
      %1391 = vmatpush1.msra.mxu0 0.0
      %1392 = vmatprep.subr.mxu0 0.0
      %1393 = vmatpush1.msra.mxu0 0.0
      %1394 = vmatprep.subr.mxu0 0.0
      %1395 = vmatpush1.msra.mxu0 0.0
      %1396 = vmatprep.mubr.f32.mxu0 0.0
      %1397 = vmatmul.mubr.f32.gmra.mrb[0].mxu0 %v1313
      %v1398 = vpop.f32.mrb[0].mxu0
      %v1399 = vadd.f32 0.0, %v1398
      %v1400 = vpop.f32.mrb[0].mxu0
      %1401 = vmatprep.mubr.f32.mxu0 0.0
      %1402 = vmatmul.mubr.f32.gmra.mrb[0].mxu0 %v1314
      %v1403 = vpop.f32.mrb[0].mxu0
      %v1404 = vadd.f32 0.0, %v1403
      %v1405 = vpop.f32.mrb[0].mxu0
      %1406 = vdwg.mxu0
      %v1407 = vadd.f32 %v1305, %v1399
      %v1408 = vadd.f32 %v1310, %v1404
      %v1409 = vld [vmem:[%s6] sm:$0x1]
      %v1410 = vlaneseq
      %v1411 = vshrl.u32 %v1410, 7
      %v1412 = vsub.s32 0, %v1411
      %v1413 = vrot.slane %v1409, %v1412
      %v1414 = vmul.f32 %v1407, %v1413
      %v1415 = vmul.f32 %v1408, %v1413
      %v1416 = vld [vmem:[%s6 + $0x1] sm:$0x1]
      %v1417 = vlaneseq
      %v1418 = vshrl.u32 %v1417, 7
      %v1419 = vsub.s32 0, %v1418
      %v1420 = vrot.slane %v1416, %v1419
      %v1421 = vadd.f32 %v1414, %v1420
      %v1422 = vadd.f32 %v1415, %v1420
      %v1423 = vmax.f32 %v1421, 0.0
      %v1424 = vmax.f32 %v1422, 0.0
      %1425 = vst [vmem:[#allocation3 + $0x2] sm:$0xff] %v1423
      %1426 = vst [vmem:[#allocation3 + $0xa] sm:$0xff] %v1424
      %v1427 = vld [vmem:[%s6 + $0x2] sm:$0x1]
      %v1428 = vlaneseq
      %v1429 = vshrl.u32 %v1428, 7
      %v1430 = vsub.s32 0, %v1429
      %v1431 = vrot.slane %v1427, %v1430
      %v1432 = vmul.f32 %v1407, %v1431
      %v1433 = vmul.f32 %v1408, %v1431
      %v1434 = vld [vmem:[%s6 + $0x3] sm:$0x1]
      %v1435 = vlaneseq
      %v1436 = vshrl.u32 %v1435, 7
      %v1437 = vsub.s32 0, %v1436
      %v1438 = vrot.slane %v1434, %v1437
      %v1439 = vadd.f32 %v1432, %v1438
      %v1440 = vadd.f32 %v1433, %v1438
      %v1441 = vmax.f32 %v1439, 0.0
      %v1442 = vmax.f32 %v1440, 0.0
      %v1443 = vld [vmem:[%s9] sm:$0xff]
      %v1444 = vld [vmem:[%s9 + $0x8] sm:$0xff]
      %v1445 = vld [vmem:[%s9 + $0x10] sm:$0xff]
      %v1446 = vld [vmem:[%s9 + $0x18] sm:$0xff]
      %v1447 = vld [vmem:[%s9 + $0x20] sm:$0xff]
      %v1448 = vld [vmem:[%s9 + $0x28] sm:$0xff]
      %v1449 = vld [vmem:[%s9 + $0x30] sm:$0xff]
      %v1450 = vld [vmem:[%s9 + $0x38] sm:$0xff]
      %v1451 = vld [vmem:[%s9 + $0x40] sm:$0xff]
      %v1452 = vld [vmem:[%s9 + $0x48] sm:$0xff]
      %v1453 = vld [vmem:[%s9 + $0x50] sm:$0xff]
      %v1454 = vld [vmem:[%s9 + $0x58] sm:$0xff]
      %v1455 = vld [vmem:[%s9 + $0x60] sm:$0xff]
      %v1456 = vld [vmem:[%s9 + $0x68] sm:$0xff]
      %v1457 = vld [vmem:[%s9 + $0x70] sm:$0xff]
      %v1458 = vld [vmem:[%s9 + $0x78] sm:$0xff]
      %v1459 = vld [vmem:[#allocation3] sm:$0xff]
      %v1460 = vld [vmem:[#allocation3 + $0x8] sm:$0xff]
      %v1461 = vld [vmem:[%s8] sm:$0xff]
      %v1462 = vld [vmem:[%s8 + $0x8] sm:$0xff]
      %v1463 = vld [vmem:[%s8 + $0x10] sm:$0xff]
      %v1464 = vld [vmem:[%s8 + $0x18] sm:$0xff]
      %v1465 = vld [vmem:[%s8 + $0x20] sm:$0xff]
      %v1466 = vld [vmem:[%s8 + $0x28] sm:$0xff]
      %v1467 = vld [vmem:[%s8 + $0x30] sm:$0xff]
      %v1468 = vld [vmem:[%s8 + $0x38] sm:$0xff]
      %v1469 = vld [vmem:[%s8 + $0x40] sm:$0xff]
      %v1470 = vld [vmem:[%s8 + $0x48] sm:$0xff]
      %v1471 = vld [vmem:[%s8 + $0x50] sm:$0xff]
      %v1472 = vld [vmem:[%s8 + $0x58] sm:$0xff]
      %v1473 = vld [vmem:[%s8 + $0x60] sm:$0xff]
      %v1474 = vld [vmem:[%s8 + $0x68] sm:$0xff]
      %v1475 = vld [vmem:[%s8 + $0x70] sm:$0xff]
      %v1476 = vld [vmem:[%s8 + $0x78] sm:$0xff]
      %1477 = vmatprep.subr.mxu0 0.0
      %1478 = vmatpush1.msra.mxu0 %v1461
      %1479 = vmatprep.subr.mxu0 0.0
      %1480 = vmatpush1.msra.mxu0 %v1462
      %1481 = vmatprep.subr.mxu0 0.0
      %1482 = vmatpush1.msra.mxu0 %v1463
      %1483 = vmatprep.subr.mxu0 0.0
      %1484 = vmatpush1.msra.mxu0 %v1464
      %1485 = vmatprep.subr.mxu0 0.0
      %1486 = vmatpush1.msra.mxu0 %v1465
      %1487 = vmatprep.subr.mxu0 0.0
      %1488 = vmatpush1.msra.mxu0 %v1466
      %1489 = vmatprep.subr.mxu0 0.0
      %1490 = vmatpush1.msra.mxu0 %v1467
      %1491 = vmatprep.subr.mxu0 0.0
      %1492 = vmatpush1.msra.mxu0 %v1468
      %1493 = vmatprep.subr.mxu0 0.0
      %1494 = vmatpush1.msra.mxu0 %v1469
      %1495 = vmatprep.subr.mxu0 0.0
      %1496 = vmatpush1.msra.mxu0 %v1470
      %1497 = vmatprep.subr.mxu0 0.0
      %1498 = vmatpush1.msra.mxu0 %v1471
      %1499 = vmatprep.subr.mxu0 0.0
      %1500 = vmatpush1.msra.mxu0 %v1472
      %1501 = vmatprep.subr.mxu0 0.0
      %1502 = vmatpush1.msra.mxu0 %v1473
      %1503 = vmatprep.subr.mxu0 0.0
      %1504 = vmatpush1.msra.mxu0 %v1474
      %1505 = vmatprep.subr.mxu0 0.0
      %1506 = vmatpush1.msra.mxu0 %v1475
      %1507 = vmatprep.subr.mxu0 0.0
      %1508 = vmatpush1.msra.mxu0 %v1476
      %1509 = vmatprep.subr.mxu0 0.0
      %1510 = vmatpush1.msra.mxu0 0.0
      %1511 = vmatprep.subr.mxu0 0.0
      %1512 = vmatpush1.msra.mxu0 0.0
      %1513 = vmatprep.subr.mxu0 0.0
      %1514 = vmatpush1.msra.mxu0 0.0
      %1515 = vmatprep.subr.mxu0 0.0
      %1516 = vmatpush1.msra.mxu0 0.0
      %1517 = vmatprep.subr.mxu0 0.0
      %1518 = vmatpush1.msra.mxu0 0.0
      %1519 = vmatprep.subr.mxu0 0.0
      %1520 = vmatpush1.msra.mxu0 0.0
      %1521 = vmatprep.subr.mxu0 0.0
      %1522 = vmatpush1.msra.mxu0 0.0
      %1523 = vmatprep.subr.mxu0 0.0
      %1524 = vmatpush1.msra.mxu0 0.0
      %1525 = vmatprep.subr.mxu0 0.0
      %1526 = vmatpush1.msra.mxu0 0.0
      %1527 = vmatprep.subr.mxu0 0.0
      %1528 = vmatpush1.msra.mxu0 0.0
      %1529 = vmatprep.subr.mxu0 0.0
      %1530 = vmatpush1.msra.mxu0 0.0
      %1531 = vmatprep.subr.mxu0 0.0
      %1532 = vmatpush1.msra.mxu0 0.0
      %1533 = vmatprep.subr.mxu0 0.0
      %1534 = vmatpush1.msra.mxu0 0.0
      %1535 = vmatprep.subr.mxu0 0.0
      %1536 = vmatpush1.msra.mxu0 0.0
      %1537 = vmatprep.subr.mxu0 0.0
      %1538 = vmatpush1.msra.mxu0 0.0
      %1539 = vmatprep.subr.mxu0 0.0
      %1540 = vmatpush1.msra.mxu0 0.0
      %1541 = vmatprep.mubr.f32.mxu0 0.0
      %1542 = vmatmul.mubr.f32.gmra.mrb[0].mxu0 %v1459
      %v1543 = vpop.f32.mrb[0].mxu0
      %v1544 = vadd.f32 0.0, %v1543
      %v1545 = vpop.f32.mrb[0].mxu0
      %1546 = vmatprep.mubr.f32.mxu0 0.0
      %1547 = vmatmul.mubr.f32.gmra.mrb[0].mxu0 %v1460
      %v1548 = vpop.f32.mrb[0].mxu0
      %v1549 = vadd.f32 0.0, %v1548
      %v1550 = vpop.f32.mrb[0].mxu0
      %1551 = vdwg.mxu0
      %1552 = vmatprep.subr.mxu0 0.0
      %1553 = vmatpush1.msra.mxu0 %v1443
      %1554 = vmatprep.subr.mxu0 0.0
      %1555 = vmatpush1.msra.mxu0 %v1444
      %1556 = vmatprep.subr.mxu0 0.0
      %1557 = vmatpush1.msra.mxu0 %v1445
      %1558 = vmatprep.subr.mxu0 0.0
      %1559 = vmatpush1.msra.mxu0 %v1446
      %1560 = vmatprep.subr.mxu0 0.0
      %1561 = vmatpush1.msra.mxu0 %v1447
      %1562 = vmatprep.subr.mxu0 0.0
      %1563 = vmatpush1.msra.mxu0 %v1448
      %1564 = vmatprep.subr.mxu0 0.0
      %1565 = vmatpush1.msra.mxu0 %v1449
      %1566 = vmatprep.subr.mxu0 0.0
      %1567 = vmatpush1.msra.mxu0 %v1450
      %1568 = vmatprep.subr.mxu0 0.0
      %1569 = vmatpush1.msra.mxu0 %v1451
      %1570 = vmatprep.subr.mxu0 0.0
      %1571 = vmatpush1.msra.mxu0 %v1452
      %1572 = vmatprep.subr.mxu0 0.0
      %1573 = vmatpush1.msra.mxu0 %v1453
      %1574 = vmatprep.subr.mxu0 0.0
      %1575 = vmatpush1.msra.mxu0 %v1454
      %1576 = vmatprep.subr.mxu0 0.0
      %1577 = vmatpush1.msra.mxu0 %v1455
      %1578 = vmatprep.subr.mxu0 0.0
      %1579 = vmatpush1.msra.mxu0 %v1456
      %1580 = vmatprep.subr.mxu0 0.0
      %1581 = vmatpush1.msra.mxu0 %v1457
      %1582 = vmatprep.subr.mxu0 0.0
      %1583 = vmatpush1.msra.mxu0 %v1458
      %1584 = vmatprep.subr.mxu0 0.0
      %1585 = vmatpush1.msra.mxu0 0.0
      %1586 = vmatprep.subr.mxu0 0.0
      %1587 = vmatpush1.msra.mxu0 0.0
      %1588 = vmatprep.subr.mxu0 0.0
      %1589 = vmatpush1.msra.mxu0 0.0
      %1590 = vmatprep.subr.mxu0 0.0
      %1591 = vmatpush1.msra.mxu0 0.0
      %1592 = vmatprep.subr.mxu0 0.0
      %1593 = vmatpush1.msra.mxu0 0.0
      %1594 = vmatprep.subr.mxu0 0.0
      %1595 = vmatpush1.msra.mxu0 0.0
      %1596 = vmatprep.subr.mxu0 0.0
      %1597 = vmatpush1.msra.mxu0 0.0
      %1598 = vmatprep.subr.mxu0 0.0
      %1599 = vmatpush1.msra.mxu0 0.0
      %1600 = vmatprep.subr.mxu0 0.0
      %1601 = vmatpush1.msra.mxu0 0.0
      %1602 = vmatprep.subr.mxu0 0.0
      %1603 = vmatpush1.msra.mxu0 0.0
      %1604 = vmatprep.subr.mxu0 0.0
      %1605 = vmatpush1.msra.mxu0 0.0
      %1606 = vmatprep.subr.mxu0 0.0
      %1607 = vmatpush1.msra.mxu0 0.0
      %1608 = vmatprep.subr.mxu0 0.0
      %1609 = vmatpush1.msra.mxu0 0.0
      %1610 = vmatprep.subr.mxu0 0.0
      %1611 = vmatpush1.msra.mxu0 0.0
      %1612 = vmatprep.subr.mxu0 0.0
      %1613 = vmatpush1.msra.mxu0 0.0
      %1614 = vmatprep.subr.mxu0 0.0
      %1615 = vmatpush1.msra.mxu0 0.0
      %1616 = vmatprep.mubr.f32.mxu0 0.0
      %1617 = vmatmul.mubr.f32.gmra.mrb[0].mxu0 %v1441
      %v1618 = vpop.f32.mrb[0].mxu0
      %v1619 = vadd.f32 %v1544, %v1618
      %v1620 = vpop.f32.mrb[0].mxu0
      %1621 = vmatprep.mubr.f32.mxu0 0.0
      %1622 = vmatmul.mubr.f32.gmra.mrb[0].mxu0 %v1442
      %v1623 = vpop.f32.mrb[0].mxu0
      %v1624 = vadd.f32 %v1549, %v1623
      %v1625 = vpop.f32.mrb[0].mxu0
      %1626 = vdwg.mxu0
      %v1627 = vld [vmem:[#allocation3 + $0x2] sm:$0xff]
      %v1628 = vld [vmem:[#allocation3 + $0xa] sm:$0xff]
      %s1629 = scalar_lea.vmem %s8, 128
      %v1630 = vld [vmem:[%s1629] sm:$0xff]
      %v1631 = vld [vmem:[%s1629 + $0x8] sm:$0xff]
      %v1632 = vld [vmem:[%s1629 + $0x10] sm:$0xff]
      %v1633 = vld [vmem:[%s1629 + $0x18] sm:$0xff]
      %v1634 = vld [vmem:[%s1629 + $0x20] sm:$0xff]
      %v1635 = vld [vmem:[%s1629 + $0x28] sm:$0xff]
      %v1636 = vld [vmem:[%s1629 + $0x30] sm:$0xff]
      %v1637 = vld [vmem:[%s1629 + $0x38] sm:$0xff]
      %v1638 = vld [vmem:[%s1629 + $0x40] sm:$0xff]
      %v1639 = vld [vmem:[%s1629 + $0x48] sm:$0xff]
      %v1640 = vld [vmem:[%s1629 + $0x50] sm:$0xff]
      %v1641 = vld [vmem:[%s1629 + $0x58] sm:$0xff]
      %v1642 = vld [vmem:[%s1629 + $0x60] sm:$0xff]
      %v1643 = vld [vmem:[%s1629 + $0x68] sm:$0xff]
      %v1644 = vld [vmem:[%s1629 + $0x70] sm:$0xff]
      %v1645 = vld [vmem:[%s1629 + $0x78] sm:$0xff]
      %1646 = vmatprep.subr.mxu0 0.0
      %1647 = vmatpush1.msra.mxu0 %v1630
      %1648 = vmatprep.subr.mxu0 0.0
      %1649 = vmatpush1.msra.mxu0 %v1631
      %1650 = vmatprep.subr.mxu0 0.0
      %1651 = vmatpush1.msra.mxu0 %v1632
      %1652 = vmatprep.subr.mxu0 0.0
      %1653 = vmatpush1.msra.mxu0 %v1633
      %1654 = vmatprep.subr.mxu0 0.0
      %1655 = vmatpush1.msra.mxu0 %v1634
      %1656 = vmatprep.subr.mxu0 0.0
      %1657 = vmatpush1.msra.mxu0 %v1635
      %1658 = vmatprep.subr.mxu0 0.0
      %1659 = vmatpush1.msra.mxu0 %v1636
      %1660 = vmatprep.subr.mxu0 0.0
      %1661 = vmatpush1.msra.mxu0 %v1637
      %1662 = vmatprep.subr.mxu0 0.0
      %1663 = vmatpush1.msra.mxu0 %v1638
      %1664 = vmatprep.subr.mxu0 0.0
      %1665 = vmatpush1.msra.mxu0 %v1639
      %1666 = vmatprep.subr.mxu0 0.0
      %1667 = vmatpush1.msra.mxu0 %v1640
      %1668 = vmatprep.subr.mxu0 0.0
      %1669 = vmatpush1.msra.mxu0 %v1641
      %1670 = vmatprep.subr.mxu0 0.0
      %1671 = vmatpush1.msra.mxu0 %v1642
      %1672 = vmatprep.subr.mxu0 0.0
      %1673 = vmatpush1.msra.mxu0 %v1643
      %1674 = vmatprep.subr.mxu0 0.0
      %1675 = vmatpush1.msra.mxu0 %v1644
      %1676 = vmatprep.subr.mxu0 0.0
      %1677 = vmatpush1.msra.mxu0 %v1645
      %1678 = vmatprep.subr.mxu0 0.0
      %1679 = vmatpush1.msra.mxu0 0.0
      %1680 = vmatprep.subr.mxu0 0.0
      %1681 = vmatpush1.msra.mxu0 0.0
      %1682 = vmatprep.subr.mxu0 0.0
      %1683 = vmatpush1.msra.mxu0 0.0
      %1684 = vmatprep.subr.mxu0 0.0
      %1685 = vmatpush1.msra.mxu0 0.0
      %1686 = vmatprep.subr.mxu0 0.0
      %1687 = vmatpush1.msra.mxu0 0.0
      %1688 = vmatprep.subr.mxu0 0.0
      %1689 = vmatpush1.msra.mxu0 0.0
      %1690 = vmatprep.subr.mxu0 0.0
      %1691 = vmatpush1.msra.mxu0 0.0
      %1692 = vmatprep.subr.mxu0 0.0
      %1693 = vmatpush1.msra.mxu0 0.0
      %1694 = vmatprep.subr.mxu0 0.0
      %1695 = vmatpush1.msra.mxu0 0.0
      %1696 = vmatprep.subr.mxu0 0.0
      %1697 = vmatpush1.msra.mxu0 0.0
      %1698 = vmatprep.subr.mxu0 0.0
      %1699 = vmatpush1.msra.mxu0 0.0
      %1700 = vmatprep.subr.mxu0 0.0
      %1701 = vmatpush1.msra.mxu0 0.0
      %1702 = vmatprep.subr.mxu0 0.0
      %1703 = vmatpush1.msra.mxu0 0.0
      %1704 = vmatprep.subr.mxu0 0.0
      %1705 = vmatpush1.msra.mxu0 0.0
      %1706 = vmatprep.subr.mxu0 0.0
      %1707 = vmatpush1.msra.mxu0 0.0
      %1708 = vmatprep.subr.mxu0 0.0
      %1709 = vmatpush1.msra.mxu0 0.0
      %1710 = vmatprep.mubr.f32.mxu0 0.0
      %1711 = vmatmul.mubr.f32.gmra.mrb[0].mxu0 %v1627
      %v1712 = vpop.f32.mrb[0].mxu0
      %v1713 = vadd.f32 0.0, %v1712
      %v1714 = vpop.f32.mrb[0].mxu0
      %1715 = vmatprep.mubr.f32.mxu0 0.0
      %1716 = vmatmul.mubr.f32.gmra.mrb[0].mxu0 %v1628
      %v1717 = vpop.f32.mrb[0].mxu0
      %v1718 = vadd.f32 0.0, %v1717
      %v1719 = vpop.f32.mrb[0].mxu0
      %1720 = vdwg.mxu0
      %v1721 = vadd.f32 %v1619, %v1713
      %v1722 = vadd.f32 %v1624, %v1718
      %v1723 = vld [vmem:[#allocation3 + $0x4] sm:$0xff]
      %v1724 = vld [vmem:[#allocation3 + $0xc] sm:$0xff]
      %s1725 = scalar_lea.vmem %s8, 256
      %v1726 = vld [vmem:[%s1725] sm:$0xff]
      %v1727 = vld [vmem:[%s1725 + $0x8] sm:$0xff]
      %v1728 = vld [vmem:[%s1725 + $0x10] sm:$0xff]
      %v1729 = vld [vmem:[%s1725 + $0x18] sm:$0xff]
      %v1730 = vld [vmem:[%s1725 + $0x20] sm:$0xff]
      %v1731 = vld [vmem:[%s1725 + $0x28] sm:$0xff]
      %v1732 = vld [vmem:[%s1725 + $0x30] sm:$0xff]
      %v1733 = vld [vmem:[%s1725 + $0x38] sm:$0xff]
      %v1734 = vld [vmem:[%s1725 + $0x40] sm:$0xff]
      %v1735 = vld [vmem:[%s1725 + $0x48] sm:$0xff]
      %v1736 = vld [vmem:[%s1725 + $0x50] sm:$0xff]
      %v1737 = vld [vmem:[%s1725 + $0x58] sm:$0xff]
      %v1738 = vld [vmem:[%s1725 + $0x60] sm:$0xff]
      %v1739 = vld [vmem:[%s1725 + $0x68] sm:$0xff]
      %v1740 = vld [vmem:[%s1725 + $0x70] sm:$0xff]
      %v1741 = vld [vmem:[%s1725 + $0x78] sm:$0xff]
      %1742 = vmatprep.subr.mxu0 0.0
      %1743 = vmatpush1.msra.mxu0 %v1726
      %1744 = vmatprep.subr.mxu0 0.0
      %1745 = vmatpush1.msra.mxu0 %v1727
      %1746 = vmatprep.subr.mxu0 0.0
      %1747 = vmatpush1.msra.mxu0 %v1728
      %1748 = vmatprep.subr.mxu0 0.0
      %1749 = vmatpush1.msra.mxu0 %v1729
      %1750 = vmatprep.subr.mxu0 0.0
      %1751 = vmatpush1.msra.mxu0 %v1730
      %1752 = vmatprep.subr.mxu0 0.0
      %1753 = vmatpush1.msra.mxu0 %v1731
      %1754 = vmatprep.subr.mxu0 0.0
      %1755 = vmatpush1.msra.mxu0 %v1732
      %1756 = vmatprep.subr.mxu0 0.0
      %1757 = vmatpush1.msra.mxu0 %v1733
      %1758 = vmatprep.subr.mxu0 0.0
      %1759 = vmatpush1.msra.mxu0 %v1734
      %1760 = vmatprep.subr.mxu0 0.0
      %1761 = vmatpush1.msra.mxu0 %v1735
      %1762 = vmatprep.subr.mxu0 0.0
      %1763 = vmatpush1.msra.mxu0 %v1736
      %1764 = vmatprep.subr.mxu0 0.0
      %1765 = vmatpush1.msra.mxu0 %v1737
      %1766 = vmatprep.subr.mxu0 0.0
      %1767 = vmatpush1.msra.mxu0 %v1738
      %1768 = vmatprep.subr.mxu0 0.0
      %1769 = vmatpush1.msra.mxu0 %v1739
      %1770 = vmatprep.subr.mxu0 0.0
      %1771 = vmatpush1.msra.mxu0 %v1740
      %1772 = vmatprep.subr.mxu0 0.0
      %1773 = vmatpush1.msra.mxu0 %v1741
      %1774 = vmatprep.subr.mxu0 0.0
      %1775 = vmatpush1.msra.mxu0 0.0
      %1776 = vmatprep.subr.mxu0 0.0
      %1777 = vmatpush1.msra.mxu0 0.0
      %1778 = vmatprep.subr.mxu0 0.0
      %1779 = vmatpush1.msra.mxu0 0.0
      %1780 = vmatprep.subr.mxu0 0.0
      %1781 = vmatpush1.msra.mxu0 0.0
      %1782 = vmatprep.subr.mxu0 0.0
      %1783 = vmatpush1.msra.mxu0 0.0
      %1784 = vmatprep.subr.mxu0 0.0
      %1785 = vmatpush1.msra.mxu0 0.0
      %1786 = vmatprep.subr.mxu0 0.0
      %1787 = vmatpush1.msra.mxu0 0.0
      %1788 = vmatprep.subr.mxu0 0.0
      %1789 = vmatpush1.msra.mxu0 0.0
      %1790 = vmatprep.subr.mxu0 0.0
      %1791 = vmatpush1.msra.mxu0 0.0
      %1792 = vmatprep.subr.mxu0 0.0
      %1793 = vmatpush1.msra.mxu0 0.0
      %1794 = vmatprep.subr.mxu0 0.0
      %1795 = vmatpush1.msra.mxu0 0.0
      %1796 = vmatprep.subr.mxu0 0.0
      %1797 = vmatpush1.msra.mxu0 0.0
      %1798 = vmatprep.subr.mxu0 0.0
      %1799 = vmatpush1.msra.mxu0 0.0
      %1800 = vmatprep.subr.mxu0 0.0
      %1801 = vmatpush1.msra.mxu0 0.0
      %1802 = vmatprep.subr.mxu0 0.0
      %1803 = vmatpush1.msra.mxu0 0.0
      %1804 = vmatprep.subr.mxu0 0.0
      %1805 = vmatpush1.msra.mxu0 0.0
      %1806 = vmatprep.mubr.f32.mxu0 0.0
      %1807 = vmatmul.mubr.f32.gmra.mrb[0].mxu0 %v1723
      %v1808 = vpop.f32.mrb[0].mxu0
      %v1809 = vadd.f32 0.0, %v1808
      %v1810 = vpop.f32.mrb[0].mxu0
      %1811 = vmatprep.mubr.f32.mxu0 0.0
      %1812 = vmatmul.mubr.f32.gmra.mrb[0].mxu0 %v1724
      %v1813 = vpop.f32.mrb[0].mxu0
      %v1814 = vadd.f32 0.0, %v1813
      %v1815 = vpop.f32.mrb[0].mxu0
      %1816 = vdwg.mxu0
      %v1817 = vadd.f32 %v1721, %v1809
      %v1818 = vadd.f32 %v1722, %v1814
      %v1819 = vld [vmem:[%s7 + $0x2] sm:$0x1]
      %v1820 = vlaneseq
      %v1821 = vshrl.u32 %v1820, 7
      %v1822 = vsub.s32 0, %v1821
      %v1823 = vrot.slane %v1819, %v1822
      %v1824 = vadd.f32 %v1817, %v1823
      %v1825 = vadd.f32 %v1818, %v1823
      %v1826 = vld [vmem:[%s7] sm:$0x1]
      %v1827 = vlaneseq
      %v1828 = vshrl.u32 %v1827, 7
      %v1829 = vsub.s32 0, %v1828
      %v1830 = vrot.slane %v1826, %v1829
      %v1831 = vmul.f32 %v1824, %v1830
      %v1832 = vmul.f32 %v1825, %v1830
      %v1833 = vld [vmem:[%s7 + $0x1] sm:$0x1]
      %v1834 = vlaneseq
      %v1835 = vshrl.u32 %v1834, 7
      %v1836 = vsub.s32 0, %v1835
      %v1837 = vrot.slane %v1833, %v1836
      %v1838 = vadd.f32 %v1831, %v1837
      %v1839 = vadd.f32 %v1832, %v1837
      %v1840 = vmax.f32 %v1838, 0.0
      %v1841 = vmax.f32 %v1839, 0.0
      %1842 = vst [vmem:[#allocation5 + $0x1] sm:$0xff] %v1840
      %1843 = vst [vmem:[#allocation5 + $0x9] sm:$0xff] %v1841
      %v1844 = vld [vmem:[#allocation5] sm:$0xff]
      %v1845 = vld [vmem:[#allocation5 + $0x8] sm:$0xff]
      %v1846 = vld [vmem:[%s10] sm:$0xff]
      %v1847 = vld [vmem:[%s10 + $0x8] sm:$0xff]
      %v1848 = vld [vmem:[%s10 + $0x10] sm:$0xff]
      %v1849 = vld [vmem:[%s10 + $0x18] sm:$0xff]
      %v1850 = vld [vmem:[%s10 + $0x20] sm:$0xff]
      %v1851 = vld [vmem:[%s10 + $0x28] sm:$0xff]
      %v1852 = vld [vmem:[%s10 + $0x30] sm:$0xff]
      %v1853 = vld [vmem:[%s10 + $0x38] sm:$0xff]
      %v1854 = vld [vmem:[%s10 + $0x40] sm:$0xff]
      %v1855 = vld [vmem:[%s10 + $0x48] sm:$0xff]
      %v1856 = vld [vmem:[%s10 + $0x50] sm:$0xff]
      %v1857 = vld [vmem:[%s10 + $0x58] sm:$0xff]
      %v1858 = vld [vmem:[%s10 + $0x60] sm:$0xff]
      %v1859 = vld [vmem:[%s10 + $0x68] sm:$0xff]
      %v1860 = vld [vmem:[%s10 + $0x70] sm:$0xff]
      %v1861 = vld [vmem:[%s10 + $0x78] sm:$0xff]
      %v1862 = vld [vmem:[#allocation5 + $0x1] sm:$0xff]
      %v1863 = vld [vmem:[#allocation5 + $0x9] sm:$0xff]
      %s1864 = scalar_lea.vmem %s10, 128
      %v1865 = vld [vmem:[%s1864] sm:$0xff]
      %v1866 = vld [vmem:[%s1864 + $0x8] sm:$0xff]
      %v1867 = vld [vmem:[%s1864 + $0x10] sm:$0xff]
      %v1868 = vld [vmem:[%s1864 + $0x18] sm:$0xff]
      %v1869 = vld [vmem:[%s1864 + $0x20] sm:$0xff]
      %v1870 = vld [vmem:[%s1864 + $0x28] sm:$0xff]
      %v1871 = vld [vmem:[%s1864 + $0x30] sm:$0xff]
      %v1872 = vld [vmem:[%s1864 + $0x38] sm:$0xff]
      %v1873 = vld [vmem:[%s1864 + $0x40] sm:$0xff]
      %v1874 = vld [vmem:[%s1864 + $0x48] sm:$0xff]
      %v1875 = vld [vmem:[%s1864 + $0x50] sm:$0xff]
      %v1876 = vld [vmem:[%s1864 + $0x58] sm:$0xff]
      %v1877 = vld [vmem:[%s1864 + $0x60] sm:$0xff]
      %v1878 = vld [vmem:[%s1864 + $0x68] sm:$0xff]
      %v1879 = vld [vmem:[%s1864 + $0x70] sm:$0xff]
      %v1880 = vld [vmem:[%s1864 + $0x78] sm:$0xff]
      %1881 = vmatprep.subr.mxu0 0.0
      %1882 = vmatpush1.msra.mxu0 %v1865
      %1883 = vmatprep.subr.mxu0 0.0
      %1884 = vmatpush1.msra.mxu0 %v1866
      %1885 = vmatprep.subr.mxu0 0.0
      %1886 = vmatpush1.msra.mxu0 %v1867
      %1887 = vmatprep.subr.mxu0 0.0
      %1888 = vmatpush1.msra.mxu0 %v1868
      %1889 = vmatprep.subr.mxu0 0.0
      %1890 = vmatpush1.msra.mxu0 %v1869
      %1891 = vmatprep.subr.mxu0 0.0
      %1892 = vmatpush1.msra.mxu0 %v1870
      %1893 = vmatprep.subr.mxu0 0.0
      %1894 = vmatpush1.msra.mxu0 %v1871
      %1895 = vmatprep.subr.mxu0 0.0
      %1896 = vmatpush1.msra.mxu0 %v1872
      %1897 = vmatprep.subr.mxu0 0.0
      %1898 = vmatpush1.msra.mxu0 %v1873
      %1899 = vmatprep.subr.mxu0 0.0
      %1900 = vmatpush1.msra.mxu0 %v1874
      %1901 = vmatprep.subr.mxu0 0.0
      %1902 = vmatpush1.msra.mxu0 %v1875
      %1903 = vmatprep.subr.mxu0 0.0
      %1904 = vmatpush1.msra.mxu0 %v1876
      %1905 = vmatprep.subr.mxu0 0.0
      %1906 = vmatpush1.msra.mxu0 %v1877
      %1907 = vmatprep.subr.mxu0 0.0
      %1908 = vmatpush1.msra.mxu0 %v1878
      %1909 = vmatprep.subr.mxu0 0.0
      %1910 = vmatpush1.msra.mxu0 %v1879
      %1911 = vmatprep.subr.mxu0 0.0
      %1912 = vmatpush1.msra.mxu0 %v1880
      %1913 = vmatprep.subr.mxu0 0.0
      %1914 = vmatpush1.msra.mxu0 0.0
      %1915 = vmatprep.subr.mxu0 0.0
      %1916 = vmatpush1.msra.mxu0 0.0
      %1917 = vmatprep.subr.mxu0 0.0
      %1918 = vmatpush1.msra.mxu0 0.0
      %1919 = vmatprep.subr.mxu0 0.0
      %1920 = vmatpush1.msra.mxu0 0.0
      %1921 = vmatprep.subr.mxu0 0.0
      %1922 = vmatpush1.msra.mxu0 0.0
      %1923 = vmatprep.subr.mxu0 0.0
      %1924 = vmatpush1.msra.mxu0 0.0
      %1925 = vmatprep.subr.mxu0 0.0
      %1926 = vmatpush1.msra.mxu0 0.0
      %1927 = vmatprep.subr.mxu0 0.0
      %1928 = vmatpush1.msra.mxu0 0.0
      %1929 = vmatprep.subr.mxu0 0.0
      %1930 = vmatpush1.msra.mxu0 0.0
      %1931 = vmatprep.subr.mxu0 0.0
      %1932 = vmatpush1.msra.mxu0 0.0
      %1933 = vmatprep.subr.mxu0 0.0
      %1934 = vmatpush1.msra.mxu0 0.0
      %1935 = vmatprep.subr.mxu0 0.0
      %1936 = vmatpush1.msra.mxu0 0.0
      %1937 = vmatprep.subr.mxu0 0.0
      %1938 = vmatpush1.msra.mxu0 0.0
      %1939 = vmatprep.subr.mxu0 0.0
      %1940 = vmatpush1.msra.mxu0 0.0
      %1941 = vmatprep.subr.mxu0 0.0
      %1942 = vmatpush1.msra.mxu0 0.0
      %1943 = vmatprep.subr.mxu0 0.0
      %1944 = vmatpush1.msra.mxu0 0.0
      %1945 = vmatprep.mubr.f32.mxu0 0.0
      %1946 = vmatmul.mubr.f32.gmra.mrb[0].mxu0 %v1862
      %v1947 = vpop.f32.mrb[0].mxu0
      %v1948 = vadd.f32 0.0, %v1947
      %v1949 = vpop.f32.mrb[0].mxu0
      %1950 = vmatprep.mubr.f32.mxu0 0.0
      %1951 = vmatmul.mubr.f32.gmra.mrb[0].mxu0 %v1863
      %v1952 = vpop.f32.mrb[0].mxu0
      %v1953 = vadd.f32 0.0, %v1952
      %v1954 = vpop.f32.mrb[0].mxu0
      %1955 = vdwg.mxu0
      %1956 = vmatprep.subr.mxu0 0.0
      %1957 = vmatpush1.msra.mxu0 %v1846
      %1958 = vmatprep.subr.mxu0 0.0
      %1959 = vmatpush1.msra.mxu0 %v1847
      %1960 = vmatprep.subr.mxu0 0.0
      %1961 = vmatpush1.msra.mxu0 %v1848
      %1962 = vmatprep.subr.mxu0 0.0
      %1963 = vmatpush1.msra.mxu0 %v1849
      %1964 = vmatprep.subr.mxu0 0.0
      %1965 = vmatpush1.msra.mxu0 %v1850
      %1966 = vmatprep.subr.mxu0 0.0
      %1967 = vmatpush1.msra.mxu0 %v1851
      %1968 = vmatprep.subr.mxu0 0.0
      %1969 = vmatpush1.msra.mxu0 %v1852
      %1970 = vmatprep.subr.mxu0 0.0
      %1971 = vmatpush1.msra.mxu0 %v1853
      %1972 = vmatprep.subr.mxu0 0.0
      %1973 = vmatpush1.msra.mxu0 %v1854
      %1974 = vmatprep.subr.mxu0 0.0
      %1975 = vmatpush1.msra.mxu0 %v1855
      %1976 = vmatprep.subr.mxu0 0.0
      %1977 = vmatpush1.msra.mxu0 %v1856
      %1978 = vmatprep.subr.mxu0 0.0
      %1979 = vmatpush1.msra.mxu0 %v1857
      %1980 = vmatprep.subr.mxu0 0.0
      %1981 = vmatpush1.msra.mxu0 %v1858
      %1982 = vmatprep.subr.mxu0 0.0
      %1983 = vmatpush1.msra.mxu0 %v1859
      %1984 = vmatprep.subr.mxu0 0.0
      %1985 = vmatpush1.msra.mxu0 %v1860
      %1986 = vmatprep.subr.mxu0 0.0
      %1987 = vmatpush1.msra.mxu0 %v1861
      %1988 = vmatprep.subr.mxu0 0.0
      %1989 = vmatpush1.msra.mxu0 0.0
      %1990 = vmatprep.subr.mxu0 0.0
      %1991 = vmatpush1.msra.mxu0 0.0
      %1992 = vmatprep.subr.mxu0 0.0
      %1993 = vmatpush1.msra.mxu0 0.0
      %1994 = vmatprep.subr.mxu0 0.0
      %1995 = vmatpush1.msra.mxu0 0.0
      %1996 = vmatprep.subr.mxu0 0.0
      %1997 = vmatpush1.msra.mxu0 0.0
      %1998 = vmatprep.subr.mxu0 0.0
      %1999 = vmatpush1.msra.mxu0 0.0
      %2000 = vmatprep.subr.mxu0 0.0
      %2001 = vmatpush1.msra.mxu0 0.0
      %2002 = vmatprep.subr.mxu0 0.0
      %2003 = vmatpush1.msra.mxu0 0.0
      %2004 = vmatprep.subr.mxu0 0.0
      %2005 = vmatpush1.msra.mxu0 0.0
      %2006 = vmatprep.subr.mxu0 0.0
      %2007 = vmatpush1.msra.mxu0 0.0
      %2008 = vmatprep.subr.mxu0 0.0
      %2009 = vmatpush1.msra.mxu0 0.0
      %2010 = vmatprep.subr.mxu0 0.0
      %2011 = vmatpush1.msra.mxu0 0.0
      %2012 = vmatprep.subr.mxu0 0.0
      %2013 = vmatpush1.msra.mxu0 0.0
      %2014 = vmatprep.subr.mxu0 0.0
      %2015 = vmatpush1.msra.mxu0 0.0
      %2016 = vmatprep.subr.mxu0 0.0
      %2017 = vmatpush1.msra.mxu0 0.0
      %2018 = vmatprep.subr.mxu0 0.0
      %2019 = vmatpush1.msra.mxu0 0.0
      %2020 = vmatprep.mubr.f32.mxu0 0.0
      %2021 = vmatmul.mubr.f32.gmra.mrb[0].mxu0 %v1844
      %v2022 = vpop.f32.mrb[0].mxu0
      %v2023 = vadd.f32 %v1948, %v2022
      %v2024 = vpop.f32.mrb[0].mxu0
      %2025 = vmatprep.mubr.f32.mxu0 0.0
      %2026 = vmatmul.mubr.f32.gmra.mrb[0].mxu0 %v1845
      %v2027 = vpop.f32.mrb[0].mxu0
      %v2028 = vadd.f32 %v1953, %v2027
      %v2029 = vpop.f32.mrb[0].mxu0
      %2030 = vdwg.mxu0
      %v2031 = vld [vmem:[#allocation5 + $0x2] sm:$0xff]
      %v2032 = vld [vmem:[#allocation5 + $0xa] sm:$0xff]
      %s2033 = scalar_lea.vmem %s10, 256
      %v2034 = vld [vmem:[%s2033] sm:$0xff]
      %v2035 = vld [vmem:[%s2033 + $0x8] sm:$0xff]
      %v2036 = vld [vmem:[%s2033 + $0x10] sm:$0xff]
      %v2037 = vld [vmem:[%s2033 + $0x18] sm:$0xff]
      %v2038 = vld [vmem:[%s2033 + $0x20] sm:$0xff]
      %v2039 = vld [vmem:[%s2033 + $0x28] sm:$0xff]
      %v2040 = vld [vmem:[%s2033 + $0x30] sm:$0xff]
      %v2041 = vld [vmem:[%s2033 + $0x38] sm:$0xff]
      %v2042 = vld [vmem:[%s2033 + $0x40] sm:$0xff]
      %v2043 = vld [vmem:[%s2033 + $0x48] sm:$0xff]
      %v2044 = vld [vmem:[%s2033 + $0x50] sm:$0xff]
      %v2045 = vld [vmem:[%s2033 + $0x58] sm:$0xff]
      %v2046 = vld [vmem:[%s2033 + $0x60] sm:$0xff]
      %v2047 = vld [vmem:[%s2033 + $0x68] sm:$0xff]
      %v2048 = vld [vmem:[%s2033 + $0x70] sm:$0xff]
      %v2049 = vld [vmem:[%s2033 + $0x78] sm:$0xff]
      %2050 = vmatprep.subr.mxu0 0.0
      %2051 = vmatpush1.msra.mxu0 %v2034
      %2052 = vmatprep.subr.mxu0 0.0
      %2053 = vmatpush1.msra.mxu0 %v2035
      %2054 = vmatprep.subr.mxu0 0.0
      %2055 = vmatpush1.msra.mxu0 %v2036
      %2056 = vmatprep.subr.mxu0 0.0
      %2057 = vmatpush1.msra.mxu0 %v2037
      %2058 = vmatprep.subr.mxu0 0.0
      %2059 = vmatpush1.msra.mxu0 %v2038
      %2060 = vmatprep.subr.mxu0 0.0
      %2061 = vmatpush1.msra.mxu0 %v2039
      %2062 = vmatprep.subr.mxu0 0.0
      %2063 = vmatpush1.msra.mxu0 %v2040
      %2064 = vmatprep.subr.mxu0 0.0
      %2065 = vmatpush1.msra.mxu0 %v2041
      %2066 = vmatprep.subr.mxu0 0.0
      %2067 = vmatpush1.msra.mxu0 %v2042
      %2068 = vmatprep.subr.mxu0 0.0
      %2069 = vmatpush1.msra.mxu0 %v2043
      %2070 = vmatprep.subr.mxu0 0.0
      %2071 = vmatpush1.msra.mxu0 %v2044
      %2072 = vmatprep.subr.mxu0 0.0
      %2073 = vmatpush1.msra.mxu0 %v2045
      %2074 = vmatprep.subr.mxu0 0.0
      %2075 = vmatpush1.msra.mxu0 %v2046
      %2076 = vmatprep.subr.mxu0 0.0
      %2077 = vmatpush1.msra.mxu0 %v2047
      %2078 = vmatprep.subr.mxu0 0.0
      %2079 = vmatpush1.msra.mxu0 %v2048
      %2080 = vmatprep.subr.mxu0 0.0
      %2081 = vmatpush1.msra.mxu0 %v2049
      %2082 = vmatprep.subr.mxu0 0.0
      %2083 = vmatpush1.msra.mxu0 0.0
      %2084 = vmatprep.subr.mxu0 0.0
      %2085 = vmatpush1.msra.mxu0 0.0
      %2086 = vmatprep.subr.mxu0 0.0
      %2087 = vmatpush1.msra.mxu0 0.0
      %2088 = vmatprep.subr.mxu0 0.0
      %2089 = vmatpush1.msra.mxu0 0.0
      %2090 = vmatprep.subr.mxu0 0.0
      %2091 = vmatpush1.msra.mxu0 0.0
      %2092 = vmatprep.subr.mxu0 0.0
      %2093 = vmatpush1.msra.mxu0 0.0
      %2094 = vmatprep.subr.mxu0 0.0
      %2095 = vmatpush1.msra.mxu0 0.0
      %2096 = vmatprep.subr.mxu0 0.0
      %2097 = vmatpush1.msra.mxu0 0.0
      %2098 = vmatprep.subr.mxu0 0.0
      %2099 = vmatpush1.msra.mxu0 0.0
      %2100 = vmatprep.subr.mxu0 0.0
      %2101 = vmatpush1.msra.mxu0 0.0
      %2102 = vmatprep.subr.mxu0 0.0
      %2103 = vmatpush1.msra.mxu0 0.0
      %2104 = vmatprep.subr.mxu0 0.0
      %2105 = vmatpush1.msra.mxu0 0.0
      %2106 = vmatprep.subr.mxu0 0.0
      %2107 = vmatpush1.msra.mxu0 0.0
      %2108 = vmatprep.subr.mxu0 0.0
      %2109 = vmatpush1.msra.mxu0 0.0
      %2110 = vmatprep.subr.mxu0 0.0
      %2111 = vmatpush1.msra.mxu0 0.0
      %2112 = vmatprep.subr.mxu0 0.0
      %2113 = vmatpush1.msra.mxu0 0.0
      %2114 = vmatprep.mubr.f32.mxu0 0.0
      %2115 = vmatmul.mubr.f32.gmra.mrb[0].mxu0 %v2031
      %v2116 = vpop.f32.mrb[0].mxu0
      %v2117 = vadd.f32 0.0, %v2116
      %v2118 = vpop.f32.mrb[0].mxu0
      %2119 = vmatprep.mubr.f32.mxu0 0.0
      %2120 = vmatmul.mubr.f32.gmra.mrb[0].mxu0 %v2032
      %v2121 = vpop.f32.mrb[0].mxu0
      %v2122 = vadd.f32 0.0, %v2121
      %v2123 = vpop.f32.mrb[0].mxu0
      %2124 = vdwg.mxu0
      %v2125 = vadd.f32 %v2023, %v2117
      %v2126 = vadd.f32 %v2028, %v2122
      %v2127 = vld [vmem:[%s11] sm:$0x1]
      %v2128 = vlaneseq
      %v2129 = vshrl.u32 %v2128, 7
      %v2130 = vsub.s32 0, %v2129
      %v2131 = vrot.slane %v2127, %v2130
      %v2132 = vmul.f32 %v2125, %v2131
      %v2133 = vmul.f32 %v2126, %v2131
      %v2134 = vld [vmem:[%s11 + $0x1] sm:$0x1]
      %v2135 = vlaneseq
      %v2136 = vshrl.u32 %v2135, 7
      %v2137 = vsub.s32 0, %v2136
      %v2138 = vrot.slane %v2134, %v2137
      %v2139 = vadd.f32 %v2132, %v2138
      %v2140 = vadd.f32 %v2133, %v2138
      %v2141 = vmax.f32 %v2139, 0.0
      %v2142 = vmax.f32 %v2140, 0.0
      %2143 = vst [vmem:[#allocation4 + $0x2] sm:$0xff] %v2141
      %2144 = vst [vmem:[#allocation4 + $0xa] sm:$0xff] %v2142
      %v2145 = vld [vmem:[%s11 + $0x2] sm:$0x1]
      %v2146 = vlaneseq
      %v2147 = vshrl.u32 %v2146, 7
      %v2148 = vsub.s32 0, %v2147
      %v2149 = vrot.slane %v2145, %v2148
      %v2150 = vmul.f32 %v2125, %v2149
      %v2151 = vmul.f32 %v2126, %v2149
      %v2152 = vld [vmem:[%s11 + $0x3] sm:$0x1]
      %v2153 = vlaneseq
      %v2154 = vshrl.u32 %v2153, 7
      %v2155 = vsub.s32 0, %v2154
      %v2156 = vrot.slane %v2152, %v2155
      %v2157 = vadd.f32 %v2150, %v2156
      %v2158 = vadd.f32 %v2151, %v2156
      %v2159 = vmax.f32 %v2157, 0.0
      %v2160 = vmax.f32 %v2158, 0.0
      %v2161 = vld [vmem:[%s14] sm:$0xff]
      %v2162 = vld [vmem:[%s14 + $0x8] sm:$0xff]
      %v2163 = vld [vmem:[%s14 + $0x10] sm:$0xff]
      %v2164 = vld [vmem:[%s14 + $0x18] sm:$0xff]
      %v2165 = vld [vmem:[%s14 + $0x20] sm:$0xff]
      %v2166 = vld [vmem:[%s14 + $0x28] sm:$0xff]
      %v2167 = vld [vmem:[%s14 + $0x30] sm:$0xff]
      %v2168 = vld [vmem:[%s14 + $0x38] sm:$0xff]
      %v2169 = vld [vmem:[%s14 + $0x40] sm:$0xff]
      %v2170 = vld [vmem:[%s14 + $0x48] sm:$0xff]
      %v2171 = vld [vmem:[%s14 + $0x50] sm:$0xff]
      %v2172 = vld [vmem:[%s14 + $0x58] sm:$0xff]
      %v2173 = vld [vmem:[%s14 + $0x60] sm:$0xff]
      %v2174 = vld [vmem:[%s14 + $0x68] sm:$0xff]
      %v2175 = vld [vmem:[%s14 + $0x70] sm:$0xff]
      %v2176 = vld [vmem:[%s14 + $0x78] sm:$0xff]
      %v2177 = vld [vmem:[#allocation4] sm:$0xff]
      %v2178 = vld [vmem:[#allocation4 + $0x8] sm:$0xff]
      %v2179 = vld [vmem:[%s13] sm:$0xff]
      %v2180 = vld [vmem:[%s13 + $0x8] sm:$0xff]
      %v2181 = vld [vmem:[%s13 + $0x10] sm:$0xff]
      %v2182 = vld [vmem:[%s13 + $0x18] sm:$0xff]
      %v2183 = vld [vmem:[%s13 + $0x20] sm:$0xff]
      %v2184 = vld [vmem:[%s13 + $0x28] sm:$0xff]
      %v2185 = vld [vmem:[%s13 + $0x30] sm:$0xff]
      %v2186 = vld [vmem:[%s13 + $0x38] sm:$0xff]
      %v2187 = vld [vmem:[%s13 + $0x40] sm:$0xff]
      %v2188 = vld [vmem:[%s13 + $0x48] sm:$0xff]
      %v2189 = vld [vmem:[%s13 + $0x50] sm:$0xff]
      %v2190 = vld [vmem:[%s13 + $0x58] sm:$0xff]
      %v2191 = vld [vmem:[%s13 + $0x60] sm:$0xff]
      %v2192 = vld [vmem:[%s13 + $0x68] sm:$0xff]
      %v2193 = vld [vmem:[%s13 + $0x70] sm:$0xff]
      %v2194 = vld [vmem:[%s13 + $0x78] sm:$0xff]
      %2195 = vmatprep.subr.mxu0 0.0
      %2196 = vmatpush1.msra.mxu0 %v2179
      %2197 = vmatprep.subr.mxu0 0.0
      %2198 = vmatpush1.msra.mxu0 %v2180
      %2199 = vmatprep.subr.mxu0 0.0
      %2200 = vmatpush1.msra.mxu0 %v2181
      %2201 = vmatprep.subr.mxu0 0.0
      %2202 = vmatpush1.msra.mxu0 %v2182
      %2203 = vmatprep.subr.mxu0 0.0
      %2204 = vmatpush1.msra.mxu0 %v2183
      %2205 = vmatprep.subr.mxu0 0.0
      %2206 = vmatpush1.msra.mxu0 %v2184
      %2207 = vmatprep.subr.mxu0 0.0
      %2208 = vmatpush1.msra.mxu0 %v2185
      %2209 = vmatprep.subr.mxu0 0.0
      %2210 = vmatpush1.msra.mxu0 %v2186
      %2211 = vmatprep.subr.mxu0 0.0
      %2212 = vmatpush1.msra.mxu0 %v2187
      %2213 = vmatprep.subr.mxu0 0.0
      %2214 = vmatpush1.msra.mxu0 %v2188
      %2215 = vmatprep.subr.mxu0 0.0
      %2216 = vmatpush1.msra.mxu0 %v2189
      %2217 = vmatprep.subr.mxu0 0.0
      %2218 = vmatpush1.msra.mxu0 %v2190
      %2219 = vmatprep.subr.mxu0 0.0
      %2220 = vmatpush1.msra.mxu0 %v2191
      %2221 = vmatprep.subr.mxu0 0.0
      %2222 = vmatpush1.msra.mxu0 %v2192
      %2223 = vmatprep.subr.mxu0 0.0
      %2224 = vmatpush1.msra.mxu0 %v2193
      %2225 = vmatprep.subr.mxu0 0.0
      %2226 = vmatpush1.msra.mxu0 %v2194
      %2227 = vmatprep.subr.mxu0 0.0
      %2228 = vmatpush1.msra.mxu0 0.0
      %2229 = vmatprep.subr.mxu0 0.0
      %2230 = vmatpush1.msra.mxu0 0.0
      %2231 = vmatprep.subr.mxu0 0.0
      %2232 = vmatpush1.msra.mxu0 0.0
      %2233 = vmatprep.subr.mxu0 0.0
      %2234 = vmatpush1.msra.mxu0 0.0
      %2235 = vmatprep.subr.mxu0 0.0
      %2236 = vmatpush1.msra.mxu0 0.0
      %2237 = vmatprep.subr.mxu0 0.0
      %2238 = vmatpush1.msra.mxu0 0.0
      %2239 = vmatprep.subr.mxu0 0.0
      %2240 = vmatpush1.msra.mxu0 0.0
      %2241 = vmatprep.subr.mxu0 0.0
      %2242 = vmatpush1.msra.mxu0 0.0
      %2243 = vmatprep.subr.mxu0 0.0
      %2244 = vmatpush1.msra.mxu0 0.0
      %2245 = vmatprep.subr.mxu0 0.0
      %2246 = vmatpush1.msra.mxu0 0.0
      %2247 = vmatprep.subr.mxu0 0.0
      %2248 = vmatpush1.msra.mxu0 0.0
      %2249 = vmatprep.subr.mxu0 0.0
      %2250 = vmatpush1.msra.mxu0 0.0
      %2251 = vmatprep.subr.mxu0 0.0
      %2252 = vmatpush1.msra.mxu0 0.0
      %2253 = vmatprep.subr.mxu0 0.0
      %2254 = vmatpush1.msra.mxu0 0.0
      %2255 = vmatprep.subr.mxu0 0.0
      %2256 = vmatpush1.msra.mxu0 0.0
      %2257 = vmatprep.subr.mxu0 0.0
      %2258 = vmatpush1.msra.mxu0 0.0
      %2259 = vmatprep.mubr.f32.mxu0 0.0
      %2260 = vmatmul.mubr.f32.gmra.mrb[0].mxu0 %v2177
      %v2261 = vpop.f32.mrb[0].mxu0
      %v2262 = vadd.f32 0.0, %v2261
      %v2263 = vpop.f32.mrb[0].mxu0
      %2264 = vmatprep.mubr.f32.mxu0 0.0
      %2265 = vmatmul.mubr.f32.gmra.mrb[0].mxu0 %v2178
      %v2266 = vpop.f32.mrb[0].mxu0
      %v2267 = vadd.f32 0.0, %v2266
      %v2268 = vpop.f32.mrb[0].mxu0
      %2269 = vdwg.mxu0
      %2270 = vmatprep.subr.mxu0 0.0
      %2271 = vmatpush1.msra.mxu0 %v2161
      %2272 = vmatprep.subr.mxu0 0.0
      %2273 = vmatpush1.msra.mxu0 %v2162
      %2274 = vmatprep.subr.mxu0 0.0
      %2275 = vmatpush1.msra.mxu0 %v2163
      %2276 = vmatprep.subr.mxu0 0.0
      %2277 = vmatpush1.msra.mxu0 %v2164
      %2278 = vmatprep.subr.mxu0 0.0
      %2279 = vmatpush1.msra.mxu0 %v2165
      %2280 = vmatprep.subr.mxu0 0.0
      %2281 = vmatpush1.msra.mxu0 %v2166
      %2282 = vmatprep.subr.mxu0 0.0
      %2283 = vmatpush1.msra.mxu0 %v2167
      %2284 = vmatprep.subr.mxu0 0.0
      %2285 = vmatpush1.msra.mxu0 %v2168
      %2286 = vmatprep.subr.mxu0 0.0
      %2287 = vmatpush1.msra.mxu0 %v2169
      %2288 = vmatprep.subr.mxu0 0.0
      %2289 = vmatpush1.msra.mxu0 %v2170
      %2290 = vmatprep.subr.mxu0 0.0
      %2291 = vmatpush1.msra.mxu0 %v2171
      %2292 = vmatprep.subr.mxu0 0.0
      %2293 = vmatpush1.msra.mxu0 %v2172
      %2294 = vmatprep.subr.mxu0 0.0
      %2295 = vmatpush1.msra.mxu0 %v2173
      %2296 = vmatprep.subr.mxu0 0.0
      %2297 = vmatpush1.msra.mxu0 %v2174
      %2298 = vmatprep.subr.mxu0 0.0
      %2299 = vmatpush1.msra.mxu0 %v2175
      %2300 = vmatprep.subr.mxu0 0.0
      %2301 = vmatpush1.msra.mxu0 %v2176
      %2302 = vmatprep.subr.mxu0 0.0
      %2303 = vmatpush1.msra.mxu0 0.0
      %2304 = vmatprep.subr.mxu0 0.0
      %2305 = vmatpush1.msra.mxu0 0.0
      %2306 = vmatprep.subr.mxu0 0.0
      %2307 = vmatpush1.msra.mxu0 0.0
      %2308 = vmatprep.subr.mxu0 0.0
      %2309 = vmatpush1.msra.mxu0 0.0
      %2310 = vmatprep.subr.mxu0 0.0
      %2311 = vmatpush1.msra.mxu0 0.0
      %2312 = vmatprep.subr.mxu0 0.0
      %2313 = vmatpush1.msra.mxu0 0.0
      %2314 = vmatprep.subr.mxu0 0.0
      %2315 = vmatpush1.msra.mxu0 0.0
      %2316 = vmatprep.subr.mxu0 0.0
      %2317 = vmatpush1.msra.mxu0 0.0
      %2318 = vmatprep.subr.mxu0 0.0
      %2319 = vmatpush1.msra.mxu0 0.0
      %2320 = vmatprep.subr.mxu0 0.0
      %2321 = vmatpush1.msra.mxu0 0.0
      %2322 = vmatprep.subr.mxu0 0.0
      %2323 = vmatpush1.msra.mxu0 0.0
      %2324 = vmatprep.subr.mxu0 0.0
      %2325 = vmatpush1.msra.mxu0 0.0
      %2326 = vmatprep.subr.mxu0 0.0
      %2327 = vmatpush1.msra.mxu0 0.0
      %2328 = vmatprep.subr.mxu0 0.0
      %2329 = vmatpush1.msra.mxu0 0.0
      %2330 = vmatprep.subr.mxu0 0.0
      %2331 = vmatpush1.msra.mxu0 0.0
      %2332 = vmatprep.subr.mxu0 0.0
      %2333 = vmatpush1.msra.mxu0 0.0
      %2334 = vmatprep.mubr.f32.mxu0 0.0
      %2335 = vmatmul.mubr.f32.gmra.mrb[0].mxu0 %v2159
      %v2336 = vpop.f32.mrb[0].mxu0
      %v2337 = vadd.f32 %v2262, %v2336
      %v2338 = vpop.f32.mrb[0].mxu0
      %2339 = vmatprep.mubr.f32.mxu0 0.0
      %2340 = vmatmul.mubr.f32.gmra.mrb[0].mxu0 %v2160
      %v2341 = vpop.f32.mrb[0].mxu0
      %v2342 = vadd.f32 %v2267, %v2341
      %v2343 = vpop.f32.mrb[0].mxu0
      %2344 = vdwg.mxu0
      %v2345 = vld [vmem:[#allocation4 + $0x2] sm:$0xff]
      %v2346 = vld [vmem:[#allocation4 + $0xa] sm:$0xff]
      %s2347 = scalar_lea.vmem %s13, 128
      %v2348 = vld [vmem:[%s2347] sm:$0xff]
      %v2349 = vld [vmem:[%s2347 + $0x8] sm:$0xff]
      %v2350 = vld [vmem:[%s2347 + $0x10] sm:$0xff]
      %v2351 = vld [vmem:[%s2347 + $0x18] sm:$0xff]
      %v2352 = vld [vmem:[%s2347 + $0x20] sm:$0xff]
      %v2353 = vld [vmem:[%s2347 + $0x28] sm:$0xff]
      %v2354 = vld [vmem:[%s2347 + $0x30] sm:$0xff]
      %v2355 = vld [vmem:[%s2347 + $0x38] sm:$0xff]
      %v2356 = vld [vmem:[%s2347 + $0x40] sm:$0xff]
      %v2357 = vld [vmem:[%s2347 + $0x48] sm:$0xff]
      %v2358 = vld [vmem:[%s2347 + $0x50] sm:$0xff]
      %v2359 = vld [vmem:[%s2347 + $0x58] sm:$0xff]
      %v2360 = vld [vmem:[%s2347 + $0x60] sm:$0xff]
      %v2361 = vld [vmem:[%s2347 + $0x68] sm:$0xff]
      %v2362 = vld [vmem:[%s2347 + $0x70] sm:$0xff]
      %v2363 = vld [vmem:[%s2347 + $0x78] sm:$0xff]
      %2364 = vmatprep.subr.mxu0 0.0
      %2365 = vmatpush1.msra.mxu0 %v2348
      %2366 = vmatprep.subr.mxu0 0.0
      %2367 = vmatpush1.msra.mxu0 %v2349
      %2368 = vmatprep.subr.mxu0 0.0
      %2369 = vmatpush1.msra.mxu0 %v2350
      %2370 = vmatprep.subr.mxu0 0.0
      %2371 = vmatpush1.msra.mxu0 %v2351
      %2372 = vmatprep.subr.mxu0 0.0
      %2373 = vmatpush1.msra.mxu0 %v2352
      %2374 = vmatprep.subr.mxu0 0.0
      %2375 = vmatpush1.msra.mxu0 %v2353
      %2376 = vmatprep.subr.mxu0 0.0
      %2377 = vmatpush1.msra.mxu0 %v2354
      %2378 = vmatprep.subr.mxu0 0.0
      %2379 = vmatpush1.msra.mxu0 %v2355
      %2380 = vmatprep.subr.mxu0 0.0
      %2381 = vmatpush1.msra.mxu0 %v2356
      %2382 = vmatprep.subr.mxu0 0.0
      %2383 = vmatpush1.msra.mxu0 %v2357
      %2384 = vmatprep.subr.mxu0 0.0
      %2385 = vmatpush1.msra.mxu0 %v2358
      %2386 = vmatprep.subr.mxu0 0.0
      %2387 = vmatpush1.msra.mxu0 %v2359
      %2388 = vmatprep.subr.mxu0 0.0
      %2389 = vmatpush1.msra.mxu0 %v2360
      %2390 = vmatprep.subr.mxu0 0.0
      %2391 = vmatpush1.msra.mxu0 %v2361
      %2392 = vmatprep.subr.mxu0 0.0
      %2393 = vmatpush1.msra.mxu0 %v2362
      %2394 = vmatprep.subr.mxu0 0.0
      %2395 = vmatpush1.msra.mxu0 %v2363
      %2396 = vmatprep.subr.mxu0 0.0
      %2397 = vmatpush1.msra.mxu0 0.0
      %2398 = vmatprep.subr.mxu0 0.0
      %2399 = vmatpush1.msra.mxu0 0.0
      %2400 = vmatprep.subr.mxu0 0.0
      %2401 = vmatpush1.msra.mxu0 0.0
      %2402 = vmatprep.subr.mxu0 0.0
      %2403 = vmatpush1.msra.mxu0 0.0
      %2404 = vmatprep.subr.mxu0 0.0
      %2405 = vmatpush1.msra.mxu0 0.0
      %2406 = vmatprep.subr.mxu0 0.0
      %2407 = vmatpush1.msra.mxu0 0.0
      %2408 = vmatprep.subr.mxu0 0.0
      %2409 = vmatpush1.msra.mxu0 0.0
      %2410 = vmatprep.subr.mxu0 0.0
      %2411 = vmatpush1.msra.mxu0 0.0
      %2412 = vmatprep.subr.mxu0 0.0
      %2413 = vmatpush1.msra.mxu0 0.0
      %2414 = vmatprep.subr.mxu0 0.0
      %2415 = vmatpush1.msra.mxu0 0.0
      %2416 = vmatprep.subr.mxu0 0.0
      %2417 = vmatpush1.msra.mxu0 0.0
      %2418 = vmatprep.subr.mxu0 0.0
      %2419 = vmatpush1.msra.mxu0 0.0
      %2420 = vmatprep.subr.mxu0 0.0
      %2421 = vmatpush1.msra.mxu0 0.0
      %2422 = vmatprep.subr.mxu0 0.0
      %2423 = vmatpush1.msra.mxu0 0.0
      %2424 = vmatprep.subr.mxu0 0.0
      %2425 = vmatpush1.msra.mxu0 0.0
      %2426 = vmatprep.subr.mxu0 0.0
      %2427 = vmatpush1.msra.mxu0 0.0
      %2428 = vmatprep.mubr.f32.mxu0 0.0
      %2429 = vmatmul.mubr.f32.gmra.mrb[0].mxu0 %v2345
      %v2430 = vpop.f32.mrb[0].mxu0
      %v2431 = vadd.f32 0.0, %v2430
      %v2432 = vpop.f32.mrb[0].mxu0
      %2433 = vmatprep.mubr.f32.mxu0 0.0
      %2434 = vmatmul.mubr.f32.gmra.mrb[0].mxu0 %v2346
      %v2435 = vpop.f32.mrb[0].mxu0
      %v2436 = vadd.f32 0.0, %v2435
      %v2437 = vpop.f32.mrb[0].mxu0
      %2438 = vdwg.mxu0
      %v2439 = vadd.f32 %v2337, %v2431
      %v2440 = vadd.f32 %v2342, %v2436
      %v2441 = vld [vmem:[#allocation4 + $0x4] sm:$0xff]
      %v2442 = vld [vmem:[#allocation4 + $0xc] sm:$0xff]
      %s2443 = scalar_lea.vmem %s13, 256
      %v2444 = vld [vmem:[%s2443] sm:$0xff]
      %v2445 = vld [vmem:[%s2443 + $0x8] sm:$0xff]
      %v2446 = vld [vmem:[%s2443 + $0x10] sm:$0xff]
      %v2447 = vld [vmem:[%s2443 + $0x18] sm:$0xff]
      %v2448 = vld [vmem:[%s2443 + $0x20] sm:$0xff]
      %v2449 = vld [vmem:[%s2443 + $0x28] sm:$0xff]
      %v2450 = vld [vmem:[%s2443 + $0x30] sm:$0xff]
      %v2451 = vld [vmem:[%s2443 + $0x38] sm:$0xff]
      %v2452 = vld [vmem:[%s2443 + $0x40] sm:$0xff]
      %v2453 = vld [vmem:[%s2443 + $0x48] sm:$0xff]
      %v2454 = vld [vmem:[%s2443 + $0x50] sm:$0xff]
      %v2455 = vld [vmem:[%s2443 + $0x58] sm:$0xff]
      %v2456 = vld [vmem:[%s2443 + $0x60] sm:$0xff]
      %v2457 = vld [vmem:[%s2443 + $0x68] sm:$0xff]
      %v2458 = vld [vmem:[%s2443 + $0x70] sm:$0xff]
      %v2459 = vld [vmem:[%s2443 + $0x78] sm:$0xff]
      %2460 = vmatprep.subr.mxu0 0.0
      %2461 = vmatpush1.msra.mxu0 %v2444
      %2462 = vmatprep.subr.mxu0 0.0
      %2463 = vmatpush1.msra.mxu0 %v2445
      %2464 = vmatprep.subr.mxu0 0.0
      %2465 = vmatpush1.msra.mxu0 %v2446
      %2466 = vmatprep.subr.mxu0 0.0
      %2467 = vmatpush1.msra.mxu0 %v2447
      %2468 = vmatprep.subr.mxu0 0.0
      %2469 = vmatpush1.msra.mxu0 %v2448
      %2470 = vmatprep.subr.mxu0 0.0
      %2471 = vmatpush1.msra.mxu0 %v2449
      %2472 = vmatprep.subr.mxu0 0.0
      %2473 = vmatpush1.msra.mxu0 %v2450
      %2474 = vmatprep.subr.mxu0 0.0
      %2475 = vmatpush1.msra.mxu0 %v2451
      %2476 = vmatprep.subr.mxu0 0.0
      %2477 = vmatpush1.msra.mxu0 %v2452
      %2478 = vmatprep.subr.mxu0 0.0
      %2479 = vmatpush1.msra.mxu0 %v2453
      %2480 = vmatprep.subr.mxu0 0.0
      %2481 = vmatpush1.msra.mxu0 %v2454
      %2482 = vmatprep.subr.mxu0 0.0
      %2483 = vmatpush1.msra.mxu0 %v2455
      %2484 = vmatprep.subr.mxu0 0.0
      %2485 = vmatpush1.msra.mxu0 %v2456
      %2486 = vmatprep.subr.mxu0 0.0
      %2487 = vmatpush1.msra.mxu0 %v2457
      %2488 = vmatprep.subr.mxu0 0.0
      %2489 = vmatpush1.msra.mxu0 %v2458
      %2490 = vmatprep.subr.mxu0 0.0
      %2491 = vmatpush1.msra.mxu0 %v2459
      %2492 = vmatprep.subr.mxu0 0.0
      %2493 = vmatpush1.msra.mxu0 0.0
      %2494 = vmatprep.subr.mxu0 0.0
      %2495 = vmatpush1.msra.mxu0 0.0
      %2496 = vmatprep.subr.mxu0 0.0
      %2497 = vmatpush1.msra.mxu0 0.0
      %2498 = vmatprep.subr.mxu0 0.0
      %2499 = vmatpush1.msra.mxu0 0.0
      %2500 = vmatprep.subr.mxu0 0.0
      %2501 = vmatpush1.msra.mxu0 0.0
      %2502 = vmatprep.subr.mxu0 0.0
      %2503 = vmatpush1.msra.mxu0 0.0
      %2504 = vmatprep.subr.mxu0 0.0
      %2505 = vmatpush1.msra.mxu0 0.0
      %2506 = vmatprep.subr.mxu0 0.0
      %2507 = vmatpush1.msra.mxu0 0.0
      %2508 = vmatprep.subr.mxu0 0.0
      %2509 = vmatpush1.msra.mxu0 0.0
      %2510 = vmatprep.subr.mxu0 0.0
      %2511 = vmatpush1.msra.mxu0 0.0
      %2512 = vmatprep.subr.mxu0 0.0
      %2513 = vmatpush1.msra.mxu0 0.0
      %2514 = vmatprep.subr.mxu0 0.0
      %2515 = vmatpush1.msra.mxu0 0.0
      %2516 = vmatprep.subr.mxu0 0.0
      %2517 = vmatpush1.msra.mxu0 0.0
      %2518 = vmatprep.subr.mxu0 0.0
      %2519 = vmatpush1.msra.mxu0 0.0
      %2520 = vmatprep.subr.mxu0 0.0
      %2521 = vmatpush1.msra.mxu0 0.0
      %2522 = vmatprep.subr.mxu0 0.0
      %2523 = vmatpush1.msra.mxu0 0.0
      %2524 = vmatprep.mubr.f32.mxu0 0.0
      %2525 = vmatmul.mubr.f32.gmra.mrb[0].mxu0 %v2441
      %v2526 = vpop.f32.mrb[0].mxu0
      %v2527 = vadd.f32 0.0, %v2526
      %v2528 = vpop.f32.mrb[0].mxu0
      %2529 = vmatprep.mubr.f32.mxu0 0.0
      %2530 = vmatmul.mubr.f32.gmra.mrb[0].mxu0 %v2442
      %v2531 = vpop.f32.mrb[0].mxu0
      %v2532 = vadd.f32 0.0, %v2531
      %v2533 = vpop.f32.mrb[0].mxu0
      %2534 = vdwg.mxu0
      %v2535 = vadd.f32 %v2439, %v2527
      %v2536 = vadd.f32 %v2440, %v2532
      %v2537 = vld [vmem:[%s12 + $0x2] sm:$0x1]
      %v2538 = vlaneseq
      %v2539 = vshrl.u32 %v2538, 7
      %v2540 = vsub.s32 0, %v2539
      %v2541 = vrot.slane %v2537, %v2540
      %v2542 = vadd.f32 %v2535, %v2541
      %v2543 = vadd.f32 %v2536, %v2541
      %v2544 = vld [vmem:[%s12] sm:$0x1]
      %v2545 = vlaneseq
      %v2546 = vshrl.u32 %v2545, 7
      %v2547 = vsub.s32 0, %v2546
      %v2548 = vrot.slane %v2544, %v2547
      %v2549 = vmul.f32 %v2542, %v2548
      %v2550 = vmul.f32 %v2543, %v2548
      %v2551 = vld [vmem:[%s12 + $0x1] sm:$0x1]
      %v2552 = vlaneseq
      %v2553 = vshrl.u32 %v2552, 7
      %v2554 = vsub.s32 0, %v2553
      %v2555 = vrot.slane %v2551, %v2554
      %v2556 = vadd.f32 %v2549, %v2555
      %v2557 = vadd.f32 %v2550, %v2555
      %v2558 = vmax.f32 %v2556, 0.0
      %v2559 = vmax.f32 %v2557, 0.0
      %2560 = vst [vmem:[#allocation5 + $0x1] sm:$0xff] %v2558
      %2561 = vst [vmem:[#allocation5 + $0x9] sm:$0xff] %v2559
      %v2562 = vld [vmem:[#allocation5] sm:$0xff]
      %v2563 = vld [vmem:[#allocation5 + $0x8] sm:$0xff]
      %v2564 = vld [vmem:[%s15] sm:$0xff]
      %v2565 = vld [vmem:[%s15 + $0x8] sm:$0xff]
      %v2566 = vld [vmem:[%s15 + $0x10] sm:$0xff]
      %v2567 = vld [vmem:[%s15 + $0x18] sm:$0xff]
      %v2568 = vld [vmem:[%s15 + $0x20] sm:$0xff]
      %v2569 = vld [vmem:[%s15 + $0x28] sm:$0xff]
      %v2570 = vld [vmem:[%s15 + $0x30] sm:$0xff]
      %v2571 = vld [vmem:[%s15 + $0x38] sm:$0xff]
      %v2572 = vld [vmem:[%s15 + $0x40] sm:$0xff]
      %v2573 = vld [vmem:[%s15 + $0x48] sm:$0xff]
      %v2574 = vld [vmem:[%s15 + $0x50] sm:$0xff]
      %v2575 = vld [vmem:[%s15 + $0x58] sm:$0xff]
      %v2576 = vld [vmem:[%s15 + $0x60] sm:$0xff]
      %v2577 = vld [vmem:[%s15 + $0x68] sm:$0xff]
      %v2578 = vld [vmem:[%s15 + $0x70] sm:$0xff]
      %v2579 = vld [vmem:[%s15 + $0x78] sm:$0xff]
      %v2580 = vld [vmem:[#allocation5 + $0x1] sm:$0xff]
      %v2581 = vld [vmem:[#allocation5 + $0x9] sm:$0xff]
      %s2582 = scalar_lea.vmem %s15, 128
      %v2583 = vld [vmem:[%s2582] sm:$0xff]
      %v2584 = vld [vmem:[%s2582 + $0x8] sm:$0xff]
      %v2585 = vld [vmem:[%s2582 + $0x10] sm:$0xff]
      %v2586 = vld [vmem:[%s2582 + $0x18] sm:$0xff]
      %v2587 = vld [vmem:[%s2582 + $0x20] sm:$0xff]
      %v2588 = vld [vmem:[%s2582 + $0x28] sm:$0xff]
      %v2589 = vld [vmem:[%s2582 + $0x30] sm:$0xff]
      %v2590 = vld [vmem:[%s2582 + $0x38] sm:$0xff]
      %v2591 = vld [vmem:[%s2582 + $0x40] sm:$0xff]
      %v2592 = vld [vmem:[%s2582 + $0x48] sm:$0xff]
      %v2593 = vld [vmem:[%s2582 + $0x50] sm:$0xff]
      %v2594 = vld [vmem:[%s2582 + $0x58] sm:$0xff]
      %v2595 = vld [vmem:[%s2582 + $0x60] sm:$0xff]
      %v2596 = vld [vmem:[%s2582 + $0x68] sm:$0xff]
      %v2597 = vld [vmem:[%s2582 + $0x70] sm:$0xff]
      %v2598 = vld [vmem:[%s2582 + $0x78] sm:$0xff]
      %2599 = vmatprep.subr.mxu0 0.0
      %2600 = vmatpush1.msra.mxu0 %v2583
      %2601 = vmatprep.subr.mxu0 0.0
      %2602 = vmatpush1.msra.mxu0 %v2584
      %2603 = vmatprep.subr.mxu0 0.0
      %2604 = vmatpush1.msra.mxu0 %v2585
      %2605 = vmatprep.subr.mxu0 0.0
      %2606 = vmatpush1.msra.mxu0 %v2586
      %2607 = vmatprep.subr.mxu0 0.0
      %2608 = vmatpush1.msra.mxu0 %v2587
      %2609 = vmatprep.subr.mxu0 0.0
      %2610 = vmatpush1.msra.mxu0 %v2588
      %2611 = vmatprep.subr.mxu0 0.0
      %2612 = vmatpush1.msra.mxu0 %v2589
      %2613 = vmatprep.subr.mxu0 0.0
      %2614 = vmatpush1.msra.mxu0 %v2590
      %2615 = vmatprep.subr.mxu0 0.0
      %2616 = vmatpush1.msra.mxu0 %v2591
      %2617 = vmatprep.subr.mxu0 0.0
      %2618 = vmatpush1.msra.mxu0 %v2592
      %2619 = vmatprep.subr.mxu0 0.0
      %2620 = vmatpush1.msra.mxu0 %v2593
      %2621 = vmatprep.subr.mxu0 0.0
      %2622 = vmatpush1.msra.mxu0 %v2594
      %2623 = vmatprep.subr.mxu0 0.0
      %2624 = vmatpush1.msra.mxu0 %v2595
      %2625 = vmatprep.subr.mxu0 0.0
      %2626 = vmatpush1.msra.mxu0 %v2596
      %2627 = vmatprep.subr.mxu0 0.0
      %2628 = vmatpush1.msra.mxu0 %v2597
      %2629 = vmatprep.subr.mxu0 0.0
      %2630 = vmatpush1.msra.mxu0 %v2598
      %2631 = vmatprep.subr.mxu0 0.0
      %2632 = vmatpush1.msra.mxu0 0.0
      %2633 = vmatprep.subr.mxu0 0.0
      %2634 = vmatpush1.msra.mxu0 0.0
      %2635 = vmatprep.subr.mxu0 0.0
      %2636 = vmatpush1.msra.mxu0 0.0
      %2637 = vmatprep.subr.mxu0 0.0
      %2638 = vmatpush1.msra.mxu0 0.0
      %2639 = vmatprep.subr.mxu0 0.0
      %2640 = vmatpush1.msra.mxu0 0.0
      %2641 = vmatprep.subr.mxu0 0.0
      %2642 = vmatpush1.msra.mxu0 0.0
      %2643 = vmatprep.subr.mxu0 0.0
      %2644 = vmatpush1.msra.mxu0 0.0
      %2645 = vmatprep.subr.mxu0 0.0
      %2646 = vmatpush1.msra.mxu0 0.0
      %2647 = vmatprep.subr.mxu0 0.0
      %2648 = vmatpush1.msra.mxu0 0.0
      %2649 = vmatprep.subr.mxu0 0.0
      %2650 = vmatpush1.msra.mxu0 0.0
      %2651 = vmatprep.subr.mxu0 0.0
      %2652 = vmatpush1.msra.mxu0 0.0
      %2653 = vmatprep.subr.mxu0 0.0
      %2654 = vmatpush1.msra.mxu0 0.0
      %2655 = vmatprep.subr.mxu0 0.0
      %2656 = vmatpush1.msra.mxu0 0.0
      %2657 = vmatprep.subr.mxu0 0.0
      %2658 = vmatpush1.msra.mxu0 0.0
      %2659 = vmatprep.subr.mxu0 0.0
      %2660 = vmatpush1.msra.mxu0 0.0
      %2661 = vmatprep.subr.mxu0 0.0
      %2662 = vmatpush1.msra.mxu0 0.0
      %2663 = vmatprep.mubr.f32.mxu0 0.0
      %2664 = vmatmul.mubr.f32.gmra.mrb[0].mxu0 %v2580
      %v2665 = vpop.f32.mrb[0].mxu0
      %v2666 = vadd.f32 0.0, %v2665
      %v2667 = vpop.f32.mrb[0].mxu0
      %2668 = vmatprep.mubr.f32.mxu0 0.0
      %2669 = vmatmul.mubr.f32.gmra.mrb[0].mxu0 %v2581
      %v2670 = vpop.f32.mrb[0].mxu0
      %v2671 = vadd.f32 0.0, %v2670
      %v2672 = vpop.f32.mrb[0].mxu0
      %2673 = vdwg.mxu0
      %2674 = vmatprep.subr.mxu0 0.0
      %2675 = vmatpush1.msra.mxu0 %v2564
      %2676 = vmatprep.subr.mxu0 0.0
      %2677 = vmatpush1.msra.mxu0 %v2565
      %2678 = vmatprep.subr.mxu0 0.0
      %2679 = vmatpush1.msra.mxu0 %v2566
      %2680 = vmatprep.subr.mxu0 0.0
      %2681 = vmatpush1.msra.mxu0 %v2567
      %2682 = vmatprep.subr.mxu0 0.0
      %2683 = vmatpush1.msra.mxu0 %v2568
      %2684 = vmatprep.subr.mxu0 0.0
      %2685 = vmatpush1.msra.mxu0 %v2569
      %2686 = vmatprep.subr.mxu0 0.0
      %2687 = vmatpush1.msra.mxu0 %v2570
      %2688 = vmatprep.subr.mxu0 0.0
      %2689 = vmatpush1.msra.mxu0 %v2571
      %2690 = vmatprep.subr.mxu0 0.0
      %2691 = vmatpush1.msra.mxu0 %v2572
      %2692 = vmatprep.subr.mxu0 0.0
      %2693 = vmatpush1.msra.mxu0 %v2573
      %2694 = vmatprep.subr.mxu0 0.0
      %2695 = vmatpush1.msra.mxu0 %v2574
      %2696 = vmatprep.subr.mxu0 0.0
      %2697 = vmatpush1.msra.mxu0 %v2575
      %2698 = vmatprep.subr.mxu0 0.0
      %2699 = vmatpush1.msra.mxu0 %v2576
      %2700 = vmatprep.subr.mxu0 0.0
      %2701 = vmatpush1.msra.mxu0 %v2577
      %2702 = vmatprep.subr.mxu0 0.0
      %2703 = vmatpush1.msra.mxu0 %v2578
      %2704 = vmatprep.subr.mxu0 0.0
      %2705 = vmatpush1.msra.mxu0 %v2579
      %2706 = vmatprep.subr.mxu0 0.0
      %2707 = vmatpush1.msra.mxu0 0.0
      %2708 = vmatprep.subr.mxu0 0.0
      %2709 = vmatpush1.msra.mxu0 0.0
      %2710 = vmatprep.subr.mxu0 0.0
      %2711 = vmatpush1.msra.mxu0 0.0
      %2712 = vmatprep.subr.mxu0 0.0
      %2713 = vmatpush1.msra.mxu0 0.0
      %2714 = vmatprep.subr.mxu0 0.0
      %2715 = vmatpush1.msra.mxu0 0.0
      %2716 = vmatprep.subr.mxu0 0.0
      %2717 = vmatpush1.msra.mxu0 0.0
      %2718 = vmatprep.subr.mxu0 0.0
      %2719 = vmatpush1.msra.mxu0 0.0
      %2720 = vmatprep.subr.mxu0 0.0
      %2721 = vmatpush1.msra.mxu0 0.0
      %2722 = vmatprep.subr.mxu0 0.0
      %2723 = vmatpush1.msra.mxu0 0.0
      %2724 = vmatprep.subr.mxu0 0.0
      %2725 = vmatpush1.msra.mxu0 0.0
      %2726 = vmatprep.subr.mxu0 0.0
      %2727 = vmatpush1.msra.mxu0 0.0
      %2728 = vmatprep.subr.mxu0 0.0
      %2729 = vmatpush1.msra.mxu0 0.0
      %2730 = vmatprep.subr.mxu0 0.0
      %2731 = vmatpush1.msra.mxu0 0.0
      %2732 = vmatprep.subr.mxu0 0.0
      %2733 = vmatpush1.msra.mxu0 0.0
      %2734 = vmatprep.subr.mxu0 0.0
      %2735 = vmatpush1.msra.mxu0 0.0
      %2736 = vmatprep.subr.mxu0 0.0
      %2737 = vmatpush1.msra.mxu0 0.0
      %2738 = vmatprep.mubr.f32.mxu0 0.0
      %2739 = vmatmul.mubr.f32.gmra.mrb[0].mxu0 %v2562
      %v2740 = vpop.f32.mrb[0].mxu0
      %v2741 = vadd.f32 %v2666, %v2740
      %v2742 = vpop.f32.mrb[0].mxu0
      %2743 = vmatprep.mubr.f32.mxu0 0.0
      %2744 = vmatmul.mubr.f32.gmra.mrb[0].mxu0 %v2563
      %v2745 = vpop.f32.mrb[0].mxu0
      %v2746 = vadd.f32 %v2671, %v2745
      %v2747 = vpop.f32.mrb[0].mxu0
      %2748 = vdwg.mxu0
      %v2749 = vld [vmem:[#allocation5 + $0x2] sm:$0xff]
      %v2750 = vld [vmem:[#allocation5 + $0xa] sm:$0xff]
      %s2751 = scalar_lea.vmem %s15, 256
      %v2752 = vld [vmem:[%s2751] sm:$0xff]
      %v2753 = vld [vmem:[%s2751 + $0x8] sm:$0xff]
      %v2754 = vld [vmem:[%s2751 + $0x10] sm:$0xff]
      %v2755 = vld [vmem:[%s2751 + $0x18] sm:$0xff]
      %v2756 = vld [vmem:[%s2751 + $0x20] sm:$0xff]
      %v2757 = vld [vmem:[%s2751 + $0x28] sm:$0xff]
      %v2758 = vld [vmem:[%s2751 + $0x30] sm:$0xff]
      %v2759 = vld [vmem:[%s2751 + $0x38] sm:$0xff]
      %v2760 = vld [vmem:[%s2751 + $0x40] sm:$0xff]
      %v2761 = vld [vmem:[%s2751 + $0x48] sm:$0xff]
      %v2762 = vld [vmem:[%s2751 + $0x50] sm:$0xff]
      %v2763 = vld [vmem:[%s2751 + $0x58] sm:$0xff]
      %v2764 = vld [vmem:[%s2751 + $0x60] sm:$0xff]
      %v2765 = vld [vmem:[%s2751 + $0x68] sm:$0xff]
      %v2766 = vld [vmem:[%s2751 + $0x70] sm:$0xff]
      %v2767 = vld [vmem:[%s2751 + $0x78] sm:$0xff]
      %2768 = vmatprep.subr.mxu0 0.0
      %2769 = vmatpush1.msra.mxu0 %v2752
      %2770 = vmatprep.subr.mxu0 0.0
      %2771 = vmatpush1.msra.mxu0 %v2753
      %2772 = vmatprep.subr.mxu0 0.0
      %2773 = vmatpush1.msra.mxu0 %v2754
      %2774 = vmatprep.subr.mxu0 0.0
      %2775 = vmatpush1.msra.mxu0 %v2755
      %2776 = vmatprep.subr.mxu0 0.0
      %2777 = vmatpush1.msra.mxu0 %v2756
      %2778 = vmatprep.subr.mxu0 0.0
      %2779 = vmatpush1.msra.mxu0 %v2757
      %2780 = vmatprep.subr.mxu0 0.0
      %2781 = vmatpush1.msra.mxu0 %v2758
      %2782 = vmatprep.subr.mxu0 0.0
      %2783 = vmatpush1.msra.mxu0 %v2759
      %2784 = vmatprep.subr.mxu0 0.0
      %2785 = vmatpush1.msra.mxu0 %v2760
      %2786 = vmatprep.subr.mxu0 0.0
      %2787 = vmatpush1.msra.mxu0 %v2761
      %2788 = vmatprep.subr.mxu0 0.0
      %2789 = vmatpush1.msra.mxu0 %v2762
      %2790 = vmatprep.subr.mxu0 0.0
      %2791 = vmatpush1.msra.mxu0 %v2763
      %2792 = vmatprep.subr.mxu0 0.0
      %2793 = vmatpush1.msra.mxu0 %v2764
      %2794 = vmatprep.subr.mxu0 0.0
      %2795 = vmatpush1.msra.mxu0 %v2765
      %2796 = vmatprep.subr.mxu0 0.0
      %2797 = vmatpush1.msra.mxu0 %v2766
      %2798 = vmatprep.subr.mxu0 0.0
      %2799 = vmatpush1.msra.mxu0 %v2767
      %2800 = vmatprep.subr.mxu0 0.0
      %2801 = vmatpush1.msra.mxu0 0.0
      %2802 = vmatprep.subr.mxu0 0.0
      %2803 = vmatpush1.msra.mxu0 0.0
      %2804 = vmatprep.subr.mxu0 0.0
      %2805 = vmatpush1.msra.mxu0 0.0
      %2806 = vmatprep.subr.mxu0 0.0
      %2807 = vmatpush1.msra.mxu0 0.0
      %2808 = vmatprep.subr.mxu0 0.0
      %2809 = vmatpush1.msra.mxu0 0.0
      %2810 = vmatprep.subr.mxu0 0.0
      %2811 = vmatpush1.msra.mxu0 0.0
      %2812 = vmatprep.subr.mxu0 0.0
      %2813 = vmatpush1.msra.mxu0 0.0
      %2814 = vmatprep.subr.mxu0 0.0
      %2815 = vmatpush1.msra.mxu0 0.0
      %2816 = vmatprep.subr.mxu0 0.0
      %2817 = vmatpush1.msra.mxu0 0.0
      %2818 = vmatprep.subr.mxu0 0.0
      %2819 = vmatpush1.msra.mxu0 0.0
      %2820 = vmatprep.subr.mxu0 0.0
      %2821 = vmatpush1.msra.mxu0 0.0
      %2822 = vmatprep.subr.mxu0 0.0
      %2823 = vmatpush1.msra.mxu0 0.0
      %2824 = vmatprep.subr.mxu0 0.0
      %2825 = vmatpush1.msra.mxu0 0.0
      %2826 = vmatprep.subr.mxu0 0.0
      %2827 = vmatpush1.msra.mxu0 0.0
      %2828 = vmatprep.subr.mxu0 0.0
      %2829 = vmatpush1.msra.mxu0 0.0
      %2830 = vmatprep.subr.mxu0 0.0
      %2831 = vmatpush1.msra.mxu0 0.0
      %2832 = vmatprep.mubr.f32.mxu0 0.0
      %2833 = vmatmul.mubr.f32.gmra.mrb[0].mxu0 %v2749
      %v2834 = vpop.f32.mrb[0].mxu0
      %v2835 = vadd.f32 0.0, %v2834
      %v2836 = vpop.f32.mrb[0].mxu0
      %2837 = vmatprep.mubr.f32.mxu0 0.0
      %2838 = vmatmul.mubr.f32.gmra.mrb[0].mxu0 %v2750
      %v2839 = vpop.f32.mrb[0].mxu0
      %v2840 = vadd.f32 0.0, %v2839
      %v2841 = vpop.f32.mrb[0].mxu0
      %2842 = vdwg.mxu0
      %v2843 = vadd.f32 %v2741, %v2835
      %v2844 = vadd.f32 %v2746, %v2840
      %v2845 = vld [vmem:[%s20] sm:$0xff]
      %v2846 = vld [vmem:[%s20 + $0x8] sm:$0xff]
      %v2847 = vld [vmem:[%s20 + $0x10] sm:$0xff]
      %v2848 = vld [vmem:[%s20 + $0x18] sm:$0xff]
      %v2849 = vld [vmem:[%s20 + $0x20] sm:$0xff]
      %v2850 = vld [vmem:[%s20 + $0x28] sm:$0xff]
      %v2851 = vld [vmem:[%s20 + $0x30] sm:$0xff]
      %v2852 = vld [vmem:[%s20 + $0x38] sm:$0xff]
      %v2853 = vld [vmem:[%s21] sm:$0x1]
      %v2855 = vlaneseq
      %v2856 = vshrl.u32 %v2855, 7
      %v2857 = vsub.s32 0, %v2856
      %v2858 = vrot.slane %v2853, %v2857
      %v2861 = vsel %vm714, %v696, 0
      %v2864 = vsel %vm714, %v697, 0
      %2866 = vmatprep.subr.mxu0 0.0
      %2867 = vmatpush1.msra.mxu0 %v2845
      %2868 = vmatprep.subr.mxu0 0.0
      %2869 = vmatpush1.msra.mxu0 %v2846
      %2870 = vmatprep.subr.mxu0 0.0
      %2871 = vmatpush1.msra.mxu0 %v2847
      %2872 = vmatprep.subr.mxu0 0.0
      %2873 = vmatpush1.msra.mxu0 %v2848
      %2874 = vmatprep.subr.mxu0 0.0
      %2875 = vmatpush1.msra.mxu0 %v2849
      %2876 = vmatprep.subr.mxu0 0.0
      %2877 = vmatpush1.msra.mxu0 %v2850
      %2878 = vmatprep.subr.mxu0 0.0
      %2879 = vmatpush1.msra.mxu0 %v2851
      %2880 = vmatprep.subr.mxu0 0.0
      %2881 = vmatpush1.msra.mxu0 %v2852
      %2882 = vmatprep.subr.mxu0 0.0
      %2883 = vmatpush1.msra.mxu0 0.0
      %2884 = vmatprep.subr.mxu0 0.0
      %2885 = vmatpush1.msra.mxu0 0.0
      %2886 = vmatprep.subr.mxu0 0.0
      %2887 = vmatpush1.msra.mxu0 0.0
      %2888 = vmatprep.subr.mxu0 0.0
      %2889 = vmatpush1.msra.mxu0 0.0
      %2890 = vmatprep.subr.mxu0 0.0
      %2891 = vmatpush1.msra.mxu0 0.0
      %2892 = vmatprep.subr.mxu0 0.0
      %2893 = vmatpush1.msra.mxu0 0.0
      %2894 = vmatprep.subr.mxu0 0.0
      %2895 = vmatpush1.msra.mxu0 0.0
      %2896 = vmatprep.subr.mxu0 0.0
      %2897 = vmatpush1.msra.mxu0 0.0
      %2898 = vmatprep.subr.mxu0 0.0
      %2899 = vmatpush1.msra.mxu0 0.0
      %2900 = vmatprep.subr.mxu0 0.0
      %2901 = vmatpush1.msra.mxu0 0.0
      %2902 = vmatprep.subr.mxu0 0.0
      %2903 = vmatpush1.msra.mxu0 0.0
      %2904 = vmatprep.subr.mxu0 0.0
      %2905 = vmatpush1.msra.mxu0 0.0
      %2906 = vmatprep.subr.mxu0 0.0
      %2907 = vmatpush1.msra.mxu0 0.0
      %2908 = vmatprep.subr.mxu0 0.0
      %2909 = vmatpush1.msra.mxu0 0.0
      %2910 = vmatprep.subr.mxu0 0.0
      %2911 = vmatpush1.msra.mxu0 0.0
      %2912 = vmatprep.subr.mxu0 0.0
      %2913 = vmatpush1.msra.mxu0 0.0
      %2914 = vmatprep.subr.mxu0 0.0
      %2915 = vmatpush1.msra.mxu0 0.0
      %2916 = vmatprep.subr.mxu0 0.0
      %2917 = vmatpush1.msra.mxu0 0.0
      %2918 = vmatprep.subr.mxu0 0.0
      %2919 = vmatpush1.msra.mxu0 0.0
      %2920 = vmatprep.subr.mxu0 0.0
      %2921 = vmatpush1.msra.mxu0 0.0
      %2922 = vmatprep.subr.mxu0 0.0
      %2923 = vmatpush1.msra.mxu0 0.0
      %2924 = vmatprep.subr.mxu0 0.0
      %2925 = vmatpush1.msra.mxu0 0.0
      %2926 = vmatprep.subr.mxu0 0.0
      %2927 = vmatpush1.msra.mxu0 0.0
      %2928 = vmatprep.subr.mxu0 0.0
      %2929 = vmatpush1.msra.mxu0 0.0
      %2930 = vmatprep.mubr.f32.mxu0 0.0
      %2931 = vmatmul.mubr.f32.gmra.mrb[0].mxu0 %v2861
      %v2932 = vpop.f32.mrb[0].mxu0
      %v2933 = vadd.f32 %v2858, %v2932
      %v2934 = vpop.f32.mrb[0].mxu0
      %2935 = vmatprep.mubr.f32.mxu0 0.0
      %2936 = vmatmul.mubr.f32.gmra.mrb[0].mxu0 %v2864
      %v2937 = vpop.f32.mrb[0].mxu0
      %v2938 = vadd.f32 %v2858, %v2937
      %v2939 = vpop.f32.mrb[0].mxu0
      %2940 = vdwg.mxu0
      %v2941 = vld [vmem:[%s16] sm:$0x1]
      %v2942 = vlaneseq
      %v2943 = vshrl.u32 %v2942, 7
      %v2944 = vsub.s32 0, %v2943
      %v2945 = vrot.slane %v2941, %v2944
      %v2946 = vmul.f32 %v696, %v2945
      %v2947 = vmul.f32 %v697, %v2945
      %v2948 = vld [vmem:[%s16 + $0x1] sm:$0x1]
      %v2949 = vlaneseq
      %v2950 = vshrl.u32 %v2949, 7
      %v2951 = vsub.s32 0, %v2950
      %v2952 = vrot.slane %v2948, %v2951
      %v2953 = vadd.f32 %v2946, %v2952
      %v2954 = vadd.f32 %v2947, %v2952
      %v2955 = vmax.f32 %v2953, 0.0
      %v2956 = vmax.f32 %v2954, 0.0
      %v2957 = vld [vmem:[%s18] sm:$0xff]
      %v2958 = vld [vmem:[%s18 + $0x8] sm:$0xff]
      %v2959 = vld [vmem:[%s18 + $0x10] sm:$0xff]
      %v2960 = vld [vmem:[%s18 + $0x18] sm:$0xff]
      %v2961 = vld [vmem:[%s18 + $0x20] sm:$0xff]
      %v2962 = vld [vmem:[%s18 + $0x28] sm:$0xff]
      %v2963 = vld [vmem:[%s18 + $0x30] sm:$0xff]
      %v2964 = vld [vmem:[%s18 + $0x38] sm:$0xff]
      %v2966 = vsel %vm714, %v2955, 0
      %v2969 = vsel %vm714, %v2956, 0
      %2971 = vmatprep.subr.mxu0 0.0
      %2972 = vmatpush1.msra.mxu0 %v2957
      %2973 = vmatprep.subr.mxu0 0.0
      %2974 = vmatpush1.msra.mxu0 %v2958
      %2975 = vmatprep.subr.mxu0 0.0
      %2976 = vmatpush1.msra.mxu0 %v2959
      %2977 = vmatprep.subr.mxu0 0.0
      %2978 = vmatpush1.msra.mxu0 %v2960
      %2979 = vmatprep.subr.mxu0 0.0
      %2980 = vmatpush1.msra.mxu0 %v2961
      %2981 = vmatprep.subr.mxu0 0.0
      %2982 = vmatpush1.msra.mxu0 %v2962
      %2983 = vmatprep.subr.mxu0 0.0
      %2984 = vmatpush1.msra.mxu0 %v2963
      %2985 = vmatprep.subr.mxu0 0.0
      %2986 = vmatpush1.msra.mxu0 %v2964
      %2987 = vmatprep.subr.mxu0 0.0
      %2988 = vmatpush1.msra.mxu0 0.0
      %2989 = vmatprep.subr.mxu0 0.0
      %2990 = vmatpush1.msra.mxu0 0.0
      %2991 = vmatprep.subr.mxu0 0.0
      %2992 = vmatpush1.msra.mxu0 0.0
      %2993 = vmatprep.subr.mxu0 0.0
      %2994 = vmatpush1.msra.mxu0 0.0
      %2995 = vmatprep.subr.mxu0 0.0
      %2996 = vmatpush1.msra.mxu0 0.0
      %2997 = vmatprep.subr.mxu0 0.0
      %2998 = vmatpush1.msra.mxu0 0.0
      %2999 = vmatprep.subr.mxu0 0.0
      %3000 = vmatpush1.msra.mxu0 0.0
      %3001 = vmatprep.subr.mxu0 0.0
      %3002 = vmatpush1.msra.mxu0 0.0
      %3003 = vmatprep.subr.mxu0 0.0
      %3004 = vmatpush1.msra.mxu0 0.0
      %3005 = vmatprep.subr.mxu0 0.0
      %3006 = vmatpush1.msra.mxu0 0.0
      %3007 = vmatprep.subr.mxu0 0.0
      %3008 = vmatpush1.msra.mxu0 0.0
      %3009 = vmatprep.subr.mxu0 0.0
      %3010 = vmatpush1.msra.mxu0 0.0
      %3011 = vmatprep.subr.mxu0 0.0
      %3012 = vmatpush1.msra.mxu0 0.0
      %3013 = vmatprep.subr.mxu0 0.0
      %3014 = vmatpush1.msra.mxu0 0.0
      %3015 = vmatprep.subr.mxu0 0.0
      %3016 = vmatpush1.msra.mxu0 0.0
      %3017 = vmatprep.subr.mxu0 0.0
      %3018 = vmatpush1.msra.mxu0 0.0
      %3019 = vmatprep.subr.mxu0 0.0
      %3020 = vmatpush1.msra.mxu0 0.0
      %3021 = vmatprep.subr.mxu0 0.0
      %3022 = vmatpush1.msra.mxu0 0.0
      %3023 = vmatprep.subr.mxu0 0.0
      %3024 = vmatpush1.msra.mxu0 0.0
      %3025 = vmatprep.subr.mxu0 0.0
      %3026 = vmatpush1.msra.mxu0 0.0
      %3027 = vmatprep.subr.mxu0 0.0
      %3028 = vmatpush1.msra.mxu0 0.0
      %3029 = vmatprep.subr.mxu0 0.0
      %3030 = vmatpush1.msra.mxu0 0.0
      %3031 = vmatprep.subr.mxu0 0.0
      %3032 = vmatpush1.msra.mxu0 0.0
      %3033 = vmatprep.subr.mxu0 0.0
      %3034 = vmatpush1.msra.mxu0 0.0
      %3035 = vmatprep.mubr.f32.mxu0 0.0
      %3036 = vmatmul.mubr.f32.gmra.mrb[0].mxu0 %v2966
      %v3037 = vpop.f32.mrb[0].mxu0
      %v3038 = vadd.f32 0.0, %v3037
      %v3039 = vpop.f32.mrb[0].mxu0
      %3040 = vmatprep.mubr.f32.mxu0 0.0
      %3041 = vmatmul.mubr.f32.gmra.mrb[0].mxu0 %v2969
      %v3042 = vpop.f32.mrb[0].mxu0
      %v3043 = vadd.f32 0.0, %v3042
      %v3044 = vpop.f32.mrb[0].mxu0
      %3045 = vdwg.mxu0
      %v3046 = vadd.f32 %v2933, %v3038
      %v3047 = vadd.f32 %v2938, %v3043
      %v3048 = vld [vmem:[%s17] sm:$0x1]
      %v3049 = vlaneseq
      %v3050 = vshrl.u32 %v3049, 7
      %v3051 = vsub.s32 0, %v3050
      %v3052 = vrot.slane %v3048, %v3051
      %v3053 = vmul.f32 %v1407, %v3052
      %v3054 = vmul.f32 %v1408, %v3052
      %v3055 = vld [vmem:[%s17 + $0x1] sm:$0x1]
      %v3056 = vlaneseq
      %v3057 = vshrl.u32 %v3056, 7
      %v3058 = vsub.s32 0, %v3057
      %v3059 = vrot.slane %v3055, %v3058
      %v3060 = vadd.f32 %v3053, %v3059
      %v3061 = vadd.f32 %v3054, %v3059
      %v3062 = vmax.f32 %v3060, 0.0
      %v3063 = vmax.f32 %v3061, 0.0
      %v3064 = vld [vmem:[%s19] sm:$0xff]
      %v3065 = vld [vmem:[%s19 + $0x8] sm:$0xff]
      %v3066 = vld [vmem:[%s19 + $0x10] sm:$0xff]
      %v3067 = vld [vmem:[%s19 + $0x18] sm:$0xff]
      %v3068 = vld [vmem:[%s19 + $0x20] sm:$0xff]
      %v3069 = vld [vmem:[%s19 + $0x28] sm:$0xff]
      %v3070 = vld [vmem:[%s19 + $0x30] sm:$0xff]
      %v3071 = vld [vmem:[%s19 + $0x38] sm:$0xff]
      %v3072 = vld [vmem:[%s19 + $0x40] sm:$0xff]
      %v3073 = vld [vmem:[%s19 + $0x48] sm:$0xff]
      %v3074 = vld [vmem:[%s19 + $0x50] sm:$0xff]
      %v3075 = vld [vmem:[%s19 + $0x58] sm:$0xff]
      %v3076 = vld [vmem:[%s19 + $0x60] sm:$0xff]
      %v3077 = vld [vmem:[%s19 + $0x68] sm:$0xff]
      %v3078 = vld [vmem:[%s19 + $0x70] sm:$0xff]
      %v3079 = vld [vmem:[%s19 + $0x78] sm:$0xff]
      %3080 = vmatprep.subr.mxu0 0.0
      %3081 = vmatpush1.msra.mxu0 %v3064
      %3082 = vmatprep.subr.mxu0 0.0
      %3083 = vmatpush1.msra.mxu0 %v3065
      %3084 = vmatprep.subr.mxu0 0.0
      %3085 = vmatpush1.msra.mxu0 %v3066
      %3086 = vmatprep.subr.mxu0 0.0
      %3087 = vmatpush1.msra.mxu0 %v3067
      %3088 = vmatprep.subr.mxu0 0.0
      %3089 = vmatpush1.msra.mxu0 %v3068
      %3090 = vmatprep.subr.mxu0 0.0
      %3091 = vmatpush1.msra.mxu0 %v3069
      %3092 = vmatprep.subr.mxu0 0.0
      %3093 = vmatpush1.msra.mxu0 %v3070
      %3094 = vmatprep.subr.mxu0 0.0
      %3095 = vmatpush1.msra.mxu0 %v3071
      %3096 = vmatprep.subr.mxu0 0.0
      %3097 = vmatpush1.msra.mxu0 %v3072
      %3098 = vmatprep.subr.mxu0 0.0
      %3099 = vmatpush1.msra.mxu0 %v3073
      %3100 = vmatprep.subr.mxu0 0.0
      %3101 = vmatpush1.msra.mxu0 %v3074
      %3102 = vmatprep.subr.mxu0 0.0
      %3103 = vmatpush1.msra.mxu0 %v3075
      %3104 = vmatprep.subr.mxu0 0.0
      %3105 = vmatpush1.msra.mxu0 %v3076
      %3106 = vmatprep.subr.mxu0 0.0
      %3107 = vmatpush1.msra.mxu0 %v3077
      %3108 = vmatprep.subr.mxu0 0.0
      %3109 = vmatpush1.msra.mxu0 %v3078
      %3110 = vmatprep.subr.mxu0 0.0
      %3111 = vmatpush1.msra.mxu0 %v3079
      %3112 = vmatprep.subr.mxu0 0.0
      %3113 = vmatpush1.msra.mxu0 0.0
      %3114 = vmatprep.subr.mxu0 0.0
      %3115 = vmatpush1.msra.mxu0 0.0
      %3116 = vmatprep.subr.mxu0 0.0
      %3117 = vmatpush1.msra.mxu0 0.0
      %3118 = vmatprep.subr.mxu0 0.0
      %3119 = vmatpush1.msra.mxu0 0.0
      %3120 = vmatprep.subr.mxu0 0.0
      %3121 = vmatpush1.msra.mxu0 0.0
      %3122 = vmatprep.subr.mxu0 0.0
      %3123 = vmatpush1.msra.mxu0 0.0
      %3124 = vmatprep.subr.mxu0 0.0
      %3125 = vmatpush1.msra.mxu0 0.0
      %3126 = vmatprep.subr.mxu0 0.0
      %3127 = vmatpush1.msra.mxu0 0.0
      %3128 = vmatprep.subr.mxu0 0.0
      %3129 = vmatpush1.msra.mxu0 0.0
      %3130 = vmatprep.subr.mxu0 0.0
      %3131 = vmatpush1.msra.mxu0 0.0
      %3132 = vmatprep.subr.mxu0 0.0
      %3133 = vmatpush1.msra.mxu0 0.0
      %3134 = vmatprep.subr.mxu0 0.0
      %3135 = vmatpush1.msra.mxu0 0.0
      %3136 = vmatprep.subr.mxu0 0.0
      %3137 = vmatpush1.msra.mxu0 0.0
      %3138 = vmatprep.subr.mxu0 0.0
      %3139 = vmatpush1.msra.mxu0 0.0
      %3140 = vmatprep.subr.mxu0 0.0
      %3141 = vmatpush1.msra.mxu0 0.0
      %3142 = vmatprep.subr.mxu0 0.0
      %3143 = vmatpush1.msra.mxu0 0.0
      %3144 = vmatprep.mubr.f32.mxu0 0.0
      %3145 = vmatmul.mubr.f32.gmra.mrb[0].mxu0 %v3062
      %v3146 = vpop.f32.mrb[0].mxu0
      %v3147 = vadd.f32 0.0, %v3146
      %v3148 = vpop.f32.mrb[0].mxu0
      %3149 = vmatprep.mubr.f32.mxu0 0.0
      %3150 = vmatmul.mubr.f32.gmra.mrb[0].mxu0 %v3063
      %v3151 = vpop.f32.mrb[0].mxu0
      %v3152 = vadd.f32 0.0, %v3151
      %v3153 = vpop.f32.mrb[0].mxu0
      %3154 = vdwg.mxu0
      %v3155 = vadd.f32 %v3046, %v3147
      %v3156 = vadd.f32 %v3047, %v3152
      %v3157 = vld [vmem:[%s17 + $0x2] sm:$0x1]
      %v3158 = vlaneseq
      %v3159 = vshrl.u32 %v3158, 7
      %v3160 = vsub.s32 0, %v3159
      %v3161 = vrot.slane %v3157, %v3160
      %v3162 = vmul.f32 %v2125, %v3161
      %v3163 = vmul.f32 %v2126, %v3161
      %v3164 = vld [vmem:[%s17 + $0x3] sm:$0x1]
      %v3165 = vlaneseq
      %v3166 = vshrl.u32 %v3165, 7
      %v3167 = vsub.s32 0, %v3166
      %v3168 = vrot.slane %v3164, %v3167
      %v3169 = vadd.f32 %v3162, %v3168
      %v3170 = vadd.f32 %v3163, %v3168
      %v3171 = vmax.f32 %v3169, 0.0
      %v3172 = vmax.f32 %v3170, 0.0
      %s3173 = scalar_lea.vmem %s19, 128
      %v3174 = vld [vmem:[%s3173] sm:$0xff]
      %v3175 = vld [vmem:[%s3173 + $0x8] sm:$0xff]
      %v3176 = vld [vmem:[%s3173 + $0x10] sm:$0xff]
      %v3177 = vld [vmem:[%s3173 + $0x18] sm:$0xff]
      %v3178 = vld [vmem:[%s3173 + $0x20] sm:$0xff]
      %v3179 = vld [vmem:[%s3173 + $0x28] sm:$0xff]
      %v3180 = vld [vmem:[%s3173 + $0x30] sm:$0xff]
      %v3181 = vld [vmem:[%s3173 + $0x38] sm:$0xff]
      %v3182 = vld [vmem:[%s3173 + $0x40] sm:$0xff]
      %v3183 = vld [vmem:[%s3173 + $0x48] sm:$0xff]
      %v3184 = vld [vmem:[%s3173 + $0x50] sm:$0xff]
      %v3185 = vld [vmem:[%s3173 + $0x58] sm:$0xff]
      %v3186 = vld [vmem:[%s3173 + $0x60] sm:$0xff]
      %v3187 = vld [vmem:[%s3173 + $0x68] sm:$0xff]
      %v3188 = vld [vmem:[%s3173 + $0x70] sm:$0xff]
      %v3189 = vld [vmem:[%s3173 + $0x78] sm:$0xff]
      %3190 = vmatprep.subr.mxu0 0.0
      %3191 = vmatpush1.msra.mxu0 %v3174
      %3192 = vmatprep.subr.mxu0 0.0
      %3193 = vmatpush1.msra.mxu0 %v3175
      %3194 = vmatprep.subr.mxu0 0.0
      %3195 = vmatpush1.msra.mxu0 %v3176
      %3196 = vmatprep.subr.mxu0 0.0
      %3197 = vmatpush1.msra.mxu0 %v3177
      %3198 = vmatprep.subr.mxu0 0.0
      %3199 = vmatpush1.msra.mxu0 %v3178
      %3200 = vmatprep.subr.mxu0 0.0
      %3201 = vmatpush1.msra.mxu0 %v3179
      %3202 = vmatprep.subr.mxu0 0.0
      %3203 = vmatpush1.msra.mxu0 %v3180
      %3204 = vmatprep.subr.mxu0 0.0
      %3205 = vmatpush1.msra.mxu0 %v3181
      %3206 = vmatprep.subr.mxu0 0.0
      %3207 = vmatpush1.msra.mxu0 %v3182
      %3208 = vmatprep.subr.mxu0 0.0
      %3209 = vmatpush1.msra.mxu0 %v3183
      %3210 = vmatprep.subr.mxu0 0.0
      %3211 = vmatpush1.msra.mxu0 %v3184
      %3212 = vmatprep.subr.mxu0 0.0
      %3213 = vmatpush1.msra.mxu0 %v3185
      %3214 = vmatprep.subr.mxu0 0.0
      %3215 = vmatpush1.msra.mxu0 %v3186
      %3216 = vmatprep.subr.mxu0 0.0
      %3217 = vmatpush1.msra.mxu0 %v3187
      %3218 = vmatprep.subr.mxu0 0.0
      %3219 = vmatpush1.msra.mxu0 %v3188
      %3220 = vmatprep.subr.mxu0 0.0
      %3221 = vmatpush1.msra.mxu0 %v3189
      %3222 = vmatprep.subr.mxu0 0.0
      %3223 = vmatpush1.msra.mxu0 0.0
      %3224 = vmatprep.subr.mxu0 0.0
      %3225 = vmatpush1.msra.mxu0 0.0
      %3226 = vmatprep.subr.mxu0 0.0
      %3227 = vmatpush1.msra.mxu0 0.0
      %3228 = vmatprep.subr.mxu0 0.0
      %3229 = vmatpush1.msra.mxu0 0.0
      %3230 = vmatprep.subr.mxu0 0.0
      %3231 = vmatpush1.msra.mxu0 0.0
      %3232 = vmatprep.subr.mxu0 0.0
      %3233 = vmatpush1.msra.mxu0 0.0
      %3234 = vmatprep.subr.mxu0 0.0
      %3235 = vmatpush1.msra.mxu0 0.0
      %3236 = vmatprep.subr.mxu0 0.0
      %3237 = vmatpush1.msra.mxu0 0.0
      %3238 = vmatprep.subr.mxu0 0.0
      %3239 = vmatpush1.msra.mxu0 0.0
      %3240 = vmatprep.subr.mxu0 0.0
      %3241 = vmatpush1.msra.mxu0 0.0
      %3242 = vmatprep.subr.mxu0 0.0
      %3243 = vmatpush1.msra.mxu0 0.0
      %3244 = vmatprep.subr.mxu0 0.0
      %3245 = vmatpush1.msra.mxu0 0.0
      %3246 = vmatprep.subr.mxu0 0.0
      %3247 = vmatpush1.msra.mxu0 0.0
      %3248 = vmatprep.subr.mxu0 0.0
      %3249 = vmatpush1.msra.mxu0 0.0
      %3250 = vmatprep.subr.mxu0 0.0
      %3251 = vmatpush1.msra.mxu0 0.0
      %3252 = vmatprep.subr.mxu0 0.0
      %3253 = vmatpush1.msra.mxu0 0.0
      %3254 = vmatprep.mubr.f32.mxu0 0.0
      %3255 = vmatmul.mubr.f32.gmra.mrb[0].mxu0 %v3171
      %v3256 = vpop.f32.mrb[0].mxu0
      %v3257 = vadd.f32 0.0, %v3256
      %v3258 = vpop.f32.mrb[0].mxu0
      %3259 = vmatprep.mubr.f32.mxu0 0.0
      %3260 = vmatmul.mubr.f32.gmra.mrb[0].mxu0 %v3172
      %v3261 = vpop.f32.mrb[0].mxu0
      %v3262 = vadd.f32 0.0, %v3261
      %v3263 = vpop.f32.mrb[0].mxu0
      %3264 = vdwg.mxu0
      %v3265 = vadd.f32 %v3155, %v3257
      %v3266 = vadd.f32 %v3156, %v3262
      %v3267 = vld [vmem:[%s17 + $0x4] sm:$0x1]
      %v3268 = vlaneseq
      %v3269 = vshrl.u32 %v3268, 7
      %v3270 = vsub.s32 0, %v3269
      %v3271 = vrot.slane %v3267, %v3270
      %v3272 = vmul.f32 %v2843, %v3271
      %v3273 = vmul.f32 %v2844, %v3271
      %v3274 = vld [vmem:[%s17 + $0x5] sm:$0x1]
      %v3275 = vlaneseq
      %v3276 = vshrl.u32 %v3275, 7
      %v3277 = vsub.s32 0, %v3276
      %v3278 = vrot.slane %v3274, %v3277
      %v3279 = vadd.f32 %v3272, %v3278
      %v3280 = vadd.f32 %v3273, %v3278
      %v3281 = vmax.f32 %v3279, 0.0
      %v3282 = vmax.f32 %v3280, 0.0
      %s3283 = scalar_lea.vmem %s19, 256
      %v3284 = vld [vmem:[%s3283] sm:$0xff]
      %v3285 = vld [vmem:[%s3283 + $0x8] sm:$0xff]
      %v3286 = vld [vmem:[%s3283 + $0x10] sm:$0xff]
      %v3287 = vld [vmem:[%s3283 + $0x18] sm:$0xff]
      %v3288 = vld [vmem:[%s3283 + $0x20] sm:$0xff]
      %v3289 = vld [vmem:[%s3283 + $0x28] sm:$0xff]
      %v3290 = vld [vmem:[%s3283 + $0x30] sm:$0xff]
      %v3291 = vld [vmem:[%s3283 + $0x38] sm:$0xff]
      %v3292 = vld [vmem:[%s3283 + $0x40] sm:$0xff]
      %v3293 = vld [vmem:[%s3283 + $0x48] sm:$0xff]
      %v3294 = vld [vmem:[%s3283 + $0x50] sm:$0xff]
      %v3295 = vld [vmem:[%s3283 + $0x58] sm:$0xff]
      %v3296 = vld [vmem:[%s3283 + $0x60] sm:$0xff]
      %v3297 = vld [vmem:[%s3283 + $0x68] sm:$0xff]
      %v3298 = vld [vmem:[%s3283 + $0x70] sm:$0xff]
      %v3299 = vld [vmem:[%s3283 + $0x78] sm:$0xff]
      %3300 = vmatprep.subr.mxu0 0.0
      %3301 = vmatpush1.msra.mxu0 %v3284
      %3302 = vmatprep.subr.mxu0 0.0
      %3303 = vmatpush1.msra.mxu0 %v3285
      %3304 = vmatprep.subr.mxu0 0.0
      %3305 = vmatpush1.msra.mxu0 %v3286
      %3306 = vmatprep.subr.mxu0 0.0
      %3307 = vmatpush1.msra.mxu0 %v3287
      %3308 = vmatprep.subr.mxu0 0.0
      %3309 = vmatpush1.msra.mxu0 %v3288
      %3310 = vmatprep.subr.mxu0 0.0
      %3311 = vmatpush1.msra.mxu0 %v3289
      %3312 = vmatprep.subr.mxu0 0.0
      %3313 = vmatpush1.msra.mxu0 %v3290
      %3314 = vmatprep.subr.mxu0 0.0
      %3315 = vmatpush1.msra.mxu0 %v3291
      %3316 = vmatprep.subr.mxu0 0.0
      %3317 = vmatpush1.msra.mxu0 %v3292
      %3318 = vmatprep.subr.mxu0 0.0
      %3319 = vmatpush1.msra.mxu0 %v3293
      %3320 = vmatprep.subr.mxu0 0.0
      %3321 = vmatpush1.msra.mxu0 %v3294
      %3322 = vmatprep.subr.mxu0 0.0
      %3323 = vmatpush1.msra.mxu0 %v3295
      %3324 = vmatprep.subr.mxu0 0.0
      %3325 = vmatpush1.msra.mxu0 %v3296
      %3326 = vmatprep.subr.mxu0 0.0
      %3327 = vmatpush1.msra.mxu0 %v3297
      %3328 = vmatprep.subr.mxu0 0.0
      %3329 = vmatpush1.msra.mxu0 %v3298
      %3330 = vmatprep.subr.mxu0 0.0
      %3331 = vmatpush1.msra.mxu0 %v3299
      %3332 = vmatprep.subr.mxu0 0.0
      %3333 = vmatpush1.msra.mxu0 0.0
      %3334 = vmatprep.subr.mxu0 0.0
      %3335 = vmatpush1.msra.mxu0 0.0
      %3336 = vmatprep.subr.mxu0 0.0
      %3337 = vmatpush1.msra.mxu0 0.0
      %3338 = vmatprep.subr.mxu0 0.0
      %3339 = vmatpush1.msra.mxu0 0.0
      %3340 = vmatprep.subr.mxu0 0.0
      %3341 = vmatpush1.msra.mxu0 0.0
      %3342 = vmatprep.subr.mxu0 0.0
      %3343 = vmatpush1.msra.mxu0 0.0
      %3344 = vmatprep.subr.mxu0 0.0
      %3345 = vmatpush1.msra.mxu0 0.0
      %3346 = vmatprep.subr.mxu0 0.0
      %3347 = vmatpush1.msra.mxu0 0.0
      %3348 = vmatprep.subr.mxu0 0.0
      %3349 = vmatpush1.msra.mxu0 0.0
      %3350 = vmatprep.subr.mxu0 0.0
      %3351 = vmatpush1.msra.mxu0 0.0
      %3352 = vmatprep.subr.mxu0 0.0
      %3353 = vmatpush1.msra.mxu0 0.0
      %3354 = vmatprep.subr.mxu0 0.0
      %3355 = vmatpush1.msra.mxu0 0.0
      %3356 = vmatprep.subr.mxu0 0.0
      %3357 = vmatpush1.msra.mxu0 0.0
      %3358 = vmatprep.subr.mxu0 0.0
      %3359 = vmatpush1.msra.mxu0 0.0
      %3360 = vmatprep.subr.mxu0 0.0
      %3361 = vmatpush1.msra.mxu0 0.0
      %3362 = vmatprep.subr.mxu0 0.0
      %3363 = vmatpush1.msra.mxu0 0.0
      %3364 = vmatprep.mubr.f32.mxu0 0.0
      %3365 = vmatmul.mubr.f32.gmra.mrb[0].mxu0 %v3281
      %v3366 = vpop.f32.mrb[0].mxu0
      %v3367 = vadd.f32 0.0, %v3366
      %v3368 = vpop.f32.mrb[0].mxu0
      %3369 = vmatprep.mubr.f32.mxu0 0.0
      %3370 = vmatmul.mubr.f32.gmra.mrb[0].mxu0 %v3282
      %v3371 = vpop.f32.mrb[0].mxu0
      %v3372 = vadd.f32 0.0, %v3371
      %v3373 = vpop.f32.mrb[0].mxu0
      %3374 = vdwg.mxu0
      %v3375 = vadd.f32 %v3265, %v3367
      %v3376 = vadd.f32 %v3266, %v3372
      %3377 = vst [vmem:[%s685] sm:$0xff] %v3375
      %3378 = vst [vmem:[%s685 + $0x8] sm:$0xff] %v3376
      %s3379 = smul.u32 2, %s33
      %p3380 = scmp.lt.s32.totalorder %s3379, 3
      %s3381 = scalar_select %p3380, %s3379, 3
      %s3382 = smul.addr %s3381, 8
      %s3383 = scalar_lea.vmem %s22, %s3382
      // Predicated region
      $region109: #{dense_block_forward.1} parent=107 // pred_check
        %p3384 = pneg %p518
      $region110: #{dense_block_forward.1} parent=107 // pred_check_branch
        %3386 = sbr.rel (%p3384) target = $region112
      $region111: #{dense_block_forward.1} parent=107 // pred_region
        %s3387 = smul.u32 2, %s33
      $region112: #{dense_block_forward.1} parent=107 // pred_fallthru
        _
    $region108: #{dense_block_forward.1} parent=5 // pred_fallthru
      _
    %p3388 = scmp.le.s32.totalorder 2, %s28
    // Predicated region
    $region113: #{dense_block_forward.1} parent=5 // pred_check
      %p3389 = pneg %p3388
    $region114: #{dense_block_forward.1} parent=5 // pred_check_branch
      %3391 = sbr.rel (%p3389) target = $region116
    $region115: #{dense_block_forward.1} parent=5 // pred_region
      %s3392 = ssub.s32 %s28, 2
      // Predicated region
      $region117: #{dense_block_forward.1} parent=115 // pred_check
        %p3393 = pneg %p524
      $region118: #{dense_block_forward.1} parent=115 // pred_check_branch
        %3395 = sbr.rel (%p3393) target = $region120
      $region119: #{dense_block_forward.1} parent=115 // pred_region
        %s3396 = smul.u32 2, %s34
        %p3397 = scmp.lt.s32.totalorder %s3396, 3
        %s3398 = scalar_select %p3397, %s3396, 3
        %s3399 = smul.addr %s3398, 8
        %s3400 = scalar_lea.vmem %s22, %s3399
      $region120: #{dense_block_forward.1} parent=115 // pred_fallthru
        _
    $region116: #{dense_block_forward.1} parent=5 // pred_fallthru
      _
  $region6: #{dense_block_forward.1} parent=0 // loop_footer
    %s32 = sadd.s32 1, %s28
  $region7: #{dense_block_forward.1} parent=0 // loop_footer_branch
    %27 = sbr.rel target = $region3
  $region8: #{dense_block_forward.1} parent=0 // loop_exit
    _

</llo_original>
